<compile_context>
chip_gen: v6e
topology: v6e:2x2x1
jax: 0.10.0
libtpu: 0.0.40
codegen_flags: <defaults>
</compile_context>

<pallas_src>
import jax
import jax.numpy as jnp
from jax import lax
from jax.experimental import pallas as pl
from jax.experimental.pallas import tpu as pltpu


INV_1P1 = float(1.0 / 1.1)


def _round_up(x, m):
    return (x + m - 1) // m * m


def _make_resblock_kernel(H, W, Cin, Cout, Wp, M, MW, RW, PINX, PINH,
                          has_skip, downsample, mxu_dtype):
    """Builds the per-image kernel body (one image per grid step)."""

    def kernel(*refs):
        if has_skip:
            (x_ref, w1_ref, b1_ref, w2_ref, b2_ref, mask_ref, wskip_ref,
             out_ref, xpad_ref, h1pad_ref) = refs
        else:
            (x_ref, w1_ref, b1_ref, w2_ref, b2_ref, mask_ref,
             out_ref, xpad_ref, h1pad_ref) = refs
            wskip_ref = None
        f32 = jnp.float32

        # ---- Stage 0: fused input zero-padding.  The raw (Cin, H*W) image is
        # staged row-by-row into the flattened (Hp, Wp) zero-bordered layout so
        # every 3x3 tap below is a contiguous lane slice.  One full zero fill +
        # H small row stores; done every step so the kernel stays correct when
        # the "parallel" batch axis is sharded across TensorCores.
        xpad_ref[...] = jnp.zeros_like(xpad_ref)
        for h in range(H):                                  # static, H small
            dst = (h + 1) * Wp + 1
            xpad_ref[:, dst:dst + W] = x_ref[0, :, h * W:(h + 1) * W]

        # ---- conv1: 9 accumulating K=Cin MXU matmuls into an f32 accumulator
        # (no concatenated operand; each tap slice is read in place).
        acc1 = jnp.dot(w1_ref[0], xpad_ref[:, 0:M], preferred_element_type=f32)
        for t in range(1, 9):
            off = (t // 3) * Wp + (t % 3)
            acc1 = acc1 + jnp.dot(w1_ref[t], xpad_ref[:, off:off + M],
                                  preferred_element_type=f32)
        acc1 = acc1 + b1_ref[...]

        # Lip_swish without the /1.1 (folded into w2); zero the 2 junk columns
        # per row so conv2's zero padding stays exactly zero.
        h1 = acc1 * jax.nn.sigmoid(acc1) * mask_ref[...]

        # Re-pad h1 into the same flattened padded layout: the interior is
        # fully overwritten, only the borders need zeroing each step.
        h1pad_ref[:, :Wp + 1] = jnp.zeros((Cout, Wp + 1), mxu_dtype)
        h1pad_ref[:, Wp + 1 + M:] = jnp.zeros((Cout, PINH - (Wp + 1 + M)),
                                              mxu_dtype)
        h1pad_ref[:, Wp + 1:Wp + 1 + M] = h1.astype(mxu_dtype)

        # ---- conv2: 9 accumulating matmuls (+ one K=Cin matmul for the
        # 1x1-conv skip, or an identity add).
        res = jnp.dot(w2_ref[0], h1pad_ref[:, 0:RW], preferred_element_type=f32)
        for t in range(1, 9):
            off = (t // 3) * Wp + (t % 3)
            res = res + jnp.dot(w2_ref[t], h1pad_ref[:, off:off + RW],
                                preferred_element_type=f32)
        res = res + b2_ref[...]

        x_center = xpad_ref[:, Wp + 1:Wp + 1 + RW]          # (Cin, RW)
        if has_skip:
            res = res + jnp.dot(wskip_ref[...], x_center,
                                preferred_element_type=f32)
        else:
            res = res + x_center.astype(f32)                # identity skip

        # ---- avg_pool2d(2): 4-term shifted add on the VPU.  (The sigmoid
        # below runs on all MW lanes even though only 1/4 survive the pool;
        # the EUP has slack once the MXU is fed efficiently.)
        if downsample:
            y = 0.25 * (res[:, :MW] + res[:, 1:1 + MW]
                        + res[:, Wp:Wp + MW] + res[:, Wp + 1:Wp + 1 + MW])
        else:
            y = res

        # Final Lip_swish; lane-dense full-width (multiple-of-128) store.
        out_ref[0] = (y * jax.nn.sigmoid(y) * INV_1P1).astype(out_ref.dtype)

    return kernel


def resblock_forward(x_nchw, params, *, downsample, mxu_dtype=jnp.bfloat16):
    """Pallas ResBlock forward. x_nchw: (N, Cin, H, W) -> (N, Cout, Ho, Wo)."""
    w1, b1, w2, b2 = params["w1"], params["b1"], params["w2"], params["b2"]
    wskip = params.get("wskip")
    has_skip = wskip is not None

    N, Cin, H, W = x_nchw.shape
    Cout = w1.shape[0]
    if not has_skip and Cin != Cout:
        raise ValueError("identity skip requires in_channel == out_channel")
    if downsample and (H % 2 or W % 2):
        raise ValueError("downsample requires even spatial dims")

    Wp = W + 2
    M = H * Wp                                     # flat width incl. row junk
    MW = _round_up(M, 128)                         # lane-dense output width
    RW = MW + (Wp + 1 if downsample else 0)        # conv2/skip/pool width
    PINX = _round_up(max(2 * Wp + 2 + M, Wp + 1 + RW, (H + 2) * Wp), 128)
    PINH = _round_up(2 * Wp + 2 + RW, 128)
    Wo = W // 2 if downsample else W

    # Raw image slab, no wrapper-side padding copy; cast once for the MXU.
    xflat = x_nchw.reshape(N, Cin, H * W).astype(mxu_dtype)

    # Torch OIHW weights -> per-tap (9, Cout, C) matrices, tap t = kh*3 + kw.
    w1t = jnp.transpose(w1, (2, 3, 0, 1)).reshape(9, Cout, Cin).astype(mxu_dtype)
    # Fold the first Lip_swish's 1/1.1 into conv2's tap weights (b2 untouched).
    w2t = (jnp.transpose(w2, (2, 3, 0, 1)).reshape(9, Cout, Cout)
           * INV_1P1).astype(mxu_dtype)
    b1c = b1.reshape(Cout, 1).astype(jnp.float32)
    b2c = b2.reshape(Cout, 1).astype(jnp.float32)
    # 1.0 on valid columns (col % Wp < W), 0.0 on the 2 junk columns per row.
    maskc = (jnp.arange(M) % Wp < W).astype(jnp.float32).reshape(1, M)

    inputs = [xflat, w1t, b1c, w2t, b2c, maskc]
    in_specs = [
        pl.BlockSpec((1, Cin, H * W), lambda n: (n, 0, 0)),
        pl.BlockSpec((9, Cout, Cin), lambda n: (0, 0, 0)),
        pl.BlockSpec((Cout, 1), lambda n: (0, 0)),
        pl.BlockSpec((9, Cout, Cout), lambda n: (0, 0, 0)),
        pl.BlockSpec((Cout, 1), lambda n: (0, 0)),
        pl.BlockSpec((1, M), lambda n: (0, 0)),
    ]
    if has_skip:
        inputs.append(wskip.reshape(Cout, Cin).astype(mxu_dtype))
        in_specs.append(pl.BlockSpec((Cout, Cin), lambda n: (0, 0)))

    kernel = _make_resblock_kernel(H, W, Cin, Cout, Wp, M, MW, RW, PINX, PINH,
                                   has_skip, downsample, mxu_dtype)

    out_flat = pl.pallas_call(
        kernel,
        out_shape=jax.ShapeDtypeStruct((N, Cout, MW), jnp.float32),
        grid=(N,),                                  # one image per step
        in_specs=in_specs,
        out_specs=pl.BlockSpec((1, Cout, MW), lambda n: (n, 0, 0)),
        scratch_shapes=[pltpu.VMEM((Cin, PINX), mxu_dtype),    # padded x
                        pltpu.VMEM((Cout, PINH), mxu_dtype)],  # padded h1
        compiler_params=pltpu.CompilerParams(
            dimension_semantics=("parallel",),      # batch axis -> both TCs
            vmem_limit_bytes=48 * 1024 * 1024),     # headroom under v7x 64 MiB
    )(*inputs)

    # Strip row padding / pool stride with cheap strided slices (no gather).
    core = out_flat[:, :, :M].reshape(N, Cout, H, Wp)
    if downsample:
        return core[:, :, ::2, ::2][:, :, :, :Wo]
    return core[:, :, :, :W]


def _lip_swish(x):
    return x * jax.nn.sigmoid(x) / 1.1


def resblock_reference(x, params, *, downsample):
    """Pure-JAX NCHW reference (mirrors the PyTorch forward)."""
    def conv(x, w, b=None, pad=0):
        y = lax.conv_general_dilated(
            x, w, (1, 1), [(pad, pad), (pad, pad)],
            dimension_numbers=("NCHW", "OIHW", "NCHW"))
        if b is not None:
            y = y + b[None, :, None, None]
        return y

    out = _lip_swish(conv(x, params["w1"], params["b1"], pad=1))
    out = conv(out, params["w2"], params["b2"], pad=1)
    skip = conv(x, params["wskip"]) if params.get("wskip") is not None else x
    out = out + skip
    if downsample:
        N, C, H, W = out.shape
        out = out.reshape(N, C, H // 2, 2, W // 2, 2).mean(axis=(3, 5))
    return _lip_swish(out)


if __name__ == "__main__":
    N, H, W = 2, 16, 16

    # Case 1: in_channel != out_channel, downsample=True (1x1-conv skip + pool).
    Cin, Cout = 4, 8
    k = jax.random.split(jax.random.PRNGKey(0), 6)
    params = {
        "w1": 0.1 * jax.random.normal(k[0], (Cout, Cin, 3, 3), jnp.float32),
        "b1": 0.1 * jax.random.normal(k[1], (Cout,), jnp.float32),
        "w2": 0.1 * jax.random.normal(k[2], (Cout, Cout, 3, 3), jnp.float32),
        "b2": 0.1 * jax.random.normal(k[3], (Cout,), jnp.float32),
        "wskip": 0.1 * jax.random.normal(k[4], (Cout, Cin, 1, 1), jnp.float32),
    }
    x = jax.random.normal(k[5], (N, Cin, H, W), jnp.float32)
    y_ref = resblock_reference(x, params, downsample=True)

    # Exact (f32 MXU operand) path.
    y = jax.block_until_ready(
        resblock_forward(x, params, downsample=True, mxu_dtype=jnp.float32))
    assert y.shape == (N, Cout, H // 2, W // 2)
    assert jnp.allclose(y, y_ref, atol=1e-4, rtol=1e-4)

    # Case 2: in_channel == out_channel, no downsample (identity skip), f32.
    C = 8
    k2 = jax.random.split(jax.random.PRNGKey(1), 5)
    params2 = {
        "w1": 0.1 * jax.random.normal(k2[0], (C, C, 3, 3), jnp.float32),
        "b1": 0.1 * jax.random.normal(k2[1], (C,), jnp.float32),
        "w2": 0.1 * jax.random.normal(k2[2], (C, C, 3, 3), jnp.float32),
        "b2": 0.1 * jax.random.normal(k2[3], (C,), jnp.float32),
        "wskip": None,
    }
    x2 = jax.random.normal(k2[4], (N, C, H, W), jnp.float32)
    y2 = jax.block_until_ready(
        resblock_forward(x2, params2, downsample=False, mxu_dtype=jnp.float32))
    y2_ref = resblock_reference(x2, params2, downsample=False)
    assert y2.shape == (N, C, H, W)
    assert jnp.allclose(y2, y2_ref, atol=1e-4, rtol=1e-4)

    # Case 3: default bf16 MXU operands (v6e/v7x fast path), f32 accumulation.
    # bf16 operand rounding changes numerics -> looser tolerance vs f32 ref.
    y3 = jax.block_until_ready(resblock_forward(x, params, downsample=True))
    assert y3.shape == (N, Cout, H // 2, W // 2)
    assert jnp.allclose(y3, y_ref, atol=1e-1, rtol=1e-1)

    print("KERNEL_OK")
</pallas_src>

<mosaic_0001>
module attributes {stable_mosaic.version = 11 : i64} {
  func.func @kernel(%arg0: i32, %arg1: memref<1x4x256xf32, #tpu.memory_space<vmem>>, %arg2: memref<9x8x4xf32, #tpu.memory_space<vmem>>, %arg3: memref<8x1xf32, #tpu.memory_space<vmem>>, %arg4: memref<9x8x8xf32, #tpu.memory_space<vmem>>, %arg5: memref<8x1xf32, #tpu.memory_space<vmem>>, %arg6: memref<1x288xf32, #tpu.memory_space<vmem>>, %arg7: memref<8x4xf32, #tpu.memory_space<vmem>>, %arg8: memref<1x8x384xf32, #tpu.memory_space<vmem>>, %arg9: memref<4x512xf32, #tpu.memory_space<vmem>>, %arg10: memref<8x512xf32, #tpu.memory_space<vmem>>) attributes {dimension_semantics = [#tpu.dimension_semantics<parallel>], iteration_bounds = array<i64: 2>, scalar_prefetch = 0 : i64, scratch_operands = 2 : i64, tpu.core_type = #tpu.core_type<tc>, window_params = [{transform_indices = @transform_0, window_bounds = array<i64: 1, 4, 256>}, {pipeline_mode = #tpu.pipeline_mode<synchronous>, transform_indices = @transform_1, window_bounds = array<i64: 9, 8, 4>}, {pipeline_mode = #tpu.pipeline_mode<synchronous>, transform_indices = @transform_2, window_bounds = array<i64: 8, 1>}, {pipeline_mode = #tpu.pipeline_mode<synchronous>, transform_indices = @transform_3, window_bounds = array<i64: 9, 8, 8>}, {pipeline_mode = #tpu.pipeline_mode<synchronous>, transform_indices = @transform_4, window_bounds = array<i64: 8, 1>}, {pipeline_mode = #tpu.pipeline_mode<synchronous>, transform_indices = @transform_5, window_bounds = array<i64: 1, 288>}, {pipeline_mode = #tpu.pipeline_mode<synchronous>, transform_indices = @transform_6, window_bounds = array<i64: 8, 4>}, {transform_indices = @transform_7, window_bounds = array<i64: 1, 8, 384>}]} {
    %cst = arith.constant 0.000000e+00 : f32
    %0 = vector.broadcast %cst : f32 to vector<4x512xf32>
    %c0 = arith.constant 0 : index
    %c0_0 = arith.constant 0 : index
    %1 = vector.load %arg9[%c0, %c0_0] : memref<4x512xf32, #tpu.memory_space<vmem>>, vector<4x512xf32>
    tpu.vector_store %arg9[%c0, %c0_0], %0 {strides = array<i32>} : memref<4x512xf32, #tpu.memory_space<vmem>>, vector<4x512xf32>,
    %c0_1 = arith.constant 0 : index
    %c0_2 = arith.constant 0 : index
    %c0_3 = arith.constant 0 : index
    %2 = vector.load %arg1[%c0_1, %c0_2, %c0_3] : memref<1x4x256xf32, #tpu.memory_space<vmem>>, vector<1x4x16xf32>
    %3 = vector.shape_cast %2 : vector<1x4x16xf32> to vector<4x16xf32>
    %c0_4 = arith.constant 0 : index
    %c19 = arith.constant 19 : index
    %4 = vector.load %arg9[%c0_4, %c19] : memref<4x512xf32, #tpu.memory_space<vmem>>, vector<4x16xf32>
    tpu.vector_store %arg9[%c0_4, %c19], %3 {strides = array<i32>} : memref<4x512xf32, #tpu.memory_space<vmem>>, vector<4x16xf32>,
    %c0_5 = arith.constant 0 : index
    %c0_6 = arith.constant 0 : index
    %c16 = arith.constant 16 : index
    %5 = vector.load %arg1[%c0_5, %c0_6, %c16] : memref<1x4x256xf32, #tpu.memory_space<vmem>>, vector<1x4x16xf32>
    %6 = vector.shape_cast %5 : vector<1x4x16xf32> to vector<4x16xf32>
    %c0_7 = arith.constant 0 : index
    %c37 = arith.constant 37 : index
    %7 = vector.load %arg9[%c0_7, %c37] : memref<4x512xf32, #tpu.memory_space<vmem>>, vector<4x16xf32>
    tpu.vector_store %arg9[%c0_7, %c37], %6 {strides = array<i32>} : memref<4x512xf32, #tpu.memory_space<vmem>>, vector<4x16xf32>,
    %c0_8 = arith.constant 0 : index
    %c0_9 = arith.constant 0 : index
    %c32 = arith.constant 32 : index
    %8 = vector.load %arg1[%c0_8, %c0_9, %c32] : memref<1x4x256xf32, #tpu.memory_space<vmem>>, vector<1x4x16xf32>
    %9 = vector.shape_cast %8 : vector<1x4x16xf32> to vector<4x16xf32>
    %c0_10 = arith.constant 0 : index
    %c55 = arith.constant 55 : index
    %10 = vector.load %arg9[%c0_10, %c55] : memref<4x512xf32, #tpu.memory_space<vmem>>, vector<4x16xf32>
    tpu.vector_store %arg9[%c0_10, %c55], %9 {strides = array<i32>} : memref<4x512xf32, #tpu.memory_space<vmem>>, vector<4x16xf32>,
    %c0_11 = arith.constant 0 : index
    %c0_12 = arith.constant 0 : index
    %c48 = arith.constant 48 : index
    %11 = vector.load %arg1[%c0_11, %c0_12, %c48] : memref<1x4x256xf32, #tpu.memory_space<vmem>>, vector<1x4x16xf32>
    %12 = vector.shape_cast %11 : vector<1x4x16xf32> to vector<4x16xf32>
    %c0_13 = arith.constant 0 : index
    %c73 = arith.constant 73 : index
    %13 = vector.load %arg9[%c0_13, %c73] : memref<4x512xf32, #tpu.memory_space<vmem>>, vector<4x16xf32>
    tpu.vector_store %arg9[%c0_13, %c73], %12 {strides = array<i32>} : memref<4x512xf32, #tpu.memory_space<vmem>>, vector<4x16xf32>,
    %c0_14 = arith.constant 0 : index
    %c0_15 = arith.constant 0 : index
    %c64 = arith.constant 64 : index
    %14 = vector.load %arg1[%c0_14, %c0_15, %c64] : memref<1x4x256xf32, #tpu.memory_space<vmem>>, vector<1x4x16xf32>
    %15 = vector.shape_cast %14 : vector<1x4x16xf32> to vector<4x16xf32>
    %c0_16 = arith.constant 0 : index
    %c91 = arith.constant 91 : index
    %16 = vector.load %arg9[%c0_16, %c91] : memref<4x512xf32, #tpu.memory_space<vmem>>, vector<4x16xf32>
    tpu.vector_store %arg9[%c0_16, %c91], %15 {strides = array<i32>} : memref<4x512xf32, #tpu.memory_space<vmem>>, vector<4x16xf32>,
    %c0_17 = arith.constant 0 : index
    %c0_18 = arith.constant 0 : index
    %c80 = arith.constant 80 : index
    %17 = vector.load %arg1[%c0_17, %c0_18, %c80] : memref<1x4x256xf32, #tpu.memory_space<vmem>>, vector<1x4x16xf32>
    %18 = vector.shape_cast %17 : vector<1x4x16xf32> to vector<4x16xf32>
    %c0_19 = arith.constant 0 : index
    %c109 = arith.constant 109 : index
    %19 = vector.load %arg9[%c0_19, %c109] : memref<4x512xf32, #tpu.memory_space<vmem>>, vector<4x16xf32>
    tpu.vector_store %arg9[%c0_19, %c109], %18 {strides = array<i32>} : memref<4x512xf32, #tpu.memory_space<vmem>>, vector<4x16xf32>,
    %c0_20 = arith.constant 0 : index
    %c0_21 = arith.constant 0 : index
    %c96 = arith.constant 96 : index
    %20 = vector.load %arg1[%c0_20, %c0_21, %c96] : memref<1x4x256xf32, #tpu.memory_space<vmem>>, vector<1x4x16xf32>
    %21 = vector.shape_cast %20 : vector<1x4x16xf32> to vector<4x16xf32>
    %c0_22 = arith.constant 0 : index
    %c127 = arith.constant 127 : index
    %22 = vector.load %arg9[%c0_22, %c127] : memref<4x512xf32, #tpu.memory_space<vmem>>, vector<4x16xf32>
    tpu.vector_store %arg9[%c0_22, %c127], %21 {strides = array<i32>} : memref<4x512xf32, #tpu.memory_space<vmem>>, vector<4x16xf32>,
    %c0_23 = arith.constant 0 : index
    %c0_24 = arith.constant 0 : index
    %c112 = arith.constant 112 : index
    %23 = vector.load %arg1[%c0_23, %c0_24, %c112] : memref<1x4x256xf32, #tpu.memory_space<vmem>>, vector<1x4x16xf32>
    %24 = vector.shape_cast %23 : vector<1x4x16xf32> to vector<4x16xf32>
    %c0_25 = arith.constant 0 : index
    %c145 = arith.constant 145 : index
    %25 = vector.load %arg9[%c0_25, %c145] : memref<4x512xf32, #tpu.memory_space<vmem>>, vector<4x16xf32>
    tpu.vector_store %arg9[%c0_25, %c145], %24 {strides = array<i32>} : memref<4x512xf32, #tpu.memory_space<vmem>>, vector<4x16xf32>,
    %c0_26 = arith.constant 0 : index
    %c0_27 = arith.constant 0 : index
    %c128 = arith.constant 128 : index
    %26 = vector.load %arg1[%c0_26, %c0_27, %c128] : memref<1x4x256xf32, #tpu.memory_space<vmem>>, vector<1x4x16xf32>
    %27 = vector.shape_cast %26 : vector<1x4x16xf32> to vector<4x16xf32>
    %c0_28 = arith.constant 0 : index
    %c163 = arith.constant 163 : index
    %28 = vector.load %arg9[%c0_28, %c163] : memref<4x512xf32, #tpu.memory_space<vmem>>, vector<4x16xf32>
    tpu.vector_store %arg9[%c0_28, %c163], %27 {strides = array<i32>} : memref<4x512xf32, #tpu.memory_space<vmem>>, vector<4x16xf32>,
    %c0_29 = arith.constant 0 : index
    %c0_30 = arith.constant 0 : index
    %c144 = arith.constant 144 : index
    %29 = vector.load %arg1[%c0_29, %c0_30, %c144] : memref<1x4x256xf32, #tpu.memory_space<vmem>>, vector<1x4x16xf32>
    %30 = vector.shape_cast %29 : vector<1x4x16xf32> to vector<4x16xf32>
    %c0_31 = arith.constant 0 : index
    %c181 = arith.constant 181 : index
    %31 = vector.load %arg9[%c0_31, %c181] : memref<4x512xf32, #tpu.memory_space<vmem>>, vector<4x16xf32>
    tpu.vector_store %arg9[%c0_31, %c181], %30 {strides = array<i32>} : memref<4x512xf32, #tpu.memory_space<vmem>>, vector<4x16xf32>,
    %c0_32 = arith.constant 0 : index
    %c0_33 = arith.constant 0 : index
    %c160 = arith.constant 160 : index
    %32 = vector.load %arg1[%c0_32, %c0_33, %c160] : memref<1x4x256xf32, #tpu.memory_space<vmem>>, vector<1x4x16xf32>
    %33 = vector.shape_cast %32 : vector<1x4x16xf32> to vector<4x16xf32>
    %c0_34 = arith.constant 0 : index
    %c199 = arith.constant 199 : index
    %34 = vector.load %arg9[%c0_34, %c199] : memref<4x512xf32, #tpu.memory_space<vmem>>, vector<4x16xf32>
    tpu.vector_store %arg9[%c0_34, %c199], %33 {strides = array<i32>} : memref<4x512xf32, #tpu.memory_space<vmem>>, vector<4x16xf32>,
    %c0_35 = arith.constant 0 : index
    %c0_36 = arith.constant 0 : index
    %c176 = arith.constant 176 : index
    %35 = vector.load %arg1[%c0_35, %c0_36, %c176] : memref<1x4x256xf32, #tpu.memory_space<vmem>>, vector<1x4x16xf32>
    %36 = vector.shape_cast %35 : vector<1x4x16xf32> to vector<4x16xf32>
    %c0_37 = arith.constant 0 : index
    %c217 = arith.constant 217 : index
    %37 = vector.load %arg9[%c0_37, %c217] : memref<4x512xf32, #tpu.memory_space<vmem>>, vector<4x16xf32>
    tpu.vector_store %arg9[%c0_37, %c217], %36 {strides = array<i32>} : memref<4x512xf32, #tpu.memory_space<vmem>>, vector<4x16xf32>,
    %c0_38 = arith.constant 0 : index
    %c0_39 = arith.constant 0 : index
    %c192 = arith.constant 192 : index
    %38 = vector.load %arg1[%c0_38, %c0_39, %c192] : memref<1x4x256xf32, #tpu.memory_space<vmem>>, vector<1x4x16xf32>
    %39 = vector.shape_cast %38 : vector<1x4x16xf32> to vector<4x16xf32>
    %c0_40 = arith.constant 0 : index
    %c235 = arith.constant 235 : index
    %40 = vector.load %arg9[%c0_40, %c235] : memref<4x512xf32, #tpu.memory_space<vmem>>, vector<4x16xf32>
    tpu.vector_store %arg9[%c0_40, %c235], %39 {strides = array<i32>} : memref<4x512xf32, #tpu.memory_space<vmem>>, vector<4x16xf32>,
    %c0_41 = arith.constant 0 : index
    %c0_42 = arith.constant 0 : index
    %c208 = arith.constant 208 : index
    %41 = vector.load %arg1[%c0_41, %c0_42, %c208] : memref<1x4x256xf32, #tpu.memory_space<vmem>>, vector<1x4x16xf32>
    %42 = vector.shape_cast %41 : vector<1x4x16xf32> to vector<4x16xf32>
    %c0_43 = arith.constant 0 : index
    %c253 = arith.constant 253 : index
    %43 = vector.load %arg9[%c0_43, %c253] : memref<4x512xf32, #tpu.memory_space<vmem>>, vector<4x16xf32>
    tpu.vector_store %arg9[%c0_43, %c253], %42 {strides = array<i32>} : memref<4x512xf32, #tpu.memory_space<vmem>>, vector<4x16xf32>,
    %c0_44 = arith.constant 0 : index
    %c0_45 = arith.constant 0 : index
    %c224 = arith.constant 224 : index
    %44 = vector.load %arg1[%c0_44, %c0_45, %c224] : memref<1x4x256xf32, #tpu.memory_space<vmem>>, vector<1x4x16xf32>
    %45 = vector.shape_cast %44 : vector<1x4x16xf32> to vector<4x16xf32>
    %c0_46 = arith.constant 0 : index
    %c271 = arith.constant 271 : index
    %46 = vector.load %arg9[%c0_46, %c271] : memref<4x512xf32, #tpu.memory_space<vmem>>, vector<4x16xf32>
    tpu.vector_store %arg9[%c0_46, %c271], %45 {strides = array<i32>} : memref<4x512xf32, #tpu.memory_space<vmem>>, vector<4x16xf32>,
    %c0_47 = arith.constant 0 : index
    %c0_48 = arith.constant 0 : index
    %c240 = arith.constant 240 : index
    %47 = vector.load %arg1[%c0_47, %c0_48, %c240] : memref<1x4x256xf32, #tpu.memory_space<vmem>>, vector<1x4x16xf32>
    %48 = vector.shape_cast %47 : vector<1x4x16xf32> to vector<4x16xf32>
    %c0_49 = arith.constant 0 : index
    %c289 = arith.constant 289 : index
    %49 = vector.load %arg9[%c0_49, %c289] : memref<4x512xf32, #tpu.memory_space<vmem>>, vector<4x16xf32>
    tpu.vector_store %arg9[%c0_49, %c289], %48 {strides = array<i32>} : memref<4x512xf32, #tpu.memory_space<vmem>>, vector<4x16xf32>,
    %c0_50 = arith.constant 0 : index
    %c0_51 = arith.constant 0 : index
    %c0_52 = arith.constant 0 : index
    %50 = vector.load %arg2[%c0_50, %c0_51, %c0_52] : memref<9x8x4xf32, #tpu.memory_space<vmem>>, vector<1x8x4xf32>
    %51 = vector.shape_cast %50 : vector<1x8x4xf32> to vector<8x4xf32>
    %c0_53 = arith.constant 0 : index
    %c0_54 = arith.constant 0 : index
    %52 = vector.load %arg9[%c0_53, %c0_54] : memref<4x512xf32, #tpu.memory_space<vmem>>, vector<4x288xf32>
    %cst_55 = arith.constant dense<0.000000e+00> : vector<8x288xf32>
    %53 = tpu.matmul %51, %52, %cst_55 {dimension_numbers = #tpu.dot_dimension_numbers<[1], [0], [0], [1], [0, 0, 1, 1], [], []>} : vector<8x4xf32>, vector<4x288xf32>, vector<8x288xf32> -> vector<8x288xf32>
    %c1 = arith.constant 1 : index
    %c0_56 = arith.constant 0 : index
    %c0_57 = arith.constant 0 : index
    %54 = vector.load %arg2[%c1, %c0_56, %c0_57] : memref<9x8x4xf32, #tpu.memory_space<vmem>>, vector<1x8x4xf32>
    %55 = vector.shape_cast %54 : vector<1x8x4xf32> to vector<8x4xf32>
    %c0_58 = arith.constant 0 : index
    %c1_59 = arith.constant 1 : index
    %56 = vector.load %arg9[%c0_58, %c1_59] : memref<4x512xf32, #tpu.memory_space<vmem>>, vector<4x288xf32>
    %cst_60 = arith.constant dense<0.000000e+00> : vector<8x288xf32>
    %57 = tpu.matmul %55, %56, %cst_60 {dimension_numbers = #tpu.dot_dimension_numbers<[1], [0], [0], [1], [0, 0, 1, 1], [], []>} : vector<8x4xf32>, vector<4x288xf32>, vector<8x288xf32> -> vector<8x288xf32>
    %58 = arith.addf %53, %57 : vector<8x288xf32>
    %c2 = arith.constant 2 : index
    %c0_61 = arith.constant 0 : index
    %c0_62 = arith.constant 0 : index
    %59 = vector.load %arg2[%c2, %c0_61, %c0_62] : memref<9x8x4xf32, #tpu.memory_space<vmem>>, vector<1x8x4xf32>
    %60 = vector.shape_cast %59 : vector<1x8x4xf32> to vector<8x4xf32>
    %c0_63 = arith.constant 0 : index
    %c2_64 = arith.constant 2 : index
    %61 = vector.load %arg9[%c0_63, %c2_64] : memref<4x512xf32, #tpu.memory_space<vmem>>, vector<4x288xf32>
    %cst_65 = arith.constant dense<0.000000e+00> : vector<8x288xf32>
    %62 = tpu.matmul %60, %61, %cst_65 {dimension_numbers = #tpu.dot_dimension_numbers<[1], [0], [0], [1], [0, 0, 1, 1], [], []>} : vector<8x4xf32>, vector<4x288xf32>, vector<8x288xf32> -> vector<8x288xf32>
    %63 = arith.addf %58, %62 : vector<8x288xf32>
    %c3 = arith.constant 3 : index
    %c0_66 = arith.constant 0 : index
    %c0_67 = arith.constant 0 : index
    %64 = vector.load %arg2[%c3, %c0_66, %c0_67] : memref<9x8x4xf32, #tpu.memory_space<vmem>>, vector<1x8x4xf32>
    %65 = vector.shape_cast %64 : vector<1x8x4xf32> to vector<8x4xf32>
    %c0_68 = arith.constant 0 : index
    %c18 = arith.constant 18 : index
    %66 = vector.load %arg9[%c0_68, %c18] : memref<4x512xf32, #tpu.memory_space<vmem>>, vector<4x288xf32>
    %cst_69 = arith.constant dense<0.000000e+00> : vector<8x288xf32>
    %67 = tpu.matmul %65, %66, %cst_69 {dimension_numbers = #tpu.dot_dimension_numbers<[1], [0], [0], [1], [0, 0, 1, 1], [], []>} : vector<8x4xf32>, vector<4x288xf32>, vector<8x288xf32> -> vector<8x288xf32>
    %68 = arith.addf %63, %67 : vector<8x288xf32>
    %c4 = arith.constant 4 : index
    %c0_70 = arith.constant 0 : index
    %c0_71 = arith.constant 0 : index
    %69 = vector.load %arg2[%c4, %c0_70, %c0_71] : memref<9x8x4xf32, #tpu.memory_space<vmem>>, vector<1x8x4xf32>
    %70 = vector.shape_cast %69 : vector<1x8x4xf32> to vector<8x4xf32>
    %c0_72 = arith.constant 0 : index
    %c19_73 = arith.constant 19 : index
    %71 = vector.load %arg9[%c0_72, %c19_73] : memref<4x512xf32, #tpu.memory_space<vmem>>, vector<4x288xf32>
    %cst_74 = arith.constant dense<0.000000e+00> : vector<8x288xf32>
    %72 = tpu.matmul %70, %71, %cst_74 {dimension_numbers = #tpu.dot_dimension_numbers<[1], [0], [0], [1], [0, 0, 1, 1], [], []>} : vector<8x4xf32>, vector<4x288xf32>, vector<8x288xf32> -> vector<8x288xf32>
    %73 = arith.addf %68, %72 : vector<8x288xf32>
    %c5 = arith.constant 5 : index
    %c0_75 = arith.constant 0 : index
    %c0_76 = arith.constant 0 : index
    %74 = vector.load %arg2[%c5, %c0_75, %c0_76] : memref<9x8x4xf32, #tpu.memory_space<vmem>>, vector<1x8x4xf32>
    %75 = vector.shape_cast %74 : vector<1x8x4xf32> to vector<8x4xf32>
    %c0_77 = arith.constant 0 : index
    %c20 = arith.constant 20 : index
    %76 = vector.load %arg9[%c0_77, %c20] : memref<4x512xf32, #tpu.memory_space<vmem>>, vector<4x288xf32>
    %cst_78 = arith.constant dense<0.000000e+00> : vector<8x288xf32>
    %77 = tpu.matmul %75, %76, %cst_78 {dimension_numbers = #tpu.dot_dimension_numbers<[1], [0], [0], [1], [0, 0, 1, 1], [], []>} : vector<8x4xf32>, vector<4x288xf32>, vector<8x288xf32> -> vector<8x288xf32>
    %78 = arith.addf %73, %77 : vector<8x288xf32>
    %c6 = arith.constant 6 : index
    %c0_79 = arith.constant 0 : index
    %c0_80 = arith.constant 0 : index
    %79 = vector.load %arg2[%c6, %c0_79, %c0_80] : memref<9x8x4xf32, #tpu.memory_space<vmem>>, vector<1x8x4xf32>
    %80 = vector.shape_cast %79 : vector<1x8x4xf32> to vector<8x4xf32>
    %c0_81 = arith.constant 0 : index
    %c36 = arith.constant 36 : index
    %81 = vector.load %arg9[%c0_81, %c36] : memref<4x512xf32, #tpu.memory_space<vmem>>, vector<4x288xf32>
    %cst_82 = arith.constant dense<0.000000e+00> : vector<8x288xf32>
    %82 = tpu.matmul %80, %81, %cst_82 {dimension_numbers = #tpu.dot_dimension_numbers<[1], [0], [0], [1], [0, 0, 1, 1], [], []>} : vector<8x4xf32>, vector<4x288xf32>, vector<8x288xf32> -> vector<8x288xf32>
    %83 = arith.addf %78, %82 : vector<8x288xf32>
    %c7 = arith.constant 7 : index
    %c0_83 = arith.constant 0 : index
    %c0_84 = arith.constant 0 : index
    %84 = vector.load %arg2[%c7, %c0_83, %c0_84] : memref<9x8x4xf32, #tpu.memory_space<vmem>>, vector<1x8x4xf32>
    %85 = vector.shape_cast %84 : vector<1x8x4xf32> to vector<8x4xf32>
    %c0_85 = arith.constant 0 : index
    %c37_86 = arith.constant 37 : index
    %86 = vector.load %arg9[%c0_85, %c37_86] : memref<4x512xf32, #tpu.memory_space<vmem>>, vector<4x288xf32>
    %cst_87 = arith.constant dense<0.000000e+00> : vector<8x288xf32>
    %87 = tpu.matmul %85, %86, %cst_87 {dimension_numbers = #tpu.dot_dimension_numbers<[1], [0], [0], [1], [0, 0, 1, 1], [], []>} : vector<8x4xf32>, vector<4x288xf32>, vector<8x288xf32> -> vector<8x288xf32>
    %88 = arith.addf %83, %87 : vector<8x288xf32>
    %c8 = arith.constant 8 : index
    %c0_88 = arith.constant 0 : index
    %c0_89 = arith.constant 0 : index
    %89 = vector.load %arg2[%c8, %c0_88, %c0_89] : memref<9x8x4xf32, #tpu.memory_space<vmem>>, vector<1x8x4xf32>
    %90 = vector.shape_cast %89 : vector<1x8x4xf32> to vector<8x4xf32>
    %c0_90 = arith.constant 0 : index
    %c38 = arith.constant 38 : index
    %91 = vector.load %arg9[%c0_90, %c38] : memref<4x512xf32, #tpu.memory_space<vmem>>, vector<4x288xf32>
    %cst_91 = arith.constant dense<0.000000e+00> : vector<8x288xf32>
    %92 = tpu.matmul %90, %91, %cst_91 {dimension_numbers = #tpu.dot_dimension_numbers<[1], [0], [0], [1], [0, 0, 1, 1], [], []>} : vector<8x4xf32>, vector<4x288xf32>, vector<8x288xf32> -> vector<8x288xf32>
    %93 = arith.addf %88, %92 : vector<8x288xf32>
    %c0_92 = arith.constant 0 : index
    %c0_93 = arith.constant 0 : index
    %94 = vector.load %arg3[%c0_92, %c0_93] : memref<8x1xf32, #tpu.memory_space<vmem>>, vector<8x1xf32>
    %95 = vector.broadcast %94 : vector<8x1xf32> to vector<8x288xf32>
    %96 = arith.addf %93, %95 : vector<8x288xf32>
    %97 = arith.negf %96 : vector<8x288xf32>
    %98 = math.exp %97 : vector<8x288xf32>
    %cst_94 = arith.constant 1.000000e+00 : f32
    %99 = vector.broadcast %cst_94 : f32 to vector<8x288xf32>
    %100 = arith.addf %99, %98 : vector<8x288xf32>
    %101 = arith.divf %99, %100 : vector<8x288xf32>
    %102 = arith.mulf %96, %101 : vector<8x288xf32>
    %c0_95 = arith.constant 0 : index
    %c0_96 = arith.constant 0 : index
    %103 = vector.load %arg6[%c0_95, %c0_96] : memref<1x288xf32, #tpu.memory_space<vmem>>, vector<1x288xf32>
    %104 = vector.broadcast %103 : vector<1x288xf32> to vector<8x288xf32>
    %105 = arith.mulf %102, %104 : vector<8x288xf32>
    %cst_97 = arith.constant 0.000000e+00 : f32
    %106 = vector.broadcast %cst_97 : f32 to vector<8x19xf32>
    %c0_98 = arith.constant 0 : index
    %c0_99 = arith.constant 0 : index
    %107 = vector.load %arg10[%c0_98, %c0_99] : memref<8x512xf32, #tpu.memory_space<vmem>>, vector<8x19xf32>
    tpu.vector_store %arg10[%c0_98, %c0_99], %106 {strides = array<i32>} : memref<8x512xf32, #tpu.memory_space<vmem>>, vector<8x19xf32>,
    %cst_100 = arith.constant 0.000000e+00 : f32
    %108 = vector.broadcast %cst_100 : f32 to vector<8x205xf32>
    %c0_101 = arith.constant 0 : index
    %c307 = arith.constant 307 : index
    %109 = vector.load %arg10[%c0_101, %c307] : memref<8x512xf32, #tpu.memory_space<vmem>>, vector<8x205xf32>
    tpu.vector_store %arg10[%c0_101, %c307], %108 {strides = array<i32>} : memref<8x512xf32, #tpu.memory_space<vmem>>, vector<8x205xf32>,
    %c0_102 = arith.constant 0 : index
    %c19_103 = arith.constant 19 : index
    %110 = vector.load %arg10[%c0_102, %c19_103] : memref<8x512xf32, #tpu.memory_space<vmem>>, vector<8x288xf32>
    tpu.vector_store %arg10[%c0_102, %c19_103], %105 {strides = array<i32>} : memref<8x512xf32, #tpu.memory_space<vmem>>, vector<8x288xf32>,
    %c0_104 = arith.constant 0 : index
    %c0_105 = arith.constant 0 : index
    %c0_106 = arith.constant 0 : index
    %111 = vector.load %arg4[%c0_104, %c0_105, %c0_106] : memref<9x8x8xf32, #tpu.memory_space<vmem>>, vector<1x8x8xf32>
    %112 = vector.shape_cast %111 : vector<1x8x8xf32> to vector<8x8xf32>
    %c0_107 = arith.constant 0 : index
    %c0_108 = arith.constant 0 : index
    %113 = vector.load %arg10[%c0_107, %c0_108] : memref<8x512xf32, #tpu.memory_space<vmem>>, vector<8x403xf32>
    %cst_109 = arith.constant dense<0.000000e+00> : vector<8x403xf32>
    %114 = tpu.matmul %112, %113, %cst_109 {dimension_numbers = #tpu.dot_dimension_numbers<[1], [0], [0], [1], [0, 0, 1, 1], [], []>} : vector<8x8xf32>, vector<8x403xf32>, vector<8x403xf32> -> vector<8x403xf32>
    %c1_110 = arith.constant 1 : index
    %c0_111 = arith.constant 0 : index
    %c0_112 = arith.constant 0 : index
    %115 = vector.load %arg4[%c1_110, %c0_111, %c0_112] : memref<9x8x8xf32, #tpu.memory_space<vmem>>, vector<1x8x8xf32>
    %116 = vector.shape_cast %115 : vector<1x8x8xf32> to vector<8x8xf32>
    %c0_113 = arith.constant 0 : index
    %c1_114 = arith.constant 1 : index
    %117 = vector.load %arg10[%c0_113, %c1_114] : memref<8x512xf32, #tpu.memory_space<vmem>>, vector<8x403xf32>
    %cst_115 = arith.constant dense<0.000000e+00> : vector<8x403xf32>
    %118 = tpu.matmul %116, %117, %cst_115 {dimension_numbers = #tpu.dot_dimension_numbers<[1], [0], [0], [1], [0, 0, 1, 1], [], []>} : vector<8x8xf32>, vector<8x403xf32>, vector<8x403xf32> -> vector<8x403xf32>
    %119 = arith.addf %114, %118 : vector<8x403xf32>
    %c2_116 = arith.constant 2 : index
    %c0_117 = arith.constant 0 : index
    %c0_118 = arith.constant 0 : index
    %120 = vector.load %arg4[%c2_116, %c0_117, %c0_118] : memref<9x8x8xf32, #tpu.memory_space<vmem>>, vector<1x8x8xf32>
    %121 = vector.shape_cast %120 : vector<1x8x8xf32> to vector<8x8xf32>
    %c0_119 = arith.constant 0 : index
    %c2_120 = arith.constant 2 : index
    %122 = vector.load %arg10[%c0_119, %c2_120] : memref<8x512xf32, #tpu.memory_space<vmem>>, vector<8x403xf32>
    %cst_121 = arith.constant dense<0.000000e+00> : vector<8x403xf32>
    %123 = tpu.matmul %121, %122, %cst_121 {dimension_numbers = #tpu.dot_dimension_numbers<[1], [0], [0], [1], [0, 0, 1, 1], [], []>} : vector<8x8xf32>, vector<8x403xf32>, vector<8x403xf32> -> vector<8x403xf32>
    %124 = arith.addf %119, %123 : vector<8x403xf32>
    %c3_122 = arith.constant 3 : index
    %c0_123 = arith.constant 0 : index
    %c0_124 = arith.constant 0 : index
    %125 = vector.load %arg4[%c3_122, %c0_123, %c0_124] : memref<9x8x8xf32, #tpu.memory_space<vmem>>, vector<1x8x8xf32>
    %126 = vector.shape_cast %125 : vector<1x8x8xf32> to vector<8x8xf32>
    %c0_125 = arith.constant 0 : index
    %c18_126 = arith.constant 18 : index
    %127 = vector.load %arg10[%c0_125, %c18_126] : memref<8x512xf32, #tpu.memory_space<vmem>>, vector<8x403xf32>
    %cst_127 = arith.constant dense<0.000000e+00> : vector<8x403xf32>
    %128 = tpu.matmul %126, %127, %cst_127 {dimension_numbers = #tpu.dot_dimension_numbers<[1], [0], [0], [1], [0, 0, 1, 1], [], []>} : vector<8x8xf32>, vector<8x403xf32>, vector<8x403xf32> -> vector<8x403xf32>
    %129 = arith.addf %124, %128 : vector<8x403xf32>
    %c4_128 = arith.constant 4 : index
    %c0_129 = arith.constant 0 : index
    %c0_130 = arith.constant 0 : index
    %130 = vector.load %arg4[%c4_128, %c0_129, %c0_130] : memref<9x8x8xf32, #tpu.memory_space<vmem>>, vector<1x8x8xf32>
    %131 = vector.shape_cast %130 : vector<1x8x8xf32> to vector<8x8xf32>
    %c0_131 = arith.constant 0 : index
    %c19_132 = arith.constant 19 : index
    %132 = vector.load %arg10[%c0_131, %c19_132] : memref<8x512xf32, #tpu.memory_space<vmem>>, vector<8x403xf32>
    %cst_133 = arith.constant dense<0.000000e+00> : vector<8x403xf32>
    %133 = tpu.matmul %131, %132, %cst_133 {dimension_numbers = #tpu.dot_dimension_numbers<[1], [0], [0], [1], [0, 0, 1, 1], [], []>} : vector<8x8xf32>, vector<8x403xf32>, vector<8x403xf32> -> vector<8x403xf32>
    %134 = arith.addf %129, %133 : vector<8x403xf32>
    %c5_134 = arith.constant 5 : index
    %c0_135 = arith.constant 0 : index
    %c0_136 = arith.constant 0 : index
    %135 = vector.load %arg4[%c5_134, %c0_135, %c0_136] : memref<9x8x8xf32, #tpu.memory_space<vmem>>, vector<1x8x8xf32>
    %136 = vector.shape_cast %135 : vector<1x8x8xf32> to vector<8x8xf32>
    %c0_137 = arith.constant 0 : index
    %c20_138 = arith.constant 20 : index
    %137 = vector.load %arg10[%c0_137, %c20_138] : memref<8x512xf32, #tpu.memory_space<vmem>>, vector<8x403xf32>
    %cst_139 = arith.constant dense<0.000000e+00> : vector<8x403xf32>
    %138 = tpu.matmul %136, %137, %cst_139 {dimension_numbers = #tpu.dot_dimension_numbers<[1], [0], [0], [1], [0, 0, 1, 1], [], []>} : vector<8x8xf32>, vector<8x403xf32>, vector<8x403xf32> -> vector<8x403xf32>
    %139 = arith.addf %134, %138 : vector<8x403xf32>
    %c6_140 = arith.constant 6 : index
    %c0_141 = arith.constant 0 : index
    %c0_142 = arith.constant 0 : index
    %140 = vector.load %arg4[%c6_140, %c0_141, %c0_142] : memref<9x8x8xf32, #tpu.memory_space<vmem>>, vector<1x8x8xf32>
    %141 = vector.shape_cast %140 : vector<1x8x8xf32> to vector<8x8xf32>
    %c0_143 = arith.constant 0 : index
    %c36_144 = arith.constant 36 : index
    %142 = vector.load %arg10[%c0_143, %c36_144] : memref<8x512xf32, #tpu.memory_space<vmem>>, vector<8x403xf32>
    %cst_145 = arith.constant dense<0.000000e+00> : vector<8x403xf32>
    %143 = tpu.matmul %141, %142, %cst_145 {dimension_numbers = #tpu.dot_dimension_numbers<[1], [0], [0], [1], [0, 0, 1, 1], [], []>} : vector<8x8xf32>, vector<8x403xf32>, vector<8x403xf32> -> vector<8x403xf32>
    %144 = arith.addf %139, %143 : vector<8x403xf32>
    %c7_146 = arith.constant 7 : index
    %c0_147 = arith.constant 0 : index
    %c0_148 = arith.constant 0 : index
    %145 = vector.load %arg4[%c7_146, %c0_147, %c0_148] : memref<9x8x8xf32, #tpu.memory_space<vmem>>, vector<1x8x8xf32>
    %146 = vector.shape_cast %145 : vector<1x8x8xf32> to vector<8x8xf32>
    %c0_149 = arith.constant 0 : index
    %c37_150 = arith.constant 37 : index
    %147 = vector.load %arg10[%c0_149, %c37_150] : memref<8x512xf32, #tpu.memory_space<vmem>>, vector<8x403xf32>
    %cst_151 = arith.constant dense<0.000000e+00> : vector<8x403xf32>
    %148 = tpu.matmul %146, %147, %cst_151 {dimension_numbers = #tpu.dot_dimension_numbers<[1], [0], [0], [1], [0, 0, 1, 1], [], []>} : vector<8x8xf32>, vector<8x403xf32>, vector<8x403xf32> -> vector<8x403xf32>
    %149 = arith.addf %144, %148 : vector<8x403xf32>
    %c8_152 = arith.constant 8 : index
    %c0_153 = arith.constant 0 : index
    %c0_154 = arith.constant 0 : index
    %150 = vector.load %arg4[%c8_152, %c0_153, %c0_154] : memref<9x8x8xf32, #tpu.memory_space<vmem>>, vector<1x8x8xf32>
    %151 = vector.shape_cast %150 : vector<1x8x8xf32> to vector<8x8xf32>
    %c0_155 = arith.constant 0 : index
    %c38_156 = arith.constant 38 : index
    %152 = vector.load %arg10[%c0_155, %c38_156] : memref<8x512xf32, #tpu.memory_space<vmem>>, vector<8x403xf32>
    %cst_157 = arith.constant dense<0.000000e+00> : vector<8x403xf32>
    %153 = tpu.matmul %151, %152, %cst_157 {dimension_numbers = #tpu.dot_dimension_numbers<[1], [0], [0], [1], [0, 0, 1, 1], [], []>} : vector<8x8xf32>, vector<8x403xf32>, vector<8x403xf32> -> vector<8x403xf32>
    %154 = arith.addf %149, %153 : vector<8x403xf32>
    %c0_158 = arith.constant 0 : index
    %c0_159 = arith.constant 0 : index
    %155 = vector.load %arg5[%c0_158, %c0_159] : memref<8x1xf32, #tpu.memory_space<vmem>>, vector<8x1xf32>
    %156 = vector.broadcast %155 : vector<8x1xf32> to vector<8x403xf32>
    %157 = arith.addf %154, %156 : vector<8x403xf32>
    %c0_160 = arith.constant 0 : index
    %c19_161 = arith.constant 19 : index
    %158 = vector.load %arg9[%c0_160, %c19_161] : memref<4x512xf32, #tpu.memory_space<vmem>>, vector<4x403xf32>
    %c0_162 = arith.constant 0 : index
    %c0_163 = arith.constant 0 : index
    %159 = vector.load %arg7[%c0_162, %c0_163] : memref<8x4xf32, #tpu.memory_space<vmem>>, vector<8x4xf32>
    %cst_164 = arith.constant dense<0.000000e+00> : vector<8x403xf32>
    %160 = tpu.matmul %159, %158, %cst_164 {dimension_numbers = #tpu.dot_dimension_numbers<[1], [0], [0], [1], [0, 0, 1, 1], [], []>} : vector<8x4xf32>, vector<4x403xf32>, vector<8x403xf32> -> vector<8x403xf32>
    %161 = arith.addf %157, %160 : vector<8x403xf32>
    %162 = vector.extract_strided_slice %161 {offsets = [0, 0], sizes = [8, 384], strides = [1, 1]} : vector<8x403xf32> to vector<8x384xf32>
    %163 = vector.extract_strided_slice %161 {offsets = [0, 1], sizes = [8, 384], strides = [1, 1]} : vector<8x403xf32> to vector<8x384xf32>
    %164 = arith.addf %162, %163 : vector<8x384xf32>
    %165 = vector.extract_strided_slice %161 {offsets = [0, 18], sizes = [8, 384], strides = [1, 1]} : vector<8x403xf32> to vector<8x384xf32>
    %166 = arith.addf %164, %165 : vector<8x384xf32>
    %167 = vector.extract_strided_slice %161 {offsets = [0, 19], sizes = [8, 384], strides = [1, 1]} : vector<8x403xf32> to vector<8x384xf32>
    %168 = arith.addf %166, %167 : vector<8x384xf32>
    %cst_165 = arith.constant 2.500000e-01 : f32
    %169 = vector.broadcast %cst_165 : f32 to vector<8x384xf32>
    %170 = arith.mulf %169, %168 : vector<8x384xf32>
    %171 = arith.negf %170 : vector<8x384xf32>
    %172 = math.exp %171 : vector<8x384xf32>
    %cst_166 = arith.constant 1.000000e+00 : f32
    %173 = vector.broadcast %cst_166 : f32 to vector<8x384xf32>
    %174 = arith.addf %173, %172 : vector<8x384xf32>
    %175 = arith.divf %173, %174 : vector<8x384xf32>
    %176 = arith.mulf %170, %175 : vector<8x384xf32>
    %cst_167 = arith.constant 0.909090936 : f32
    %177 = vector.broadcast %cst_167 : f32 to vector<8x384xf32>
    %178 = arith.mulf %176, %177 : vector<8x384xf32>
    %c0_168 = arith.constant 0 : index
    %c0_169 = arith.constant 0 : index
    %c0_170 = arith.constant 0 : index
    %179 = vector.load %arg8[%c0_168, %c0_169, %c0_170] : memref<1x8x384xf32, #tpu.memory_space<vmem>>, vector<1x8x384xf32>
    %180 = vector.shape_cast %179 : vector<1x8x384xf32> to vector<8x384xf32>
    %181 = vector.shape_cast %178 : vector<8x384xf32> to vector<1x8x384xf32>
    tpu.vector_store %arg8[%c0_168, %c0_169, %c0_170], %181 {strides = array<i32>} : memref<1x8x384xf32, #tpu.memory_space<vmem>>, vector<1x8x384xf32>,
    return
  }
  func.func @transform_0(%arg0: i32) -> (i32, i32, i32) {
    %c0_i32 = arith.constant 0 : i32
    %c0_i32_0 = arith.constant 0 : i32
    %c0_i32_1 = arith.constant 0 : i32
    return %arg0, %c0_i32, %c0_i32_0 : i32, i32, i32
  }
  func.func @transform_1(%arg0: i32) -> (i32, i32, i32) {
    %c0_i32 = arith.constant 0 : i32
    %c0_i32_0 = arith.constant 0 : i32
    %c0_i32_1 = arith.constant 0 : i32
    %c0_i32_2 = arith.constant 0 : i32
    return %c0_i32, %c0_i32_0, %c0_i32_1 : i32, i32, i32
  }
  func.func @transform_2(%arg0: i32) -> (i32, i32) {
    %c0_i32 = arith.constant 0 : i32
    %c0_i32_0 = arith.constant 0 : i32
    %c0_i32_1 = arith.constant 0 : i32
    return %c0_i32, %c0_i32_0 : i32, i32
  }
  func.func @transform_3(%arg0: i32) -> (i32, i32, i32) {
    %c0_i32 = arith.constant 0 : i32
    %c0_i32_0 = arith.constant 0 : i32
    %c0_i32_1 = arith.constant 0 : i32
    %c0_i32_2 = arith.constant 0 : i32
    return %c0_i32, %c0_i32_0, %c0_i32_1 : i32, i32, i32
  }
  func.func @transform_4(%arg0: i32) -> (i32, i32) {
    %c0_i32 = arith.constant 0 : i32
    %c0_i32_0 = arith.constant 0 : i32
    %c0_i32_1 = arith.constant 0 : i32
    return %c0_i32, %c0_i32_0 : i32, i32
  }
  func.func @transform_5(%arg0: i32) -> (i32, i32) {
    %c0_i32 = arith.constant 0 : i32
    %c0_i32_0 = arith.constant 0 : i32
    %c0_i32_1 = arith.constant 0 : i32
    return %c0_i32, %c0_i32_0 : i32, i32
  }
  func.func @transform_6(%arg0: i32) -> (i32, i32) {
    %c0_i32 = arith.constant 0 : i32
    %c0_i32_0 = arith.constant 0 : i32
    %c0_i32_1 = arith.constant 0 : i32
    return %c0_i32, %c0_i32_0 : i32, i32
  }
  func.func @transform_7(%arg0: i32) -> (i32, i32, i32) {
    %c0_i32 = arith.constant 0 : i32
    %c0_i32_0 = arith.constant 0 : i32
    %c0_i32_1 = arith.constant 0 : i32
    return %arg0, %c0_i32, %c0_i32_0 : i32, i32, i32
  }
}

</mosaic_0001>

<llo_original>
// kernel: tpu_custom_call.1
$region0: #{tpu_custom_call.1}
  #allocation0 [shape = 'u32[]', space=smem, size = 0x4, offset = 0x4, fixed_abs, tag = 'smem constant byte address 0x4 - core index']
  #allocation1 [shape = 'u32[144,128]{1,0:T(1,128)}', space=vmem, size = 0x12000, scoped, tag = 'internal scratch']
  #allocation2 [shape = 'f32[4,512]{1,0:T(4,128)}', space=vmem, size = 0x2000, scoped, tag = 'scratch operand']
  #allocation3 [shape = 'f32[8,512]{1,0:T(8,128)}', space=vmem, size = 0x4000, scoped, tag = 'scratch operand']
  %s0 = inlined_call_operand.vmem [shape: f32[2,4,256], index: 0, kind: input, shape index: {}]
  %s1 = inlined_call_operand.vmem [shape: f32[9,8,4], index: 1, kind: input, shape index: {}]
  %s2 = inlined_call_operand.vmem [shape: f32[8,1], index: 2, kind: input, shape index: {}]
  %s3 = inlined_call_operand.vmem [shape: f32[9,8,8], index: 3, kind: input, shape index: {}]
  %s4 = inlined_call_operand.vmem [shape: f32[8,1], index: 4, kind: input, shape index: {}]
  %s5 = inlined_call_operand.vmem [shape: f32[1,288], index: 5, kind: input, shape index: {}]
  %s6 = inlined_call_operand.vmem [shape: f32[8,4], index: 6, kind: input, shape index: {}]
  %s7 = inlined_call_operand.hbm [shape: f32[2,8,384], index: 7, kind: output, shape index: {}]
  %s8 = sld [smem:[#allocation0]]
  $region61: #{tpu_custom_call.1} parent=0
    _
  %s10 = ssub.s32 1, %s8
  %s11 = scalar_select 0, %s10, %s8
  $region1: #{tpu_custom_call.1} parent=0
    #allocation4 [shape = 'u8[24576]{0}', space=vmem, size = 0x6000, scoped, tag = 'output window, operand 0']
    #allocation5 [shape = 's32[2]{0}', space=sflag, size = 0x8, scoped, tag = 'scoped memory for tpu_custom_call.1']
    %12 = vsyncpa [#allocation5], 0
    %s13 = scalar_lea.sflag [#allocation5], 1
    %14 = vsyncpa %s13, 0
    loop: start=0, step=1, limit=4
    $region2: #{tpu_custom_call.1} parent=1 // loop_pre_header
      _
    $region3: #{tpu_custom_call.1} parent=1 // loop_header
      %s16 = sphi 0, %s20
      %p17 = scmp.ge.s32.totalorder %s16, 4
      %s26 = sphi 0, %s28
      %s29 = sphi 0, %s26
      %s30 = sphi 0, %s29
      %s46 = sphi 0, %s30
      %s50 = sphi 0, %s50
      %s52 = sphi 0, %s50
      %s53 = sphi 0, %s52
      %s67 = sphi 0, %s53
      %s71 = sphi 0, %s71
      %s73 = sphi 0, %s71
      %s74 = sphi 0, %s73
      %s88 = sphi 0, %s74
      %s92 = sphi 0, %s92
      %s94 = sphi 0, %s92
      %s95 = sphi 0, %s94
      %s109 = sphi 0, %s95
      %s113 = sphi 0, %s113
      %s115 = sphi 0, %s113
      %s116 = sphi 0, %s115
      %s130 = sphi 0, %s116
      %s134 = sphi 0, %s134
      %s136 = sphi 0, %s134
      %s137 = sphi 0, %s136
      %s151 = sphi 0, %s137
      %s155 = sphi 0, %s155
      %s157 = sphi 0, %s155
      %s158 = sphi 0, %s157
      %s172 = sphi 0, %s158
      %s178 = sphi 0, %s180
      %s181 = sphi 0, %s178
      %s182 = sphi 0, %s181
      %s198 = sphi 0, %s182
    $region4: #{tpu_custom_call.1} parent=1 // loop_header_branch
      %19 = sbr.rel (%p17) target = $region8
    $region5: #{tpu_custom_call.1} parent=1 // loop_body
      %s21 = ssub.s32 %s16, 1
      %s22 = ssub.s32 %s16, 2
      %s23 = sadd.s32 %s16, 1
      %s24 = ssub.s32 %s16, %s23
      %p25 = scmp.eq.s32.totalorder %s24, 0
      %s27 = sadd.s32 %s26, 1
      %s28 = scalar_select %p25, %s26, %s27
      %p31 = pneg %p25
      %p32 = scmp.eq.s32.totalorder %s16, 1
      %p33 = por %p31, %p32
      %p34 = scmp.ne.s32.totalorder %s26, %s29
      %p35 = scmp.eq.s32.totalorder %s16, 0
      %p36 = por %p34, %p35
      %p37 = scmp.ne.s32.totalorder %s26, %s29
      %p38 = scmp.eq.s32.totalorder %s21, 1
      %p39 = por %p37, %p38
      %p40 = scmp.ne.s32.totalorder %s29, %s30
      %p41 = scmp.eq.s32.totalorder %s21, 0
      %p42 = por %p40, %p41
      %p43 = scmp.ne.s32.totalorder %s29, %s30
      %p44 = scmp.eq.s32.totalorder %s22, 1
      %p45 = por %p43, %p44
      %p47 = scmp.ne.s32.totalorder %s30, %s46
      %p48 = scmp.eq.s32.totalorder %s22, 0
      %p49 = por %p47, %p48
      %s51 = sadd.s32 %s50, 1
      %p54 = scmp.eq.s32.totalorder %s16, 1
      %p55 = scmp.ne.s32.totalorder %s50, %s52
      %p56 = scmp.eq.s32.totalorder %s16, 0
      %p57 = por %p55, %p56
      %p58 = scmp.ne.s32.totalorder %s50, %s52
      %p59 = scmp.eq.s32.totalorder %s21, 1
      %p60 = por %p58, %p59
      %p61 = scmp.ne.s32.totalorder %s52, %s53
      %p62 = scmp.eq.s32.totalorder %s21, 0
      %p63 = por %p61, %p62
      %p64 = scmp.ne.s32.totalorder %s52, %s53
      %p65 = scmp.eq.s32.totalorder %s22, 1
      %p66 = por %p64, %p65
      %p68 = scmp.ne.s32.totalorder %s53, %s67
      %p69 = scmp.eq.s32.totalorder %s22, 0
      %p70 = por %p68, %p69
      %s72 = sadd.s32 %s71, 1
      %p75 = scmp.eq.s32.totalorder %s16, 1
      %p76 = scmp.ne.s32.totalorder %s71, %s73
      %p77 = scmp.eq.s32.totalorder %s16, 0
      %p78 = por %p76, %p77
      %p79 = scmp.ne.s32.totalorder %s71, %s73
      %p80 = scmp.eq.s32.totalorder %s21, 1
      %p81 = por %p79, %p80
      %p82 = scmp.ne.s32.totalorder %s73, %s74
      %p83 = scmp.eq.s32.totalorder %s21, 0
      %p84 = por %p82, %p83
      %p85 = scmp.ne.s32.totalorder %s73, %s74
      %p86 = scmp.eq.s32.totalorder %s22, 1
      %p87 = por %p85, %p86
      %p89 = scmp.ne.s32.totalorder %s74, %s88
      %p90 = scmp.eq.s32.totalorder %s22, 0
      %p91 = por %p89, %p90
      %s93 = sadd.s32 %s92, 1
      %p96 = scmp.eq.s32.totalorder %s16, 1
      %p97 = scmp.ne.s32.totalorder %s92, %s94
      %p98 = scmp.eq.s32.totalorder %s16, 0
      %p99 = por %p97, %p98
      %p100 = scmp.ne.s32.totalorder %s92, %s94
      %p101 = scmp.eq.s32.totalorder %s21, 1
      %p102 = por %p100, %p101
      %p103 = scmp.ne.s32.totalorder %s94, %s95
      %p104 = scmp.eq.s32.totalorder %s21, 0
      %p105 = por %p103, %p104
      %p106 = scmp.ne.s32.totalorder %s94, %s95
      %p107 = scmp.eq.s32.totalorder %s22, 1
      %p108 = por %p106, %p107
      %p110 = scmp.ne.s32.totalorder %s95, %s109
      %p111 = scmp.eq.s32.totalorder %s22, 0
      %p112 = por %p110, %p111
      %s114 = sadd.s32 %s113, 1
      %p117 = scmp.eq.s32.totalorder %s16, 1
      %p118 = scmp.ne.s32.totalorder %s113, %s115
      %p119 = scmp.eq.s32.totalorder %s16, 0
      %p120 = por %p118, %p119
      %p121 = scmp.ne.s32.totalorder %s113, %s115
      %p122 = scmp.eq.s32.totalorder %s21, 1
      %p123 = por %p121, %p122
      %p124 = scmp.ne.s32.totalorder %s115, %s116
      %p125 = scmp.eq.s32.totalorder %s21, 0
      %p126 = por %p124, %p125
      %p127 = scmp.ne.s32.totalorder %s115, %s116
      %p128 = scmp.eq.s32.totalorder %s22, 1
      %p129 = por %p127, %p128
      %p131 = scmp.ne.s32.totalorder %s116, %s130
      %p132 = scmp.eq.s32.totalorder %s22, 0
      %p133 = por %p131, %p132
      %s135 = sadd.s32 %s134, 1
      %p138 = scmp.eq.s32.totalorder %s16, 1
      %p139 = scmp.ne.s32.totalorder %s134, %s136
      %p140 = scmp.eq.s32.totalorder %s16, 0
      %p141 = por %p139, %p140
      %p142 = scmp.ne.s32.totalorder %s134, %s136
      %p143 = scmp.eq.s32.totalorder %s21, 1
      %p144 = por %p142, %p143
      %p145 = scmp.ne.s32.totalorder %s136, %s137
      %p146 = scmp.eq.s32.totalorder %s21, 0
      %p147 = por %p145, %p146
      %p148 = scmp.ne.s32.totalorder %s136, %s137
      %p149 = scmp.eq.s32.totalorder %s22, 1
      %p150 = por %p148, %p149
      %p152 = scmp.ne.s32.totalorder %s137, %s151
      %p153 = scmp.eq.s32.totalorder %s22, 0
      %p154 = por %p152, %p153
      %s156 = sadd.s32 %s155, 1
      %p159 = scmp.eq.s32.totalorder %s16, 1
      %p160 = scmp.ne.s32.totalorder %s155, %s157
      %p161 = scmp.eq.s32.totalorder %s16, 0
      %p162 = por %p160, %p161
      %p163 = scmp.ne.s32.totalorder %s155, %s157
      %p164 = scmp.eq.s32.totalorder %s21, 1
      %p165 = por %p163, %p164
      %p166 = scmp.ne.s32.totalorder %s157, %s158
      %p167 = scmp.eq.s32.totalorder %s21, 0
      %p168 = por %p166, %p167
      %p169 = scmp.ne.s32.totalorder %s157, %s158
      %p170 = scmp.eq.s32.totalorder %s22, 1
      %p171 = por %p169, %p170
      %p173 = scmp.ne.s32.totalorder %s158, %s172
      %p174 = scmp.eq.s32.totalorder %s22, 0
      %p175 = por %p173, %p174
      %s176 = ssub.s32 %s16, %s23
      %p177 = scmp.eq.s32.totalorder %s176, 0
      %s179 = sadd.s32 %s178, 1
      %s180 = scalar_select %p177, %s178, %s179
      %p183 = pneg %p177
      %p184 = scmp.eq.s32.totalorder %s16, 1
      %p185 = por %p183, %p184
      %p186 = scmp.ne.s32.totalorder %s178, %s181
      %p187 = scmp.eq.s32.totalorder %s16, 0
      %p188 = por %p186, %p187
      %p189 = scmp.ne.s32.totalorder %s178, %s181
      %p190 = scmp.eq.s32.totalorder %s21, 1
      %p191 = por %p189, %p190
      %p192 = scmp.ne.s32.totalorder %s181, %s182
      %p193 = scmp.eq.s32.totalorder %s21, 0
      %p194 = por %p192, %p193
      %p195 = scmp.ne.s32.totalorder %s181, %s182
      %p196 = scmp.eq.s32.totalorder %s22, 1
      %p197 = por %p195, %p196
      %p199 = scmp.ne.s32.totalorder %s182, %s198
      %p200 = scmp.eq.s32.totalorder %s22, 0
      %p201 = por %p199, %p200
      %p202 = scmp.le.s32.totalorder 1, %s16
      %p203 = scmp.lt.s32.totalorder %s16, 3
      %p204 = pnand %p202, %p203
      %p205 = pneg %p204
      // Predicated region
      $region9: #{tpu_custom_call.1} parent=5 // pred_check
        _
      $region10: #{tpu_custom_call.1} parent=5 // pred_check_branch
        %207 = sbr.rel (%p204) target = $region12
      $region11: #{tpu_custom_call.1} parent=5 // pred_region
        %s208 = ssub.s32 %s16, 1
        // Predicated region
        $region13: #{tpu_custom_call.1} parent=11 // pred_check
          %p209 = pneg %p63
        $region14: #{tpu_custom_call.1} parent=11 // pred_check_branch
          %211 = sbr.rel (%p209) target = $region16
        $region15: #{tpu_custom_call.1} parent=11 // pred_region
          _
        $region16: #{tpu_custom_call.1} parent=11 // pred_fallthru
          _
        // Predicated region
        $region17: #{tpu_custom_call.1} parent=11 // pred_check
          %p212 = pneg %p84
        $region18: #{tpu_custom_call.1} parent=11 // pred_check_branch
          %214 = sbr.rel (%p212) target = $region20
        $region19: #{tpu_custom_call.1} parent=11 // pred_region
          _
        $region20: #{tpu_custom_call.1} parent=11 // pred_fallthru
          _
        // Predicated region
        $region21: #{tpu_custom_call.1} parent=11 // pred_check
          %p215 = pneg %p105
        $region22: #{tpu_custom_call.1} parent=11 // pred_check_branch
          %217 = sbr.rel (%p215) target = $region24
        $region23: #{tpu_custom_call.1} parent=11 // pred_region
          _
        $region24: #{tpu_custom_call.1} parent=11 // pred_fallthru
          _
        // Predicated region
        $region25: #{tpu_custom_call.1} parent=11 // pred_check
          %p218 = pneg %p126
        $region26: #{tpu_custom_call.1} parent=11 // pred_check_branch
          %220 = sbr.rel (%p218) target = $region28
        $region27: #{tpu_custom_call.1} parent=11 // pred_region
          _
        $region28: #{tpu_custom_call.1} parent=11 // pred_fallthru
          _
        // Predicated region
        $region29: #{tpu_custom_call.1} parent=11 // pred_check
          %p221 = pneg %p147
        $region30: #{tpu_custom_call.1} parent=11 // pred_check_branch
          %223 = sbr.rel (%p221) target = $region32
        $region31: #{tpu_custom_call.1} parent=11 // pred_region
          _
        $region32: #{tpu_custom_call.1} parent=11 // pred_fallthru
          _
        // Predicated region
        $region33: #{tpu_custom_call.1} parent=11 // pred_check
          %p224 = pneg %p168
        $region34: #{tpu_custom_call.1} parent=11 // pred_check_branch
          %226 = sbr.rel (%p224) target = $region36
        $region35: #{tpu_custom_call.1} parent=11 // pred_region
          _
        $region36: #{tpu_custom_call.1} parent=11 // pred_fallthru
          _
      $region12: #{tpu_custom_call.1} parent=5 // pred_fallthru
        _
      %p227 = scmp.lt.s32.totalorder %s16, 2
      // Predicated region
      $region37: #{tpu_custom_call.1} parent=5 // pred_check
        %p228 = pneg %p227
      $region38: #{tpu_custom_call.1} parent=5 // pred_check_branch
        %230 = sbr.rel (%p228) target = $region40
      $region39: #{tpu_custom_call.1} parent=5 // pred_region
        // Predicated region
        $region41: #{tpu_custom_call.1} parent=39 // pred_check
          %p231 = pneg %p36
        $region42: #{tpu_custom_call.1} parent=39 // pred_check_branch
          %233 = sbr.rel (%p231) target = $region44
        $region43: #{tpu_custom_call.1} parent=39 // pred_region
          %p234 = scmp.lt.s32.totalorder %s16, 1
          %s235 = scalar_select %p234, %s16, 1
          %s236 = smul.addr %s235, 2
          %s237 = smul.addr %s236, 4
          %s238 = scalar_lea.vmem %s0, %s237
        $region44: #{tpu_custom_call.1} parent=39 // pred_fallthru
          _
      $region40: #{tpu_custom_call.1} parent=5 // pred_fallthru
        _
      %p239 = scmp.le.s32.totalorder 1, %s16
      %p240 = scmp.lt.s32.totalorder %s16, 3
      %p241 = pnand %p239, %p240
      %p242 = pneg %p241
      // Predicated region
      $region45: #{tpu_custom_call.1} parent=5 // pred_check
        _
      $region46: #{tpu_custom_call.1} parent=5 // pred_check_branch
        %244 = sbr.rel (%p241) target = $region48
      $region47: #{tpu_custom_call.1} parent=5 // pred_region
        %s245 = ssub.s32 %s16, 1
        %p246 = scmp.lt.s32.totalorder %s21, 1
        %s247 = scalar_select %p246, %s21, 1
        %s248 = smul.addr %s247, 2
        %s249 = smul.addr %s248, 4
        %s250 = scalar_lea.vmem %s0, %s249
        %p251 = pneg %p42
        %p252 = pneg %p39
        %p253 = pneg %p63
        %p254 = pneg %p60
        %p255 = pneg %p84
        %p256 = pneg %p81
        %p257 = pneg %p105
        %p258 = pneg %p102
        %p259 = pneg %p126
        %p260 = pneg %p123
        %p261 = pneg %p147
        %p262 = pneg %p144
        %p263 = pneg %p168
        %p264 = pneg %p165
        %p265 = pneg %p194
        %p266 = pneg %p191
        %s267 = sand.u32 %s181, 1
        %s268 = scalar_lea.sflag [#allocation5], %s267
        %s269 = sand.u32 %s181, 1
        %s270 = smul.addr %s269, 24
        %s271 = scalar_lea.vmem [#allocation4], %s270
        %p272 = scmp.lt.s32.totalorder %s21, 1
        %s273 = scalar_select %p272, %s21, 1
        %s274 = smul.addr %s273, 2
        %s275 = smul.addr %s274, 4
        %s276 = scalar_lea.vmem %s0, %s275
        %277 = vst [vmem:[#allocation2] sm:$0xff] 0.0
        %278 = vst [vmem:[#allocation2 + $0x8] sm:$0xff] 0.0
        %v279 = vld [vmem:[%s276] sm:$0xf]
        %281 = vrot.lane.b32.xlu0 %v279, 19
        %v282 = vpop.permute.xlu0 %281
        %vm284 = vcmask 281752
        %285 = vst.msk [vmem:[#allocation2] sm:$0xf] %vm284, %v282
        %v286 = vld [vmem:[%s276] sm:$0xf]
        %288 = vrot.lane.b32.xlu0 %v286, 21
        %v289 = vpop.permute.xlu0 %288
        %vm291 = vcmask 429352
        %292 = vst.msk [vmem:[#allocation2] sm:$0xf] %vm291, %v289
        %v293 = vld [vmem:[%s276] sm:$0xf]
        %295 = vrot.lane.b32.xlu0 %v293, 23
        %v296 = vpop.permute.xlu0 %295
        %vm298 = vcmask 576952
        %299 = vst.msk [vmem:[#allocation2] sm:$0xf] %vm298, %v296
        %v300 = vld [vmem:[%s276] sm:$0xf]
        %302 = vrot.lane.b32.xlu0 %v300, 25
        %v303 = vpop.permute.xlu0 %302
        %vm305 = vcmask 724552
        %306 = vst.msk [vmem:[#allocation2] sm:$0xf] %vm305, %v303
        %v307 = vld [vmem:[%s276] sm:$0xf]
        %309 = vrot.lane.b32.xlu0 %v307, 27
        %v310 = vpop.permute.xlu0 %309
        %vm312 = vcmask 872152
        %313 = vst.msk [vmem:[#allocation2] sm:$0xf] %vm312, %v310
        %v314 = vld [vmem:[%s276] sm:$0xf]
        %316 = vrot.lane.b32.xlu0 %v314, 29
        %v317 = vpop.permute.xlu0 %316
        %vm319 = vcmask 1019752
        %320 = vst.msk [vmem:[#allocation2] sm:$0xf] %vm319, %v317
        %v321 = vld [vmem:[%s276] sm:$0xf]
        %323 = vrot.lane.b32.xlu0 %v321, 31
        %v324 = vpop.permute.xlu0 %323
        %v325 = vrot.slane %v324, 4
        %vm326 = vcmask 252928
        %v327 = vsel %vm326, %v325, %v324
        %vm329 = vcmask 1044472
        %vm330 = vcmask 121860
        %vm331 = vmor %vm330, %vm329
        %332 = vst.msk [vmem:[#allocation2] sm:$0xff] %vm331, %v327
        %v333 = vld [vmem:[%s276] sm:$0xf]
        %335 = vrot.lane.b32.xlu0 %v333, 33
        %v336 = vpop.permute.xlu0 %335
        %vm338 = vcmask 265352
        %339 = vst.msk [vmem:[#allocation2 + $0x4] sm:$0xf] %vm338, %v336
        %v340 = vld [vmem:[%s276 + $0x4] sm:$0xf]
        %342 = vrot.lane.b32.xlu0 %v340, 35
        %v343 = vpop.permute.xlu0 %342
        %vm345 = vcmask 412952
        %346 = vst.msk [vmem:[#allocation2 + $0x4] sm:$0xf] %vm345, %v343
        %v347 = vld [vmem:[%s276 + $0x4] sm:$0xf]
        %349 = vrot.lane.b32.xlu0 %v347, 37
        %v350 = vpop.permute.xlu0 %349
        %vm352 = vcmask 560552
        %353 = vst.msk [vmem:[#allocation2 + $0x4] sm:$0xf] %vm352, %v350
        %v354 = vld [vmem:[%s276 + $0x4] sm:$0xf]
        %356 = vrot.lane.b32.xlu0 %v354, 39
        %v357 = vpop.permute.xlu0 %356
        %vm359 = vcmask 708152
        %360 = vst.msk [vmem:[#allocation2 + $0x4] sm:$0xf] %vm359, %v357
        %v361 = vld [vmem:[%s276 + $0x4] sm:$0xf]
        %363 = vrot.lane.b32.xlu0 %v361, 41
        %v364 = vpop.permute.xlu0 %363
        %vm366 = vcmask 855752
        %367 = vst.msk [vmem:[#allocation2 + $0x4] sm:$0xf] %vm366, %v364
        %v368 = vld [vmem:[%s276 + $0x4] sm:$0xf]
        %370 = vrot.lane.b32.xlu0 %v368, 43
        %v371 = vpop.permute.xlu0 %370
        %vm373 = vcmask 1003352
        %374 = vst.msk [vmem:[#allocation2 + $0x4] sm:$0xf] %vm373, %v371
        %v375 = vld [vmem:[%s276 + $0x4] sm:$0xf]
        %377 = vrot.lane.b32.xlu0 %v375, 45
        %v378 = vpop.permute.xlu0 %377
        %v379 = vrot.slane %v378, 4
        %vm380 = vcmask 367616
        %v381 = vsel %vm380, %v379, %v378
        %vm383 = vcmask 1044456
        %vm384 = vcmask 105476
        %vm385 = vmor %vm384, %vm383
        %386 = vst.msk [vmem:[#allocation2 + $0x4] sm:$0xff] %vm385, %v381
        %v387 = vld [vmem:[%s276 + $0x4] sm:$0xf]
        %389 = vrot.lane.b32.xlu0 %v387, 47
        %v390 = vpop.permute.xlu0 %389
        %vm392 = vcmask 248952
        %393 = vst.msk [vmem:[#allocation2 + $0x8] sm:$0xf] %vm392, %v390
        %v394 = vld [vmem:[%s276 + $0x4] sm:$0xf]
        %396 = vrot.lane.b32.xlu0 %v394, 49
        %v397 = vpop.permute.xlu0 %396
        %vm399 = vcmask 396552
        %400 = vst.msk [vmem:[#allocation2 + $0x8] sm:$0xf] %vm399, %v397
        %v401 = vld [vmem:[%s1] sm:$0xff]
        %v402 = vld [vmem:[#allocation2] sm:$0xff]
        %v403 = vld [vmem:[#allocation2 + $0x8] sm:$0xf]
        %s404 = scalar_lea.vmem %s1, 8
        %v405 = vld [vmem:[%s404] sm:$0xff]
        %v408 = vcombine.high %v402, %v402
        %409 = vrot.lane.b32.xlu0 %v402, 127
        %v410 = vpop.permute.xlu0 %409
        %411 = vrot.lane.b32.xlu0 %v408, 127
        %v412 = vpop.permute.xlu0 %411
        %413 = vrot.lane.b32.xlu0 %v403, 127
        %v414 = vpop.permute.xlu0 %413
        %vm415 = vcmask 1039360
        %v416 = vsel %vm415, %v410, %v412
        %v417 = vsel %vm415, %v412, %v414
        %vm418 = vcmask 31744
        %v420 = vsel %vm418, %v405, 0
        %vm422 = vcmask 1043456
        %v423 = vsel %vm422, %v416, 0
        %v425 = vsel %vm422, %v417, 0
        %v427 = vsel %vm422, %v414, 0
        %429 = vmatprep.subr.mxu0 0.0
        %430 = vmatpush1.msra.mxu0 0.0
        %431 = vmatprep.subr.mxu0 0.0
        %432 = vmatpush1.msra.mxu0 0.0
        %433 = vmatprep.subr.mxu0 0.0
        %434 = vmatpush1.msra.mxu0 0.0
        %435 = vmatprep.subr.mxu0 0.0
        %436 = vmatpush1.msra.mxu0 0.0
        %437 = vmatprep.subr.mxu0 0.0
        %438 = vmatpush1.msra.mxu0 0.0
        %439 = vmatprep.subr.mxu0 0.0
        %440 = vmatpush1.msra.mxu0 0.0
        %441 = vmatprep.subr.mxu0 0.0
        %442 = vmatpush1.msra.mxu0 0.0
        %443 = vmatprep.subr.mxu0 0.0
        %444 = vmatpush1.msra.mxu0 0.0
        %445 = vmatprep.subr.mxu0 0.0
        %446 = vmatpush1.msra.mxu0 0.0
        %447 = vmatprep.subr.mxu0 0.0
        %448 = vmatpush1.msra.mxu0 0.0
        %449 = vmatprep.subr.mxu0 0.0
        %450 = vmatpush1.msra.mxu0 0.0
        %451 = vmatprep.subr.mxu0 0.0
        %452 = vmatpush1.msra.mxu0 0.0
        %453 = vmatprep.subr.mxu0 0.0
        %454 = vmatpush1.msra.mxu0 0.0
        %455 = vmatprep.subr.mxu0 0.0
        %456 = vmatpush1.msra.mxu0 0.0
        %457 = vmatprep.subr.mxu0 0.0
        %458 = vmatpush1.msra.mxu0 0.0
        %459 = vmatprep.subr.mxu0 %v425
        %460 = vmatpush1.msra.mxu0 %v423
        %461 = vmatprep.subr.mxu0 0.0
        %462 = vmatpush2.msra.mxu0 0.0
        %463 = vmatprep.subr.mxu0 0.0
        %464 = vmatpush2.msra.mxu0 0.0
        %465 = vmatprep.subr.mxu0 0.0
        %466 = vmatpush2.msra.mxu0 0.0
        %467 = vmatprep.subr.mxu0 0.0
        %468 = vmatpush2.msra.mxu0 0.0
        %469 = vmatprep.subr.mxu0 0.0
        %470 = vmatpush2.msra.mxu0 0.0
        %471 = vmatprep.subr.mxu0 0.0
        %472 = vmatpush2.msra.mxu0 0.0
        %473 = vmatprep.subr.mxu0 0.0
        %474 = vmatpush2.msra.mxu0 0.0
        %475 = vmatprep.subr.mxu0 0.0
        %476 = vmatpush2.msra.mxu0 0.0
        %477 = vmatprep.subr.mxu0 0.0
        %478 = vmatpush2.msra.mxu0 0.0
        %479 = vmatprep.subr.mxu0 0.0
        %480 = vmatpush2.msra.mxu0 0.0
        %481 = vmatprep.subr.mxu0 0.0
        %482 = vmatpush2.msra.mxu0 0.0
        %483 = vmatprep.subr.mxu0 0.0
        %484 = vmatpush2.msra.mxu0 0.0
        %485 = vmatprep.subr.mxu0 0.0
        %486 = vmatpush2.msra.mxu0 0.0
        %487 = vmatprep.subr.mxu0 0.0
        %488 = vmatpush2.msra.mxu0 0.0
        %489 = vmatprep.subr.mxu0 0.0
        %490 = vmatpush2.msra.mxu0 0.0
        %491 = vmatprep.subr.mxu0 0.0
        %492 = vmatpush2.msra.mxu0 0.0
        %493 = vmatprep.mubr.f32.mxu0 0.0
        %494 = vmatmul.mubr.f32.gmra.mxu0 %v420
        %v495 = vpop.f32.mrf.mxu0
        %v496 = vadd.f32 0.0, %v495
        %v497 = vpop.f32.mrf.mxu0
        %v498 = vadd.f32 0.0, %v497
        %499 = vdwg.mxu0
        %500 = vmatprep.subr.mxu0 0.0
        %501 = vmatpush1.msra.mxu0 0.0
        %502 = vmatprep.subr.mxu0 0.0
        %503 = vmatpush1.msra.mxu0 0.0
        %504 = vmatprep.subr.mxu0 0.0
        %505 = vmatpush1.msra.mxu0 0.0
        %506 = vmatprep.subr.mxu0 0.0
        %507 = vmatpush1.msra.mxu0 0.0
        %508 = vmatprep.subr.mxu0 0.0
        %509 = vmatpush1.msra.mxu0 0.0
        %510 = vmatprep.subr.mxu0 0.0
        %511 = vmatpush1.msra.mxu0 0.0
        %512 = vmatprep.subr.mxu0 0.0
        %513 = vmatpush1.msra.mxu0 0.0
        %514 = vmatprep.subr.mxu0 0.0
        %515 = vmatpush1.msra.mxu0 0.0
        %516 = vmatprep.subr.mxu0 0.0
        %517 = vmatpush1.msra.mxu0 0.0
        %518 = vmatprep.subr.mxu0 0.0
        %519 = vmatpush1.msra.mxu0 0.0
        %520 = vmatprep.subr.mxu0 0.0
        %521 = vmatpush1.msra.mxu0 0.0
        %522 = vmatprep.subr.mxu0 0.0
        %523 = vmatpush1.msra.mxu0 0.0
        %524 = vmatprep.subr.mxu0 0.0
        %525 = vmatpush1.msra.mxu0 0.0
        %526 = vmatprep.subr.mxu0 0.0
        %527 = vmatpush1.msra.mxu0 0.0
        %528 = vmatprep.subr.mxu0 0.0
        %529 = vmatpush1.msra.mxu0 0.0
        %530 = vmatprep.subr.mxu0 0.0
        %531 = vmatpush1.msra.mxu0 %v427
        %532 = vmatprep.subr.mxu0 0.0
        %533 = vmatpush2.msra.mxu0 0.0
        %534 = vmatprep.subr.mxu0 0.0
        %535 = vmatpush2.msra.mxu0 0.0
        %536 = vmatprep.subr.mxu0 0.0
        %537 = vmatpush2.msra.mxu0 0.0
        %538 = vmatprep.subr.mxu0 0.0
        %539 = vmatpush2.msra.mxu0 0.0
        %540 = vmatprep.subr.mxu0 0.0
        %541 = vmatpush2.msra.mxu0 0.0
        %542 = vmatprep.subr.mxu0 0.0
        %543 = vmatpush2.msra.mxu0 0.0
        %544 = vmatprep.subr.mxu0 0.0
        %545 = vmatpush2.msra.mxu0 0.0
        %546 = vmatprep.subr.mxu0 0.0
        %547 = vmatpush2.msra.mxu0 0.0
        %548 = vmatprep.subr.mxu0 0.0
        %549 = vmatpush2.msra.mxu0 0.0
        %550 = vmatprep.subr.mxu0 0.0
        %551 = vmatpush2.msra.mxu0 0.0
        %552 = vmatprep.subr.mxu0 0.0
        %553 = vmatpush2.msra.mxu0 0.0
        %554 = vmatprep.subr.mxu0 0.0
        %555 = vmatpush2.msra.mxu0 0.0
        %556 = vmatprep.subr.mxu0 0.0
        %557 = vmatpush2.msra.mxu0 0.0
        %558 = vmatprep.subr.mxu0 0.0
        %559 = vmatpush2.msra.mxu0 0.0
        %560 = vmatprep.subr.mxu0 0.0
        %561 = vmatpush2.msra.mxu0 0.0
        %562 = vmatprep.subr.mxu0 0.0
        %563 = vmatpush2.msra.mxu0 0.0
        %564 = vmatprep.mubr.f32.mxu0 0.0
        %565 = vmatmul.mubr.f32.gmra.mxu0 %v420
        %v566 = vpop.f32.mrf.mxu0
        %v567 = vadd.f32 0.0, %v566
        %v568 = vpop.f32.mrf.mxu0
        %569 = vdwg.mxu0
        %v571 = vsel %vm418, %v401, 0
        %v573 = vsel %vm422, %v402, 0
        %v575 = vsel %vm422, %v408, 0
        %v577 = vsel %vm422, %v403, 0
        %579 = vmatprep.subr.mxu0 0.0
        %580 = vmatpush1.msra.mxu0 0.0
        %581 = vmatprep.subr.mxu0 0.0
        %582 = vmatpush1.msra.mxu0 0.0
        %583 = vmatprep.subr.mxu0 0.0
        %584 = vmatpush1.msra.mxu0 0.0
        %585 = vmatprep.subr.mxu0 0.0
        %586 = vmatpush1.msra.mxu0 0.0
        %587 = vmatprep.subr.mxu0 0.0
        %588 = vmatpush1.msra.mxu0 0.0
        %589 = vmatprep.subr.mxu0 0.0
        %590 = vmatpush1.msra.mxu0 0.0
        %591 = vmatprep.subr.mxu0 0.0
        %592 = vmatpush1.msra.mxu0 0.0
        %593 = vmatprep.subr.mxu0 0.0
        %594 = vmatpush1.msra.mxu0 0.0
        %595 = vmatprep.subr.mxu0 0.0
        %596 = vmatpush1.msra.mxu0 0.0
        %597 = vmatprep.subr.mxu0 0.0
        %598 = vmatpush1.msra.mxu0 0.0
        %599 = vmatprep.subr.mxu0 0.0
        %600 = vmatpush1.msra.mxu0 0.0
        %601 = vmatprep.subr.mxu0 0.0
        %602 = vmatpush1.msra.mxu0 0.0
        %603 = vmatprep.subr.mxu0 0.0
        %604 = vmatpush1.msra.mxu0 0.0
        %605 = vmatprep.subr.mxu0 0.0
        %606 = vmatpush1.msra.mxu0 0.0
        %607 = vmatprep.subr.mxu0 0.0
        %608 = vmatpush1.msra.mxu0 0.0
        %609 = vmatprep.subr.mxu0 %v575
        %610 = vmatpush1.msra.mxu0 %v573
        %611 = vmatprep.subr.mxu0 0.0
        %612 = vmatpush2.msra.mxu0 0.0
        %613 = vmatprep.subr.mxu0 0.0
        %614 = vmatpush2.msra.mxu0 0.0
        %615 = vmatprep.subr.mxu0 0.0
        %616 = vmatpush2.msra.mxu0 0.0
        %617 = vmatprep.subr.mxu0 0.0
        %618 = vmatpush2.msra.mxu0 0.0
        %619 = vmatprep.subr.mxu0 0.0
        %620 = vmatpush2.msra.mxu0 0.0
        %621 = vmatprep.subr.mxu0 0.0
        %622 = vmatpush2.msra.mxu0 0.0
        %623 = vmatprep.subr.mxu0 0.0
        %624 = vmatpush2.msra.mxu0 0.0
        %625 = vmatprep.subr.mxu0 0.0
        %626 = vmatpush2.msra.mxu0 0.0
        %627 = vmatprep.subr.mxu0 0.0
        %628 = vmatpush2.msra.mxu0 0.0
        %629 = vmatprep.subr.mxu0 0.0
        %630 = vmatpush2.msra.mxu0 0.0
        %631 = vmatprep.subr.mxu0 0.0
        %632 = vmatpush2.msra.mxu0 0.0
        %633 = vmatprep.subr.mxu0 0.0
        %634 = vmatpush2.msra.mxu0 0.0
        %635 = vmatprep.subr.mxu0 0.0
        %636 = vmatpush2.msra.mxu0 0.0
        %637 = vmatprep.subr.mxu0 0.0
        %638 = vmatpush2.msra.mxu0 0.0
        %639 = vmatprep.subr.mxu0 0.0
        %640 = vmatpush2.msra.mxu0 0.0
        %641 = vmatprep.subr.mxu0 0.0
        %642 = vmatpush2.msra.mxu0 0.0
        %643 = vmatprep.mubr.f32.mxu0 0.0
        %644 = vmatmul.mubr.f32.gmra.mxu0 %v571
        %v645 = vpop.f32.mrf.mxu0
        %v646 = vadd.f32 %v496, %v645
        %v647 = vpop.f32.mrf.mxu0
        %v648 = vadd.f32 %v498, %v647
        %649 = vdwg.mxu0
        %650 = vmatprep.subr.mxu0 0.0
        %651 = vmatpush1.msra.mxu0 0.0
        %652 = vmatprep.subr.mxu0 0.0
        %653 = vmatpush1.msra.mxu0 0.0
        %654 = vmatprep.subr.mxu0 0.0
        %655 = vmatpush1.msra.mxu0 0.0
        %656 = vmatprep.subr.mxu0 0.0
        %657 = vmatpush1.msra.mxu0 0.0
        %658 = vmatprep.subr.mxu0 0.0
        %659 = vmatpush1.msra.mxu0 0.0
        %660 = vmatprep.subr.mxu0 0.0
        %661 = vmatpush1.msra.mxu0 0.0
        %662 = vmatprep.subr.mxu0 0.0
        %663 = vmatpush1.msra.mxu0 0.0
        %664 = vmatprep.subr.mxu0 0.0
        %665 = vmatpush1.msra.mxu0 0.0
        %666 = vmatprep.subr.mxu0 0.0
        %667 = vmatpush1.msra.mxu0 0.0
        %668 = vmatprep.subr.mxu0 0.0
        %669 = vmatpush1.msra.mxu0 0.0
        %670 = vmatprep.subr.mxu0 0.0
        %671 = vmatpush1.msra.mxu0 0.0
        %672 = vmatprep.subr.mxu0 0.0
        %673 = vmatpush1.msra.mxu0 0.0
        %674 = vmatprep.subr.mxu0 0.0
        %675 = vmatpush1.msra.mxu0 0.0
        %676 = vmatprep.subr.mxu0 0.0
        %677 = vmatpush1.msra.mxu0 0.0
        %678 = vmatprep.subr.mxu0 0.0
        %679 = vmatpush1.msra.mxu0 0.0
        %680 = vmatprep.subr.mxu0 0.0
        %681 = vmatpush1.msra.mxu0 %v577
        %682 = vmatprep.subr.mxu0 0.0
        %683 = vmatpush2.msra.mxu0 0.0
        %684 = vmatprep.subr.mxu0 0.0
        %685 = vmatpush2.msra.mxu0 0.0
        %686 = vmatprep.subr.mxu0 0.0
        %687 = vmatpush2.msra.mxu0 0.0
        %688 = vmatprep.subr.mxu0 0.0
        %689 = vmatpush2.msra.mxu0 0.0
        %690 = vmatprep.subr.mxu0 0.0
        %691 = vmatpush2.msra.mxu0 0.0
        %692 = vmatprep.subr.mxu0 0.0
        %693 = vmatpush2.msra.mxu0 0.0
        %694 = vmatprep.subr.mxu0 0.0
        %695 = vmatpush2.msra.mxu0 0.0
        %696 = vmatprep.subr.mxu0 0.0
        %697 = vmatpush2.msra.mxu0 0.0
        %698 = vmatprep.subr.mxu0 0.0
        %699 = vmatpush2.msra.mxu0 0.0
        %700 = vmatprep.subr.mxu0 0.0
        %701 = vmatpush2.msra.mxu0 0.0
        %702 = vmatprep.subr.mxu0 0.0
        %703 = vmatpush2.msra.mxu0 0.0
        %704 = vmatprep.subr.mxu0 0.0
        %705 = vmatpush2.msra.mxu0 0.0
        %706 = vmatprep.subr.mxu0 0.0
        %707 = vmatpush2.msra.mxu0 0.0
        %708 = vmatprep.subr.mxu0 0.0
        %709 = vmatpush2.msra.mxu0 0.0
        %710 = vmatprep.subr.mxu0 0.0
        %711 = vmatpush2.msra.mxu0 0.0
        %712 = vmatprep.subr.mxu0 0.0
        %713 = vmatpush2.msra.mxu0 0.0
        %714 = vmatprep.mubr.f32.mxu0 0.0
        %715 = vmatmul.mubr.f32.gmra.mxu0 %v571
        %v716 = vpop.f32.mrf.mxu0
        %v717 = vadd.f32 %v567, %v716
        %v718 = vpop.f32.mrf.mxu0
        %719 = vdwg.mxu0
        %s720 = scalar_lea.vmem %s1, 16
        %v721 = vld [vmem:[%s720] sm:$0xff]
        %v722 = vld [vmem:[#allocation2] sm:$0xff]
        %v723 = vld [vmem:[#allocation2 + $0x8] sm:$0xf]
        %v726 = vcombine.high %v722, %v722
        %727 = vrot.lane.b32.xlu0 %v722, 126
        %v728 = vpop.permute.xlu0 %727
        %729 = vrot.lane.b32.xlu0 %v726, 126
        %v730 = vpop.permute.xlu0 %729
        %731 = vrot.lane.b32.xlu0 %v723, 126
        %v732 = vpop.permute.xlu0 %731
        %vm733 = vcmask 1031168
        %v734 = vsel %vm733, %v728, %v730
        %v735 = vsel %vm733, %v730, %v732
        %v737 = vsel %vm418, %v721, 0
        %v739 = vsel %vm422, %v734, 0
        %v741 = vsel %vm422, %v735, 0
        %v743 = vsel %vm422, %v732, 0
        %745 = vmatprep.subr.mxu0 0.0
        %746 = vmatpush1.msra.mxu0 0.0
        %747 = vmatprep.subr.mxu0 0.0
        %748 = vmatpush1.msra.mxu0 0.0
        %749 = vmatprep.subr.mxu0 0.0
        %750 = vmatpush1.msra.mxu0 0.0
        %751 = vmatprep.subr.mxu0 0.0
        %752 = vmatpush1.msra.mxu0 0.0
        %753 = vmatprep.subr.mxu0 0.0
        %754 = vmatpush1.msra.mxu0 0.0
        %755 = vmatprep.subr.mxu0 0.0
        %756 = vmatpush1.msra.mxu0 0.0
        %757 = vmatprep.subr.mxu0 0.0
        %758 = vmatpush1.msra.mxu0 0.0
        %759 = vmatprep.subr.mxu0 0.0
        %760 = vmatpush1.msra.mxu0 0.0
        %761 = vmatprep.subr.mxu0 0.0
        %762 = vmatpush1.msra.mxu0 0.0
        %763 = vmatprep.subr.mxu0 0.0
        %764 = vmatpush1.msra.mxu0 0.0
        %765 = vmatprep.subr.mxu0 0.0
        %766 = vmatpush1.msra.mxu0 0.0
        %767 = vmatprep.subr.mxu0 0.0
        %768 = vmatpush1.msra.mxu0 0.0
        %769 = vmatprep.subr.mxu0 0.0
        %770 = vmatpush1.msra.mxu0 0.0
        %771 = vmatprep.subr.mxu0 0.0
        %772 = vmatpush1.msra.mxu0 0.0
        %773 = vmatprep.subr.mxu0 0.0
        %774 = vmatpush1.msra.mxu0 0.0
        %775 = vmatprep.subr.mxu0 %v741
        %776 = vmatpush1.msra.mxu0 %v739
        %777 = vmatprep.subr.mxu0 0.0
        %778 = vmatpush2.msra.mxu0 0.0
        %779 = vmatprep.subr.mxu0 0.0
        %780 = vmatpush2.msra.mxu0 0.0
        %781 = vmatprep.subr.mxu0 0.0
        %782 = vmatpush2.msra.mxu0 0.0
        %783 = vmatprep.subr.mxu0 0.0
        %784 = vmatpush2.msra.mxu0 0.0
        %785 = vmatprep.subr.mxu0 0.0
        %786 = vmatpush2.msra.mxu0 0.0
        %787 = vmatprep.subr.mxu0 0.0
        %788 = vmatpush2.msra.mxu0 0.0
        %789 = vmatprep.subr.mxu0 0.0
        %790 = vmatpush2.msra.mxu0 0.0
        %791 = vmatprep.subr.mxu0 0.0
        %792 = vmatpush2.msra.mxu0 0.0
        %793 = vmatprep.subr.mxu0 0.0
        %794 = vmatpush2.msra.mxu0 0.0
        %795 = vmatprep.subr.mxu0 0.0
        %796 = vmatpush2.msra.mxu0 0.0
        %797 = vmatprep.subr.mxu0 0.0
        %798 = vmatpush2.msra.mxu0 0.0
        %799 = vmatprep.subr.mxu0 0.0
        %800 = vmatpush2.msra.mxu0 0.0
        %801 = vmatprep.subr.mxu0 0.0
        %802 = vmatpush2.msra.mxu0 0.0
        %803 = vmatprep.subr.mxu0 0.0
        %804 = vmatpush2.msra.mxu0 0.0
        %805 = vmatprep.subr.mxu0 0.0
        %806 = vmatpush2.msra.mxu0 0.0
        %807 = vmatprep.subr.mxu0 0.0
        %808 = vmatpush2.msra.mxu0 0.0
        %809 = vmatprep.mubr.f32.mxu0 0.0
        %810 = vmatmul.mubr.f32.gmra.mxu0 %v737
        %v811 = vpop.f32.mrf.mxu0
        %v812 = vadd.f32 0.0, %v811
        %v813 = vpop.f32.mrf.mxu0
        %v814 = vadd.f32 0.0, %v813
        %815 = vdwg.mxu0
        %816 = vmatprep.subr.mxu0 0.0
        %817 = vmatpush1.msra.mxu0 0.0
        %818 = vmatprep.subr.mxu0 0.0
        %819 = vmatpush1.msra.mxu0 0.0
        %820 = vmatprep.subr.mxu0 0.0
        %821 = vmatpush1.msra.mxu0 0.0
        %822 = vmatprep.subr.mxu0 0.0
        %823 = vmatpush1.msra.mxu0 0.0
        %824 = vmatprep.subr.mxu0 0.0
        %825 = vmatpush1.msra.mxu0 0.0
        %826 = vmatprep.subr.mxu0 0.0
        %827 = vmatpush1.msra.mxu0 0.0
        %828 = vmatprep.subr.mxu0 0.0
        %829 = vmatpush1.msra.mxu0 0.0
        %830 = vmatprep.subr.mxu0 0.0
        %831 = vmatpush1.msra.mxu0 0.0
        %832 = vmatprep.subr.mxu0 0.0
        %833 = vmatpush1.msra.mxu0 0.0
        %834 = vmatprep.subr.mxu0 0.0
        %835 = vmatpush1.msra.mxu0 0.0
        %836 = vmatprep.subr.mxu0 0.0
        %837 = vmatpush1.msra.mxu0 0.0
        %838 = vmatprep.subr.mxu0 0.0
        %839 = vmatpush1.msra.mxu0 0.0
        %840 = vmatprep.subr.mxu0 0.0
        %841 = vmatpush1.msra.mxu0 0.0
        %842 = vmatprep.subr.mxu0 0.0
        %843 = vmatpush1.msra.mxu0 0.0
        %844 = vmatprep.subr.mxu0 0.0
        %845 = vmatpush1.msra.mxu0 0.0
        %846 = vmatprep.subr.mxu0 0.0
        %847 = vmatpush1.msra.mxu0 %v743
        %848 = vmatprep.subr.mxu0 0.0
        %849 = vmatpush2.msra.mxu0 0.0
        %850 = vmatprep.subr.mxu0 0.0
        %851 = vmatpush2.msra.mxu0 0.0
        %852 = vmatprep.subr.mxu0 0.0
        %853 = vmatpush2.msra.mxu0 0.0
        %854 = vmatprep.subr.mxu0 0.0
        %855 = vmatpush2.msra.mxu0 0.0
        %856 = vmatprep.subr.mxu0 0.0
        %857 = vmatpush2.msra.mxu0 0.0
        %858 = vmatprep.subr.mxu0 0.0
        %859 = vmatpush2.msra.mxu0 0.0
        %860 = vmatprep.subr.mxu0 0.0
        %861 = vmatpush2.msra.mxu0 0.0
        %862 = vmatprep.subr.mxu0 0.0
        %863 = vmatpush2.msra.mxu0 0.0
        %864 = vmatprep.subr.mxu0 0.0
        %865 = vmatpush2.msra.mxu0 0.0
        %866 = vmatprep.subr.mxu0 0.0
        %867 = vmatpush2.msra.mxu0 0.0
        %868 = vmatprep.subr.mxu0 0.0
        %869 = vmatpush2.msra.mxu0 0.0
        %870 = vmatprep.subr.mxu0 0.0
        %871 = vmatpush2.msra.mxu0 0.0
        %872 = vmatprep.subr.mxu0 0.0
        %873 = vmatpush2.msra.mxu0 0.0
        %874 = vmatprep.subr.mxu0 0.0
        %875 = vmatpush2.msra.mxu0 0.0
        %876 = vmatprep.subr.mxu0 0.0
        %877 = vmatpush2.msra.mxu0 0.0
        %878 = vmatprep.subr.mxu0 0.0
        %879 = vmatpush2.msra.mxu0 0.0
        %880 = vmatprep.mubr.f32.mxu0 0.0
        %881 = vmatmul.mubr.f32.gmra.mxu0 %v737
        %v882 = vpop.f32.mrf.mxu0
        %v883 = vadd.f32 0.0, %v882
        %v884 = vpop.f32.mrf.mxu0
        %885 = vdwg.mxu0
        %v886 = vadd.f32 %v646, %v812
        %v887 = vadd.f32 %v648, %v814
        %v888 = vadd.f32 %v717, %v883
        %s889 = scalar_lea.vmem %s1, 24
        %v890 = vld [vmem:[%s889] sm:$0xff]
        %v891 = vld [vmem:[#allocation2] sm:$0xff]
        %v892 = vld [vmem:[#allocation2 + $0x8] sm:$0xf]
        %v895 = vcombine.high %v891, %v891
        %896 = vrot.lane.b32.xlu0 %v891, 110
        %v897 = vpop.permute.xlu0 %896
        %898 = vrot.lane.b32.xlu0 %v895, 110
        %v899 = vpop.permute.xlu0 %898
        %900 = vrot.lane.b32.xlu0 %v892, 110
        %v901 = vpop.permute.xlu0 %900
        %vm902 = vcmask 900096
        %v903 = vsel %vm902, %v897, %v899
        %v904 = vsel %vm902, %v899, %v901
        %v906 = vsel %vm418, %v890, 0
        %v908 = vsel %vm422, %v903, 0
        %v910 = vsel %vm422, %v904, 0
        %v912 = vsel %vm422, %v901, 0
        %914 = vmatprep.subr.mxu0 0.0
        %915 = vmatpush1.msra.mxu0 0.0
        %916 = vmatprep.subr.mxu0 0.0
        %917 = vmatpush1.msra.mxu0 0.0
        %918 = vmatprep.subr.mxu0 0.0
        %919 = vmatpush1.msra.mxu0 0.0
        %920 = vmatprep.subr.mxu0 0.0
        %921 = vmatpush1.msra.mxu0 0.0
        %922 = vmatprep.subr.mxu0 0.0
        %923 = vmatpush1.msra.mxu0 0.0
        %924 = vmatprep.subr.mxu0 0.0
        %925 = vmatpush1.msra.mxu0 0.0
        %926 = vmatprep.subr.mxu0 0.0
        %927 = vmatpush1.msra.mxu0 0.0
        %928 = vmatprep.subr.mxu0 0.0
        %929 = vmatpush1.msra.mxu0 0.0
        %930 = vmatprep.subr.mxu0 0.0
        %931 = vmatpush1.msra.mxu0 0.0
        %932 = vmatprep.subr.mxu0 0.0
        %933 = vmatpush1.msra.mxu0 0.0
        %934 = vmatprep.subr.mxu0 0.0
        %935 = vmatpush1.msra.mxu0 0.0
        %936 = vmatprep.subr.mxu0 0.0
        %937 = vmatpush1.msra.mxu0 0.0
        %938 = vmatprep.subr.mxu0 0.0
        %939 = vmatpush1.msra.mxu0 0.0
        %940 = vmatprep.subr.mxu0 0.0
        %941 = vmatpush1.msra.mxu0 0.0
        %942 = vmatprep.subr.mxu0 0.0
        %943 = vmatpush1.msra.mxu0 0.0
        %944 = vmatprep.subr.mxu0 %v910
        %945 = vmatpush1.msra.mxu0 %v908
        %946 = vmatprep.subr.mxu0 0.0
        %947 = vmatpush2.msra.mxu0 0.0
        %948 = vmatprep.subr.mxu0 0.0
        %949 = vmatpush2.msra.mxu0 0.0
        %950 = vmatprep.subr.mxu0 0.0
        %951 = vmatpush2.msra.mxu0 0.0
        %952 = vmatprep.subr.mxu0 0.0
        %953 = vmatpush2.msra.mxu0 0.0
        %954 = vmatprep.subr.mxu0 0.0
        %955 = vmatpush2.msra.mxu0 0.0
        %956 = vmatprep.subr.mxu0 0.0
        %957 = vmatpush2.msra.mxu0 0.0
        %958 = vmatprep.subr.mxu0 0.0
        %959 = vmatpush2.msra.mxu0 0.0
        %960 = vmatprep.subr.mxu0 0.0
        %961 = vmatpush2.msra.mxu0 0.0
        %962 = vmatprep.subr.mxu0 0.0
        %963 = vmatpush2.msra.mxu0 0.0
        %964 = vmatprep.subr.mxu0 0.0
        %965 = vmatpush2.msra.mxu0 0.0
        %966 = vmatprep.subr.mxu0 0.0
        %967 = vmatpush2.msra.mxu0 0.0
        %968 = vmatprep.subr.mxu0 0.0
        %969 = vmatpush2.msra.mxu0 0.0
        %970 = vmatprep.subr.mxu0 0.0
        %971 = vmatpush2.msra.mxu0 0.0
        %972 = vmatprep.subr.mxu0 0.0
        %973 = vmatpush2.msra.mxu0 0.0
        %974 = vmatprep.subr.mxu0 0.0
        %975 = vmatpush2.msra.mxu0 0.0
        %976 = vmatprep.subr.mxu0 0.0
        %977 = vmatpush2.msra.mxu0 0.0
        %978 = vmatprep.mubr.f32.mxu0 0.0
        %979 = vmatmul.mubr.f32.gmra.mxu0 %v906
        %v980 = vpop.f32.mrf.mxu0
        %v981 = vadd.f32 0.0, %v980
        %v982 = vpop.f32.mrf.mxu0
        %v983 = vadd.f32 0.0, %v982
        %984 = vdwg.mxu0
        %985 = vmatprep.subr.mxu0 0.0
        %986 = vmatpush1.msra.mxu0 0.0
        %987 = vmatprep.subr.mxu0 0.0
        %988 = vmatpush1.msra.mxu0 0.0
        %989 = vmatprep.subr.mxu0 0.0
        %990 = vmatpush1.msra.mxu0 0.0
        %991 = vmatprep.subr.mxu0 0.0
        %992 = vmatpush1.msra.mxu0 0.0
        %993 = vmatprep.subr.mxu0 0.0
        %994 = vmatpush1.msra.mxu0 0.0
        %995 = vmatprep.subr.mxu0 0.0
        %996 = vmatpush1.msra.mxu0 0.0
        %997 = vmatprep.subr.mxu0 0.0
        %998 = vmatpush1.msra.mxu0 0.0
        %999 = vmatprep.subr.mxu0 0.0
        %1000 = vmatpush1.msra.mxu0 0.0
        %1001 = vmatprep.subr.mxu0 0.0
        %1002 = vmatpush1.msra.mxu0 0.0
        %1003 = vmatprep.subr.mxu0 0.0
        %1004 = vmatpush1.msra.mxu0 0.0
        %1005 = vmatprep.subr.mxu0 0.0
        %1006 = vmatpush1.msra.mxu0 0.0
        %1007 = vmatprep.subr.mxu0 0.0
        %1008 = vmatpush1.msra.mxu0 0.0
        %1009 = vmatprep.subr.mxu0 0.0
        %1010 = vmatpush1.msra.mxu0 0.0
        %1011 = vmatprep.subr.mxu0 0.0
        %1012 = vmatpush1.msra.mxu0 0.0
        %1013 = vmatprep.subr.mxu0 0.0
        %1014 = vmatpush1.msra.mxu0 0.0
        %1015 = vmatprep.subr.mxu0 0.0
        %1016 = vmatpush1.msra.mxu0 %v912
        %1017 = vmatprep.subr.mxu0 0.0
        %1018 = vmatpush2.msra.mxu0 0.0
        %1019 = vmatprep.subr.mxu0 0.0
        %1020 = vmatpush2.msra.mxu0 0.0
        %1021 = vmatprep.subr.mxu0 0.0
        %1022 = vmatpush2.msra.mxu0 0.0
        %1023 = vmatprep.subr.mxu0 0.0
        %1024 = vmatpush2.msra.mxu0 0.0
        %1025 = vmatprep.subr.mxu0 0.0
        %1026 = vmatpush2.msra.mxu0 0.0
        %1027 = vmatprep.subr.mxu0 0.0
        %1028 = vmatpush2.msra.mxu0 0.0
        %1029 = vmatprep.subr.mxu0 0.0
        %1030 = vmatpush2.msra.mxu0 0.0
        %1031 = vmatprep.subr.mxu0 0.0
        %1032 = vmatpush2.msra.mxu0 0.0
        %1033 = vmatprep.subr.mxu0 0.0
        %1034 = vmatpush2.msra.mxu0 0.0
        %1035 = vmatprep.subr.mxu0 0.0
        %1036 = vmatpush2.msra.mxu0 0.0
        %1037 = vmatprep.subr.mxu0 0.0
        %1038 = vmatpush2.msra.mxu0 0.0
        %1039 = vmatprep.subr.mxu0 0.0
        %1040 = vmatpush2.msra.mxu0 0.0
        %1041 = vmatprep.subr.mxu0 0.0
        %1042 = vmatpush2.msra.mxu0 0.0
        %1043 = vmatprep.subr.mxu0 0.0
        %1044 = vmatpush2.msra.mxu0 0.0
        %1045 = vmatprep.subr.mxu0 0.0
        %1046 = vmatpush2.msra.mxu0 0.0
        %1047 = vmatprep.subr.mxu0 0.0
        %1048 = vmatpush2.msra.mxu0 0.0
        %1049 = vmatprep.mubr.f32.mxu0 0.0
        %1050 = vmatmul.mubr.f32.gmra.mxu0 %v906
        %v1051 = vpop.f32.mrf.mxu0
        %v1052 = vadd.f32 0.0, %v1051
        %v1053 = vpop.f32.mrf.mxu0
        %1054 = vdwg.mxu0
        %v1055 = vadd.f32 %v886, %v981
        %v1056 = vadd.f32 %v887, %v983
        %v1057 = vadd.f32 %v888, %v1052
        %s1058 = scalar_lea.vmem %s1, 32
        %v1059 = vld [vmem:[%s1058] sm:$0xff]
        %v1060 = vld [vmem:[#allocation2] sm:$0xff]
        %v1061 = vld [vmem:[#allocation2 + $0x8] sm:$0xf]
        %v1064 = vcombine.high %v1060, %v1060
        %1065 = vrot.lane.b32.xlu0 %v1060, 109
        %v1066 = vpop.permute.xlu0 %1065
        %1067 = vrot.lane.b32.xlu0 %v1064, 109
        %v1068 = vpop.permute.xlu0 %1067
        %1069 = vrot.lane.b32.xlu0 %v1061, 109
        %v1070 = vpop.permute.xlu0 %1069
        %vm1071 = vcmask 891904
        %v1072 = vsel %vm1071, %v1066, %v1068
        %v1073 = vsel %vm1071, %v1068, %v1070
        %v1075 = vsel %vm418, %v1059, 0
        %v1077 = vsel %vm422, %v1072, 0
        %v1079 = vsel %vm422, %v1073, 0
        %v1081 = vsel %vm422, %v1070, 0
        %1083 = vmatprep.subr.mxu0 0.0
        %1084 = vmatpush1.msra.mxu0 0.0
        %1085 = vmatprep.subr.mxu0 0.0
        %1086 = vmatpush1.msra.mxu0 0.0
        %1087 = vmatprep.subr.mxu0 0.0
        %1088 = vmatpush1.msra.mxu0 0.0
        %1089 = vmatprep.subr.mxu0 0.0
        %1090 = vmatpush1.msra.mxu0 0.0
        %1091 = vmatprep.subr.mxu0 0.0
        %1092 = vmatpush1.msra.mxu0 0.0
        %1093 = vmatprep.subr.mxu0 0.0
        %1094 = vmatpush1.msra.mxu0 0.0
        %1095 = vmatprep.subr.mxu0 0.0
        %1096 = vmatpush1.msra.mxu0 0.0
        %1097 = vmatprep.subr.mxu0 0.0
        %1098 = vmatpush1.msra.mxu0 0.0
        %1099 = vmatprep.subr.mxu0 0.0
        %1100 = vmatpush1.msra.mxu0 0.0
        %1101 = vmatprep.subr.mxu0 0.0
        %1102 = vmatpush1.msra.mxu0 0.0
        %1103 = vmatprep.subr.mxu0 0.0
        %1104 = vmatpush1.msra.mxu0 0.0
        %1105 = vmatprep.subr.mxu0 0.0
        %1106 = vmatpush1.msra.mxu0 0.0
        %1107 = vmatprep.subr.mxu0 0.0
        %1108 = vmatpush1.msra.mxu0 0.0
        %1109 = vmatprep.subr.mxu0 0.0
        %1110 = vmatpush1.msra.mxu0 0.0
        %1111 = vmatprep.subr.mxu0 0.0
        %1112 = vmatpush1.msra.mxu0 0.0
        %1113 = vmatprep.subr.mxu0 %v1079
        %1114 = vmatpush1.msra.mxu0 %v1077
        %1115 = vmatprep.subr.mxu0 0.0
        %1116 = vmatpush2.msra.mxu0 0.0
        %1117 = vmatprep.subr.mxu0 0.0
        %1118 = vmatpush2.msra.mxu0 0.0
        %1119 = vmatprep.subr.mxu0 0.0
        %1120 = vmatpush2.msra.mxu0 0.0
        %1121 = vmatprep.subr.mxu0 0.0
        %1122 = vmatpush2.msra.mxu0 0.0
        %1123 = vmatprep.subr.mxu0 0.0
        %1124 = vmatpush2.msra.mxu0 0.0
        %1125 = vmatprep.subr.mxu0 0.0
        %1126 = vmatpush2.msra.mxu0 0.0
        %1127 = vmatprep.subr.mxu0 0.0
        %1128 = vmatpush2.msra.mxu0 0.0
        %1129 = vmatprep.subr.mxu0 0.0
        %1130 = vmatpush2.msra.mxu0 0.0
        %1131 = vmatprep.subr.mxu0 0.0
        %1132 = vmatpush2.msra.mxu0 0.0
        %1133 = vmatprep.subr.mxu0 0.0
        %1134 = vmatpush2.msra.mxu0 0.0
        %1135 = vmatprep.subr.mxu0 0.0
        %1136 = vmatpush2.msra.mxu0 0.0
        %1137 = vmatprep.subr.mxu0 0.0
        %1138 = vmatpush2.msra.mxu0 0.0
        %1139 = vmatprep.subr.mxu0 0.0
        %1140 = vmatpush2.msra.mxu0 0.0
        %1141 = vmatprep.subr.mxu0 0.0
        %1142 = vmatpush2.msra.mxu0 0.0
        %1143 = vmatprep.subr.mxu0 0.0
        %1144 = vmatpush2.msra.mxu0 0.0
        %1145 = vmatprep.subr.mxu0 0.0
        %1146 = vmatpush2.msra.mxu0 0.0
        %1147 = vmatprep.mubr.f32.mxu0 0.0
        %1148 = vmatmul.mubr.f32.gmra.mxu0 %v1075
        %v1149 = vpop.f32.mrf.mxu0
        %v1150 = vadd.f32 0.0, %v1149
        %v1151 = vpop.f32.mrf.mxu0
        %v1152 = vadd.f32 0.0, %v1151
        %1153 = vdwg.mxu0
        %1154 = vmatprep.subr.mxu0 0.0
        %1155 = vmatpush1.msra.mxu0 0.0
        %1156 = vmatprep.subr.mxu0 0.0
        %1157 = vmatpush1.msra.mxu0 0.0
        %1158 = vmatprep.subr.mxu0 0.0
        %1159 = vmatpush1.msra.mxu0 0.0
        %1160 = vmatprep.subr.mxu0 0.0
        %1161 = vmatpush1.msra.mxu0 0.0
        %1162 = vmatprep.subr.mxu0 0.0
        %1163 = vmatpush1.msra.mxu0 0.0
        %1164 = vmatprep.subr.mxu0 0.0
        %1165 = vmatpush1.msra.mxu0 0.0
        %1166 = vmatprep.subr.mxu0 0.0
        %1167 = vmatpush1.msra.mxu0 0.0
        %1168 = vmatprep.subr.mxu0 0.0
        %1169 = vmatpush1.msra.mxu0 0.0
        %1170 = vmatprep.subr.mxu0 0.0
        %1171 = vmatpush1.msra.mxu0 0.0
        %1172 = vmatprep.subr.mxu0 0.0
        %1173 = vmatpush1.msra.mxu0 0.0
        %1174 = vmatprep.subr.mxu0 0.0
        %1175 = vmatpush1.msra.mxu0 0.0
        %1176 = vmatprep.subr.mxu0 0.0
        %1177 = vmatpush1.msra.mxu0 0.0
        %1178 = vmatprep.subr.mxu0 0.0
        %1179 = vmatpush1.msra.mxu0 0.0
        %1180 = vmatprep.subr.mxu0 0.0
        %1181 = vmatpush1.msra.mxu0 0.0
        %1182 = vmatprep.subr.mxu0 0.0
        %1183 = vmatpush1.msra.mxu0 0.0
        %1184 = vmatprep.subr.mxu0 0.0
        %1185 = vmatpush1.msra.mxu0 %v1081
        %1186 = vmatprep.subr.mxu0 0.0
        %1187 = vmatpush2.msra.mxu0 0.0
        %1188 = vmatprep.subr.mxu0 0.0
        %1189 = vmatpush2.msra.mxu0 0.0
        %1190 = vmatprep.subr.mxu0 0.0
        %1191 = vmatpush2.msra.mxu0 0.0
        %1192 = vmatprep.subr.mxu0 0.0
        %1193 = vmatpush2.msra.mxu0 0.0
        %1194 = vmatprep.subr.mxu0 0.0
        %1195 = vmatpush2.msra.mxu0 0.0
        %1196 = vmatprep.subr.mxu0 0.0
        %1197 = vmatpush2.msra.mxu0 0.0
        %1198 = vmatprep.subr.mxu0 0.0
        %1199 = vmatpush2.msra.mxu0 0.0
        %1200 = vmatprep.subr.mxu0 0.0
        %1201 = vmatpush2.msra.mxu0 0.0
        %1202 = vmatprep.subr.mxu0 0.0
        %1203 = vmatpush2.msra.mxu0 0.0
        %1204 = vmatprep.subr.mxu0 0.0
        %1205 = vmatpush2.msra.mxu0 0.0
        %1206 = vmatprep.subr.mxu0 0.0
        %1207 = vmatpush2.msra.mxu0 0.0
        %1208 = vmatprep.subr.mxu0 0.0
        %1209 = vmatpush2.msra.mxu0 0.0
        %1210 = vmatprep.subr.mxu0 0.0
        %1211 = vmatpush2.msra.mxu0 0.0
        %1212 = vmatprep.subr.mxu0 0.0
        %1213 = vmatpush2.msra.mxu0 0.0
        %1214 = vmatprep.subr.mxu0 0.0
        %1215 = vmatpush2.msra.mxu0 0.0
        %1216 = vmatprep.subr.mxu0 0.0
        %1217 = vmatpush2.msra.mxu0 0.0
        %1218 = vmatprep.mubr.f32.mxu0 0.0
        %1219 = vmatmul.mubr.f32.gmra.mxu0 %v1075
        %v1220 = vpop.f32.mrf.mxu0
        %v1221 = vadd.f32 0.0, %v1220
        %v1222 = vpop.f32.mrf.mxu0
        %1223 = vdwg.mxu0
        %v1224 = vadd.f32 %v1055, %v1150
        %v1225 = vadd.f32 %v1056, %v1152
        %v1226 = vadd.f32 %v1057, %v1221
        %s1227 = scalar_lea.vmem %s1, 40
        %v1228 = vld [vmem:[%s1227] sm:$0xff]
        %v1229 = vld [vmem:[#allocation2] sm:$0xff]
        %v1230 = vld [vmem:[#allocation2 + $0x8] sm:$0xf]
        %v1233 = vcombine.high %v1229, %v1229
        %1234 = vrot.lane.b32.xlu0 %v1229, 108
        %v1235 = vpop.permute.xlu0 %1234
        %1236 = vrot.lane.b32.xlu0 %v1233, 108
        %v1237 = vpop.permute.xlu0 %1236
        %1238 = vrot.lane.b32.xlu0 %v1230, 108
        %v1239 = vpop.permute.xlu0 %1238
        %vm1240 = vcmask 883712
        %v1241 = vsel %vm1240, %v1235, %v1237
        %v1242 = vsel %vm1240, %v1237, %v1239
        %v1244 = vsel %vm418, %v1228, 0
        %v1246 = vsel %vm422, %v1241, 0
        %v1248 = vsel %vm422, %v1242, 0
        %v1250 = vsel %vm422, %v1239, 0
        %1252 = vmatprep.subr.mxu0 0.0
        %1253 = vmatpush1.msra.mxu0 0.0
        %1254 = vmatprep.subr.mxu0 0.0
        %1255 = vmatpush1.msra.mxu0 0.0
        %1256 = vmatprep.subr.mxu0 0.0
        %1257 = vmatpush1.msra.mxu0 0.0
        %1258 = vmatprep.subr.mxu0 0.0
        %1259 = vmatpush1.msra.mxu0 0.0
        %1260 = vmatprep.subr.mxu0 0.0
        %1261 = vmatpush1.msra.mxu0 0.0
        %1262 = vmatprep.subr.mxu0 0.0
        %1263 = vmatpush1.msra.mxu0 0.0
        %1264 = vmatprep.subr.mxu0 0.0
        %1265 = vmatpush1.msra.mxu0 0.0
        %1266 = vmatprep.subr.mxu0 0.0
        %1267 = vmatpush1.msra.mxu0 0.0
        %1268 = vmatprep.subr.mxu0 0.0
        %1269 = vmatpush1.msra.mxu0 0.0
        %1270 = vmatprep.subr.mxu0 0.0
        %1271 = vmatpush1.msra.mxu0 0.0
        %1272 = vmatprep.subr.mxu0 0.0
        %1273 = vmatpush1.msra.mxu0 0.0
        %1274 = vmatprep.subr.mxu0 0.0
        %1275 = vmatpush1.msra.mxu0 0.0
        %1276 = vmatprep.subr.mxu0 0.0
        %1277 = vmatpush1.msra.mxu0 0.0
        %1278 = vmatprep.subr.mxu0 0.0
        %1279 = vmatpush1.msra.mxu0 0.0
        %1280 = vmatprep.subr.mxu0 0.0
        %1281 = vmatpush1.msra.mxu0 0.0
        %1282 = vmatprep.subr.mxu0 %v1248
        %1283 = vmatpush1.msra.mxu0 %v1246
        %1284 = vmatprep.subr.mxu0 0.0
        %1285 = vmatpush2.msra.mxu0 0.0
        %1286 = vmatprep.subr.mxu0 0.0
        %1287 = vmatpush2.msra.mxu0 0.0
        %1288 = vmatprep.subr.mxu0 0.0
        %1289 = vmatpush2.msra.mxu0 0.0
        %1290 = vmatprep.subr.mxu0 0.0
        %1291 = vmatpush2.msra.mxu0 0.0
        %1292 = vmatprep.subr.mxu0 0.0
        %1293 = vmatpush2.msra.mxu0 0.0
        %1294 = vmatprep.subr.mxu0 0.0
        %1295 = vmatpush2.msra.mxu0 0.0
        %1296 = vmatprep.subr.mxu0 0.0
        %1297 = vmatpush2.msra.mxu0 0.0
        %1298 = vmatprep.subr.mxu0 0.0
        %1299 = vmatpush2.msra.mxu0 0.0
        %1300 = vmatprep.subr.mxu0 0.0
        %1301 = vmatpush2.msra.mxu0 0.0
        %1302 = vmatprep.subr.mxu0 0.0
        %1303 = vmatpush2.msra.mxu0 0.0
        %1304 = vmatprep.subr.mxu0 0.0
        %1305 = vmatpush2.msra.mxu0 0.0
        %1306 = vmatprep.subr.mxu0 0.0
        %1307 = vmatpush2.msra.mxu0 0.0
        %1308 = vmatprep.subr.mxu0 0.0
        %1309 = vmatpush2.msra.mxu0 0.0
        %1310 = vmatprep.subr.mxu0 0.0
        %1311 = vmatpush2.msra.mxu0 0.0
        %1312 = vmatprep.subr.mxu0 0.0
        %1313 = vmatpush2.msra.mxu0 0.0
        %1314 = vmatprep.subr.mxu0 0.0
        %1315 = vmatpush2.msra.mxu0 0.0
        %1316 = vmatprep.mubr.f32.mxu0 0.0
        %1317 = vmatmul.mubr.f32.gmra.mxu0 %v1244
        %v1318 = vpop.f32.mrf.mxu0
        %v1319 = vadd.f32 0.0, %v1318
        %v1320 = vpop.f32.mrf.mxu0
        %v1321 = vadd.f32 0.0, %v1320
        %1322 = vdwg.mxu0
        %1323 = vmatprep.subr.mxu0 0.0
        %1324 = vmatpush1.msra.mxu0 0.0
        %1325 = vmatprep.subr.mxu0 0.0
        %1326 = vmatpush1.msra.mxu0 0.0
        %1327 = vmatprep.subr.mxu0 0.0
        %1328 = vmatpush1.msra.mxu0 0.0
        %1329 = vmatprep.subr.mxu0 0.0
        %1330 = vmatpush1.msra.mxu0 0.0
        %1331 = vmatprep.subr.mxu0 0.0
        %1332 = vmatpush1.msra.mxu0 0.0
        %1333 = vmatprep.subr.mxu0 0.0
        %1334 = vmatpush1.msra.mxu0 0.0
        %1335 = vmatprep.subr.mxu0 0.0
        %1336 = vmatpush1.msra.mxu0 0.0
        %1337 = vmatprep.subr.mxu0 0.0
        %1338 = vmatpush1.msra.mxu0 0.0
        %1339 = vmatprep.subr.mxu0 0.0
        %1340 = vmatpush1.msra.mxu0 0.0
        %1341 = vmatprep.subr.mxu0 0.0
        %1342 = vmatpush1.msra.mxu0 0.0
        %1343 = vmatprep.subr.mxu0 0.0
        %1344 = vmatpush1.msra.mxu0 0.0
        %1345 = vmatprep.subr.mxu0 0.0
        %1346 = vmatpush1.msra.mxu0 0.0
        %1347 = vmatprep.subr.mxu0 0.0
        %1348 = vmatpush1.msra.mxu0 0.0
        %1349 = vmatprep.subr.mxu0 0.0
        %1350 = vmatpush1.msra.mxu0 0.0
        %1351 = vmatprep.subr.mxu0 0.0
        %1352 = vmatpush1.msra.mxu0 0.0
        %1353 = vmatprep.subr.mxu0 0.0
        %1354 = vmatpush1.msra.mxu0 %v1250
        %1355 = vmatprep.subr.mxu0 0.0
        %1356 = vmatpush2.msra.mxu0 0.0
        %1357 = vmatprep.subr.mxu0 0.0
        %1358 = vmatpush2.msra.mxu0 0.0
        %1359 = vmatprep.subr.mxu0 0.0
        %1360 = vmatpush2.msra.mxu0 0.0
        %1361 = vmatprep.subr.mxu0 0.0
        %1362 = vmatpush2.msra.mxu0 0.0
        %1363 = vmatprep.subr.mxu0 0.0
        %1364 = vmatpush2.msra.mxu0 0.0
        %1365 = vmatprep.subr.mxu0 0.0
        %1366 = vmatpush2.msra.mxu0 0.0
        %1367 = vmatprep.subr.mxu0 0.0
        %1368 = vmatpush2.msra.mxu0 0.0
        %1369 = vmatprep.subr.mxu0 0.0
        %1370 = vmatpush2.msra.mxu0 0.0
        %1371 = vmatprep.subr.mxu0 0.0
        %1372 = vmatpush2.msra.mxu0 0.0
        %1373 = vmatprep.subr.mxu0 0.0
        %1374 = vmatpush2.msra.mxu0 0.0
        %1375 = vmatprep.subr.mxu0 0.0
        %1376 = vmatpush2.msra.mxu0 0.0
        %1377 = vmatprep.subr.mxu0 0.0
        %1378 = vmatpush2.msra.mxu0 0.0
        %1379 = vmatprep.subr.mxu0 0.0
        %1380 = vmatpush2.msra.mxu0 0.0
        %1381 = vmatprep.subr.mxu0 0.0
        %1382 = vmatpush2.msra.mxu0 0.0
        %1383 = vmatprep.subr.mxu0 0.0
        %1384 = vmatpush2.msra.mxu0 0.0
        %1385 = vmatprep.subr.mxu0 0.0
        %1386 = vmatpush2.msra.mxu0 0.0
        %1387 = vmatprep.mubr.f32.mxu0 0.0
        %1388 = vmatmul.mubr.f32.gmra.mxu0 %v1244
        %v1389 = vpop.f32.mrf.mxu0
        %v1390 = vadd.f32 0.0, %v1389
        %v1391 = vpop.f32.mrf.mxu0
        %1392 = vdwg.mxu0
        %v1393 = vadd.f32 %v1224, %v1319
        %v1394 = vadd.f32 %v1225, %v1321
        %v1395 = vadd.f32 %v1226, %v1390
        %s1396 = scalar_lea.vmem %s1, 48
        %v1397 = vld [vmem:[%s1396] sm:$0xff]
        %v1398 = vld [vmem:[#allocation2] sm:$0xff]
        %v1399 = vld [vmem:[#allocation2 + $0x8] sm:$0xf]
        %v1402 = vcombine.high %v1398, %v1398
        %1403 = vrot.lane.b32.xlu0 %v1398, 92
        %v1404 = vpop.permute.xlu0 %1403
        %1405 = vrot.lane.b32.xlu0 %v1402, 92
        %v1406 = vpop.permute.xlu0 %1405
        %1407 = vrot.lane.b32.xlu0 %v1399, 92
        %v1408 = vpop.permute.xlu0 %1407
        %vm1409 = vcmask 752640
        %v1410 = vsel %vm1409, %v1404, %v1406
        %v1411 = vsel %vm1409, %v1406, %v1408
        %v1413 = vsel %vm418, %v1397, 0
        %v1415 = vsel %vm422, %v1410, 0
        %v1417 = vsel %vm422, %v1411, 0
        %v1419 = vsel %vm422, %v1408, 0
        %1421 = vmatprep.subr.mxu0 0.0
        %1422 = vmatpush1.msra.mxu0 0.0
        %1423 = vmatprep.subr.mxu0 0.0
        %1424 = vmatpush1.msra.mxu0 0.0
        %1425 = vmatprep.subr.mxu0 0.0
        %1426 = vmatpush1.msra.mxu0 0.0
        %1427 = vmatprep.subr.mxu0 0.0
        %1428 = vmatpush1.msra.mxu0 0.0
        %1429 = vmatprep.subr.mxu0 0.0
        %1430 = vmatpush1.msra.mxu0 0.0
        %1431 = vmatprep.subr.mxu0 0.0
        %1432 = vmatpush1.msra.mxu0 0.0
        %1433 = vmatprep.subr.mxu0 0.0
        %1434 = vmatpush1.msra.mxu0 0.0
        %1435 = vmatprep.subr.mxu0 0.0
        %1436 = vmatpush1.msra.mxu0 0.0
        %1437 = vmatprep.subr.mxu0 0.0
        %1438 = vmatpush1.msra.mxu0 0.0
        %1439 = vmatprep.subr.mxu0 0.0
        %1440 = vmatpush1.msra.mxu0 0.0
        %1441 = vmatprep.subr.mxu0 0.0
        %1442 = vmatpush1.msra.mxu0 0.0
        %1443 = vmatprep.subr.mxu0 0.0
        %1444 = vmatpush1.msra.mxu0 0.0
        %1445 = vmatprep.subr.mxu0 0.0
        %1446 = vmatpush1.msra.mxu0 0.0
        %1447 = vmatprep.subr.mxu0 0.0
        %1448 = vmatpush1.msra.mxu0 0.0
        %1449 = vmatprep.subr.mxu0 0.0
        %1450 = vmatpush1.msra.mxu0 0.0
        %1451 = vmatprep.subr.mxu0 %v1417
        %1452 = vmatpush1.msra.mxu0 %v1415
        %1453 = vmatprep.subr.mxu0 0.0
        %1454 = vmatpush2.msra.mxu0 0.0
        %1455 = vmatprep.subr.mxu0 0.0
        %1456 = vmatpush2.msra.mxu0 0.0
        %1457 = vmatprep.subr.mxu0 0.0
        %1458 = vmatpush2.msra.mxu0 0.0
        %1459 = vmatprep.subr.mxu0 0.0
        %1460 = vmatpush2.msra.mxu0 0.0
        %1461 = vmatprep.subr.mxu0 0.0
        %1462 = vmatpush2.msra.mxu0 0.0
        %1463 = vmatprep.subr.mxu0 0.0
        %1464 = vmatpush2.msra.mxu0 0.0
        %1465 = vmatprep.subr.mxu0 0.0
        %1466 = vmatpush2.msra.mxu0 0.0
        %1467 = vmatprep.subr.mxu0 0.0
        %1468 = vmatpush2.msra.mxu0 0.0
        %1469 = vmatprep.subr.mxu0 0.0
        %1470 = vmatpush2.msra.mxu0 0.0
        %1471 = vmatprep.subr.mxu0 0.0
        %1472 = vmatpush2.msra.mxu0 0.0
        %1473 = vmatprep.subr.mxu0 0.0
        %1474 = vmatpush2.msra.mxu0 0.0
        %1475 = vmatprep.subr.mxu0 0.0
        %1476 = vmatpush2.msra.mxu0 0.0
        %1477 = vmatprep.subr.mxu0 0.0
        %1478 = vmatpush2.msra.mxu0 0.0
        %1479 = vmatprep.subr.mxu0 0.0
        %1480 = vmatpush2.msra.mxu0 0.0
        %1481 = vmatprep.subr.mxu0 0.0
        %1482 = vmatpush2.msra.mxu0 0.0
        %1483 = vmatprep.subr.mxu0 0.0
        %1484 = vmatpush2.msra.mxu0 0.0
        %1485 = vmatprep.mubr.f32.mxu0 0.0
        %1486 = vmatmul.mubr.f32.gmra.mxu0 %v1413
        %v1487 = vpop.f32.mrf.mxu0
        %v1488 = vadd.f32 0.0, %v1487
        %v1489 = vpop.f32.mrf.mxu0
        %v1490 = vadd.f32 0.0, %v1489
        %1491 = vdwg.mxu0
        %1492 = vmatprep.subr.mxu0 0.0
        %1493 = vmatpush1.msra.mxu0 0.0
        %1494 = vmatprep.subr.mxu0 0.0
        %1495 = vmatpush1.msra.mxu0 0.0
        %1496 = vmatprep.subr.mxu0 0.0
        %1497 = vmatpush1.msra.mxu0 0.0
        %1498 = vmatprep.subr.mxu0 0.0
        %1499 = vmatpush1.msra.mxu0 0.0
        %1500 = vmatprep.subr.mxu0 0.0
        %1501 = vmatpush1.msra.mxu0 0.0
        %1502 = vmatprep.subr.mxu0 0.0
        %1503 = vmatpush1.msra.mxu0 0.0
        %1504 = vmatprep.subr.mxu0 0.0
        %1505 = vmatpush1.msra.mxu0 0.0
        %1506 = vmatprep.subr.mxu0 0.0
        %1507 = vmatpush1.msra.mxu0 0.0
        %1508 = vmatprep.subr.mxu0 0.0
        %1509 = vmatpush1.msra.mxu0 0.0
        %1510 = vmatprep.subr.mxu0 0.0
        %1511 = vmatpush1.msra.mxu0 0.0
        %1512 = vmatprep.subr.mxu0 0.0
        %1513 = vmatpush1.msra.mxu0 0.0
        %1514 = vmatprep.subr.mxu0 0.0
        %1515 = vmatpush1.msra.mxu0 0.0
        %1516 = vmatprep.subr.mxu0 0.0
        %1517 = vmatpush1.msra.mxu0 0.0
        %1518 = vmatprep.subr.mxu0 0.0
        %1519 = vmatpush1.msra.mxu0 0.0
        %1520 = vmatprep.subr.mxu0 0.0
        %1521 = vmatpush1.msra.mxu0 0.0
        %1522 = vmatprep.subr.mxu0 0.0
        %1523 = vmatpush1.msra.mxu0 %v1419
        %1524 = vmatprep.subr.mxu0 0.0
        %1525 = vmatpush2.msra.mxu0 0.0
        %1526 = vmatprep.subr.mxu0 0.0
        %1527 = vmatpush2.msra.mxu0 0.0
        %1528 = vmatprep.subr.mxu0 0.0
        %1529 = vmatpush2.msra.mxu0 0.0
        %1530 = vmatprep.subr.mxu0 0.0
        %1531 = vmatpush2.msra.mxu0 0.0
        %1532 = vmatprep.subr.mxu0 0.0
        %1533 = vmatpush2.msra.mxu0 0.0
        %1534 = vmatprep.subr.mxu0 0.0
        %1535 = vmatpush2.msra.mxu0 0.0
        %1536 = vmatprep.subr.mxu0 0.0
        %1537 = vmatpush2.msra.mxu0 0.0
        %1538 = vmatprep.subr.mxu0 0.0
        %1539 = vmatpush2.msra.mxu0 0.0
        %1540 = vmatprep.subr.mxu0 0.0
        %1541 = vmatpush2.msra.mxu0 0.0
        %1542 = vmatprep.subr.mxu0 0.0
        %1543 = vmatpush2.msra.mxu0 0.0
        %1544 = vmatprep.subr.mxu0 0.0
        %1545 = vmatpush2.msra.mxu0 0.0
        %1546 = vmatprep.subr.mxu0 0.0
        %1547 = vmatpush2.msra.mxu0 0.0
        %1548 = vmatprep.subr.mxu0 0.0
        %1549 = vmatpush2.msra.mxu0 0.0
        %1550 = vmatprep.subr.mxu0 0.0
        %1551 = vmatpush2.msra.mxu0 0.0
        %1552 = vmatprep.subr.mxu0 0.0
        %1553 = vmatpush2.msra.mxu0 0.0
        %1554 = vmatprep.subr.mxu0 0.0
        %1555 = vmatpush2.msra.mxu0 0.0
        %1556 = vmatprep.mubr.f32.mxu0 0.0
        %1557 = vmatmul.mubr.f32.gmra.mxu0 %v1413
        %v1558 = vpop.f32.mrf.mxu0
        %v1559 = vadd.f32 0.0, %v1558
        %v1560 = vpop.f32.mrf.mxu0
        %1561 = vdwg.mxu0
        %v1562 = vadd.f32 %v1393, %v1488
        %v1563 = vadd.f32 %v1394, %v1490
        %v1564 = vadd.f32 %v1395, %v1559
        %s1565 = scalar_lea.vmem %s1, 56
        %v1566 = vld [vmem:[%s1565] sm:$0xff]
        %v1567 = vld [vmem:[#allocation2] sm:$0xff]
        %v1568 = vld [vmem:[#allocation2 + $0x8] sm:$0xf]
        %v1571 = vcombine.high %v1567, %v1567
        %1572 = vrot.lane.b32.xlu0 %v1567, 91
        %v1573 = vpop.permute.xlu0 %1572
        %1574 = vrot.lane.b32.xlu0 %v1571, 91
        %v1575 = vpop.permute.xlu0 %1574
        %1576 = vrot.lane.b32.xlu0 %v1568, 91
        %v1577 = vpop.permute.xlu0 %1576
        %vm1578 = vcmask 744448
        %v1579 = vsel %vm1578, %v1573, %v1575
        %v1580 = vsel %vm1578, %v1575, %v1577
        %v1582 = vsel %vm418, %v1566, 0
        %v1584 = vsel %vm422, %v1579, 0
        %v1586 = vsel %vm422, %v1580, 0
        %v1588 = vsel %vm422, %v1577, 0
        %1590 = vmatprep.subr.mxu0 0.0
        %1591 = vmatpush1.msra.mxu0 0.0
        %1592 = vmatprep.subr.mxu0 0.0
        %1593 = vmatpush1.msra.mxu0 0.0
        %1594 = vmatprep.subr.mxu0 0.0
        %1595 = vmatpush1.msra.mxu0 0.0
        %1596 = vmatprep.subr.mxu0 0.0
        %1597 = vmatpush1.msra.mxu0 0.0
        %1598 = vmatprep.subr.mxu0 0.0
        %1599 = vmatpush1.msra.mxu0 0.0
        %1600 = vmatprep.subr.mxu0 0.0
        %1601 = vmatpush1.msra.mxu0 0.0
        %1602 = vmatprep.subr.mxu0 0.0
        %1603 = vmatpush1.msra.mxu0 0.0
        %1604 = vmatprep.subr.mxu0 0.0
        %1605 = vmatpush1.msra.mxu0 0.0
        %1606 = vmatprep.subr.mxu0 0.0
        %1607 = vmatpush1.msra.mxu0 0.0
        %1608 = vmatprep.subr.mxu0 0.0
        %1609 = vmatpush1.msra.mxu0 0.0
        %1610 = vmatprep.subr.mxu0 0.0
        %1611 = vmatpush1.msra.mxu0 0.0
        %1612 = vmatprep.subr.mxu0 0.0
        %1613 = vmatpush1.msra.mxu0 0.0
        %1614 = vmatprep.subr.mxu0 0.0
        %1615 = vmatpush1.msra.mxu0 0.0
        %1616 = vmatprep.subr.mxu0 0.0
        %1617 = vmatpush1.msra.mxu0 0.0
        %1618 = vmatprep.subr.mxu0 0.0
        %1619 = vmatpush1.msra.mxu0 0.0
        %1620 = vmatprep.subr.mxu0 %v1586
        %1621 = vmatpush1.msra.mxu0 %v1584
        %1622 = vmatprep.subr.mxu0 0.0
        %1623 = vmatpush2.msra.mxu0 0.0
        %1624 = vmatprep.subr.mxu0 0.0
        %1625 = vmatpush2.msra.mxu0 0.0
        %1626 = vmatprep.subr.mxu0 0.0
        %1627 = vmatpush2.msra.mxu0 0.0
        %1628 = vmatprep.subr.mxu0 0.0
        %1629 = vmatpush2.msra.mxu0 0.0
        %1630 = vmatprep.subr.mxu0 0.0
        %1631 = vmatpush2.msra.mxu0 0.0
        %1632 = vmatprep.subr.mxu0 0.0
        %1633 = vmatpush2.msra.mxu0 0.0
        %1634 = vmatprep.subr.mxu0 0.0
        %1635 = vmatpush2.msra.mxu0 0.0
        %1636 = vmatprep.subr.mxu0 0.0
        %1637 = vmatpush2.msra.mxu0 0.0
        %1638 = vmatprep.subr.mxu0 0.0
        %1639 = vmatpush2.msra.mxu0 0.0
        %1640 = vmatprep.subr.mxu0 0.0
        %1641 = vmatpush2.msra.mxu0 0.0
        %1642 = vmatprep.subr.mxu0 0.0
        %1643 = vmatpush2.msra.mxu0 0.0
        %1644 = vmatprep.subr.mxu0 0.0
        %1645 = vmatpush2.msra.mxu0 0.0
        %1646 = vmatprep.subr.mxu0 0.0
        %1647 = vmatpush2.msra.mxu0 0.0
        %1648 = vmatprep.subr.mxu0 0.0
        %1649 = vmatpush2.msra.mxu0 0.0
        %1650 = vmatprep.subr.mxu0 0.0
        %1651 = vmatpush2.msra.mxu0 0.0
        %1652 = vmatprep.subr.mxu0 0.0
        %1653 = vmatpush2.msra.mxu0 0.0
        %1654 = vmatprep.mubr.f32.mxu0 0.0
        %1655 = vmatmul.mubr.f32.gmra.mxu0 %v1582
        %v1656 = vpop.f32.mrf.mxu0
        %v1657 = vadd.f32 0.0, %v1656
        %v1658 = vpop.f32.mrf.mxu0
        %v1659 = vadd.f32 0.0, %v1658
        %1660 = vdwg.mxu0
        %1661 = vmatprep.subr.mxu0 0.0
        %1662 = vmatpush1.msra.mxu0 0.0
        %1663 = vmatprep.subr.mxu0 0.0
        %1664 = vmatpush1.msra.mxu0 0.0
        %1665 = vmatprep.subr.mxu0 0.0
        %1666 = vmatpush1.msra.mxu0 0.0
        %1667 = vmatprep.subr.mxu0 0.0
        %1668 = vmatpush1.msra.mxu0 0.0
        %1669 = vmatprep.subr.mxu0 0.0
        %1670 = vmatpush1.msra.mxu0 0.0
        %1671 = vmatprep.subr.mxu0 0.0
        %1672 = vmatpush1.msra.mxu0 0.0
        %1673 = vmatprep.subr.mxu0 0.0
        %1674 = vmatpush1.msra.mxu0 0.0
        %1675 = vmatprep.subr.mxu0 0.0
        %1676 = vmatpush1.msra.mxu0 0.0
        %1677 = vmatprep.subr.mxu0 0.0
        %1678 = vmatpush1.msra.mxu0 0.0
        %1679 = vmatprep.subr.mxu0 0.0
        %1680 = vmatpush1.msra.mxu0 0.0
        %1681 = vmatprep.subr.mxu0 0.0
        %1682 = vmatpush1.msra.mxu0 0.0
        %1683 = vmatprep.subr.mxu0 0.0
        %1684 = vmatpush1.msra.mxu0 0.0
        %1685 = vmatprep.subr.mxu0 0.0
        %1686 = vmatpush1.msra.mxu0 0.0
        %1687 = vmatprep.subr.mxu0 0.0
        %1688 = vmatpush1.msra.mxu0 0.0
        %1689 = vmatprep.subr.mxu0 0.0
        %1690 = vmatpush1.msra.mxu0 0.0
        %1691 = vmatprep.subr.mxu0 0.0
        %1692 = vmatpush1.msra.mxu0 %v1588
        %1693 = vmatprep.subr.mxu0 0.0
        %1694 = vmatpush2.msra.mxu0 0.0
        %1695 = vmatprep.subr.mxu0 0.0
        %1696 = vmatpush2.msra.mxu0 0.0
        %1697 = vmatprep.subr.mxu0 0.0
        %1698 = vmatpush2.msra.mxu0 0.0
        %1699 = vmatprep.subr.mxu0 0.0
        %1700 = vmatpush2.msra.mxu0 0.0
        %1701 = vmatprep.subr.mxu0 0.0
        %1702 = vmatpush2.msra.mxu0 0.0
        %1703 = vmatprep.subr.mxu0 0.0
        %1704 = vmatpush2.msra.mxu0 0.0
        %1705 = vmatprep.subr.mxu0 0.0
        %1706 = vmatpush2.msra.mxu0 0.0
        %1707 = vmatprep.subr.mxu0 0.0
        %1708 = vmatpush2.msra.mxu0 0.0
        %1709 = vmatprep.subr.mxu0 0.0
        %1710 = vmatpush2.msra.mxu0 0.0
        %1711 = vmatprep.subr.mxu0 0.0
        %1712 = vmatpush2.msra.mxu0 0.0
        %1713 = vmatprep.subr.mxu0 0.0
        %1714 = vmatpush2.msra.mxu0 0.0
        %1715 = vmatprep.subr.mxu0 0.0
        %1716 = vmatpush2.msra.mxu0 0.0
        %1717 = vmatprep.subr.mxu0 0.0
        %1718 = vmatpush2.msra.mxu0 0.0
        %1719 = vmatprep.subr.mxu0 0.0
        %1720 = vmatpush2.msra.mxu0 0.0
        %1721 = vmatprep.subr.mxu0 0.0
        %1722 = vmatpush2.msra.mxu0 0.0
        %1723 = vmatprep.subr.mxu0 0.0
        %1724 = vmatpush2.msra.mxu0 0.0
        %1725 = vmatprep.mubr.f32.mxu0 0.0
        %1726 = vmatmul.mubr.f32.gmra.mxu0 %v1582
        %v1727 = vpop.f32.mrf.mxu0
        %v1728 = vadd.f32 0.0, %v1727
        %v1729 = vpop.f32.mrf.mxu0
        %1730 = vdwg.mxu0
        %v1731 = vadd.f32 %v1562, %v1657
        %v1732 = vadd.f32 %v1563, %v1659
        %v1733 = vadd.f32 %v1564, %v1728
        %s1734 = scalar_lea.vmem %s1, 64
        %v1735 = vld [vmem:[%s1734] sm:$0xff]
        %v1736 = vld [vmem:[#allocation2] sm:$0xff]
        %v1737 = vld [vmem:[#allocation2 + $0x8] sm:$0xf]
        %v1740 = vcombine.high %v1736, %v1736
        %1741 = vrot.lane.b32.xlu0 %v1736, 90
        %v1742 = vpop.permute.xlu0 %1741
        %1743 = vrot.lane.b32.xlu0 %v1740, 90
        %v1744 = vpop.permute.xlu0 %1743
        %1745 = vrot.lane.b32.xlu0 %v1737, 90
        %v1746 = vpop.permute.xlu0 %1745
        %vm1747 = vcmask 736256
        %v1748 = vsel %vm1747, %v1742, %v1744
        %v1749 = vsel %vm1747, %v1744, %v1746
        %v1751 = vsel %vm418, %v1735, 0
        %v1753 = vsel %vm422, %v1748, 0
        %v1755 = vsel %vm422, %v1749, 0
        %v1757 = vsel %vm422, %v1746, 0
        %1759 = vmatprep.subr.mxu0 0.0
        %1760 = vmatpush1.msra.mxu0 0.0
        %1761 = vmatprep.subr.mxu0 0.0
        %1762 = vmatpush1.msra.mxu0 0.0
        %1763 = vmatprep.subr.mxu0 0.0
        %1764 = vmatpush1.msra.mxu0 0.0
        %1765 = vmatprep.subr.mxu0 0.0
        %1766 = vmatpush1.msra.mxu0 0.0
        %1767 = vmatprep.subr.mxu0 0.0
        %1768 = vmatpush1.msra.mxu0 0.0
        %1769 = vmatprep.subr.mxu0 0.0
        %1770 = vmatpush1.msra.mxu0 0.0
        %1771 = vmatprep.subr.mxu0 0.0
        %1772 = vmatpush1.msra.mxu0 0.0
        %1773 = vmatprep.subr.mxu0 0.0
        %1774 = vmatpush1.msra.mxu0 0.0
        %1775 = vmatprep.subr.mxu0 0.0
        %1776 = vmatpush1.msra.mxu0 0.0
        %1777 = vmatprep.subr.mxu0 0.0
        %1778 = vmatpush1.msra.mxu0 0.0
        %1779 = vmatprep.subr.mxu0 0.0
        %1780 = vmatpush1.msra.mxu0 0.0
        %1781 = vmatprep.subr.mxu0 0.0
        %1782 = vmatpush1.msra.mxu0 0.0
        %1783 = vmatprep.subr.mxu0 0.0
        %1784 = vmatpush1.msra.mxu0 0.0
        %1785 = vmatprep.subr.mxu0 0.0
        %1786 = vmatpush1.msra.mxu0 0.0
        %1787 = vmatprep.subr.mxu0 0.0
        %1788 = vmatpush1.msra.mxu0 0.0
        %1789 = vmatprep.subr.mxu0 %v1755
        %1790 = vmatpush1.msra.mxu0 %v1753
        %1791 = vmatprep.subr.mxu0 0.0
        %1792 = vmatpush2.msra.mxu0 0.0
        %1793 = vmatprep.subr.mxu0 0.0
        %1794 = vmatpush2.msra.mxu0 0.0
        %1795 = vmatprep.subr.mxu0 0.0
        %1796 = vmatpush2.msra.mxu0 0.0
        %1797 = vmatprep.subr.mxu0 0.0
        %1798 = vmatpush2.msra.mxu0 0.0
        %1799 = vmatprep.subr.mxu0 0.0
        %1800 = vmatpush2.msra.mxu0 0.0
        %1801 = vmatprep.subr.mxu0 0.0
        %1802 = vmatpush2.msra.mxu0 0.0
        %1803 = vmatprep.subr.mxu0 0.0
        %1804 = vmatpush2.msra.mxu0 0.0
        %1805 = vmatprep.subr.mxu0 0.0
        %1806 = vmatpush2.msra.mxu0 0.0
        %1807 = vmatprep.subr.mxu0 0.0
        %1808 = vmatpush2.msra.mxu0 0.0
        %1809 = vmatprep.subr.mxu0 0.0
        %1810 = vmatpush2.msra.mxu0 0.0
        %1811 = vmatprep.subr.mxu0 0.0
        %1812 = vmatpush2.msra.mxu0 0.0
        %1813 = vmatprep.subr.mxu0 0.0
        %1814 = vmatpush2.msra.mxu0 0.0
        %1815 = vmatprep.subr.mxu0 0.0
        %1816 = vmatpush2.msra.mxu0 0.0
        %1817 = vmatprep.subr.mxu0 0.0
        %1818 = vmatpush2.msra.mxu0 0.0
        %1819 = vmatprep.subr.mxu0 0.0
        %1820 = vmatpush2.msra.mxu0 0.0
        %1821 = vmatprep.subr.mxu0 0.0
        %1822 = vmatpush2.msra.mxu0 0.0
        %1823 = vmatprep.mubr.f32.mxu0 0.0
        %1824 = vmatmul.mubr.f32.gmra.mxu0 %v1751
        %v1825 = vpop.f32.mrf.mxu0
        %v1826 = vadd.f32 0.0, %v1825
        %v1827 = vpop.f32.mrf.mxu0
        %v1828 = vadd.f32 0.0, %v1827
        %1829 = vdwg.mxu0
        %1830 = vmatprep.subr.mxu0 0.0
        %1831 = vmatpush1.msra.mxu0 0.0
        %1832 = vmatprep.subr.mxu0 0.0
        %1833 = vmatpush1.msra.mxu0 0.0
        %1834 = vmatprep.subr.mxu0 0.0
        %1835 = vmatpush1.msra.mxu0 0.0
        %1836 = vmatprep.subr.mxu0 0.0
        %1837 = vmatpush1.msra.mxu0 0.0
        %1838 = vmatprep.subr.mxu0 0.0
        %1839 = vmatpush1.msra.mxu0 0.0
        %1840 = vmatprep.subr.mxu0 0.0
        %1841 = vmatpush1.msra.mxu0 0.0
        %1842 = vmatprep.subr.mxu0 0.0
        %1843 = vmatpush1.msra.mxu0 0.0
        %1844 = vmatprep.subr.mxu0 0.0
        %1845 = vmatpush1.msra.mxu0 0.0
        %1846 = vmatprep.subr.mxu0 0.0
        %1847 = vmatpush1.msra.mxu0 0.0
        %1848 = vmatprep.subr.mxu0 0.0
        %1849 = vmatpush1.msra.mxu0 0.0
        %1850 = vmatprep.subr.mxu0 0.0
        %1851 = vmatpush1.msra.mxu0 0.0
        %1852 = vmatprep.subr.mxu0 0.0
        %1853 = vmatpush1.msra.mxu0 0.0
        %1854 = vmatprep.subr.mxu0 0.0
        %1855 = vmatpush1.msra.mxu0 0.0
        %1856 = vmatprep.subr.mxu0 0.0
        %1857 = vmatpush1.msra.mxu0 0.0
        %1858 = vmatprep.subr.mxu0 0.0
        %1859 = vmatpush1.msra.mxu0 0.0
        %1860 = vmatprep.subr.mxu0 0.0
        %1861 = vmatpush1.msra.mxu0 %v1757
        %1862 = vmatprep.subr.mxu0 0.0
        %1863 = vmatpush2.msra.mxu0 0.0
        %1864 = vmatprep.subr.mxu0 0.0
        %1865 = vmatpush2.msra.mxu0 0.0
        %1866 = vmatprep.subr.mxu0 0.0
        %1867 = vmatpush2.msra.mxu0 0.0
        %1868 = vmatprep.subr.mxu0 0.0
        %1869 = vmatpush2.msra.mxu0 0.0
        %1870 = vmatprep.subr.mxu0 0.0
        %1871 = vmatpush2.msra.mxu0 0.0
        %1872 = vmatprep.subr.mxu0 0.0
        %1873 = vmatpush2.msra.mxu0 0.0
        %1874 = vmatprep.subr.mxu0 0.0
        %1875 = vmatpush2.msra.mxu0 0.0
        %1876 = vmatprep.subr.mxu0 0.0
        %1877 = vmatpush2.msra.mxu0 0.0
        %1878 = vmatprep.subr.mxu0 0.0
        %1879 = vmatpush2.msra.mxu0 0.0
        %1880 = vmatprep.subr.mxu0 0.0
        %1881 = vmatpush2.msra.mxu0 0.0
        %1882 = vmatprep.subr.mxu0 0.0
        %1883 = vmatpush2.msra.mxu0 0.0
        %1884 = vmatprep.subr.mxu0 0.0
        %1885 = vmatpush2.msra.mxu0 0.0
        %1886 = vmatprep.subr.mxu0 0.0
        %1887 = vmatpush2.msra.mxu0 0.0
        %1888 = vmatprep.subr.mxu0 0.0
        %1889 = vmatpush2.msra.mxu0 0.0
        %1890 = vmatprep.subr.mxu0 0.0
        %1891 = vmatpush2.msra.mxu0 0.0
        %1892 = vmatprep.subr.mxu0 0.0
        %1893 = vmatpush2.msra.mxu0 0.0
        %1894 = vmatprep.mubr.f32.mxu0 0.0
        %1895 = vmatmul.mubr.f32.gmra.mxu0 %v1751
        %v1896 = vpop.f32.mrf.mxu0
        %v1897 = vadd.f32 0.0, %v1896
        %v1898 = vpop.f32.mrf.mxu0
        %1899 = vdwg.mxu0
        %v1900 = vadd.f32 %v1731, %v1826
        %v1901 = vadd.f32 %v1732, %v1828
        %v1902 = vadd.f32 %v1733, %v1897
        %v1903 = vld [vmem:[%s2] sm:$0xff]
        %1905 = vset.pattern.permute.xlu0 0
        %1906 = vperm.xlu0 %1905, %v1903
        %v1907 = vpop.permute.xlu0 %1906
        %v1909 = vadd.f32 %v1900, %v1907
        %v1910 = vadd.f32 %v1901, %v1907
        %v1911 = vadd.f32 %v1902, %v1907
        %v1912 = vxor.u32 %v1909, 2147483648
        %v1913 = vxor.u32 %v1910, 2147483648
        %v1914 = vxor.u32 %v1911, 2147483648
        %v1915 = vmul.f32 %v1912, 1.442695
        %v1916 = vpow.pop %v1915
        %v1917 = vmul.f32 %v1913, 1.442695
        %v1918 = vpow.pop %v1917
        %v1919 = vmul.f32 %v1914, 1.442695
        %v1920 = vpow.pop %v1919
        %v1921 = vadd.f32 %v1916, 1.0
        %v1922 = vadd.f32 %v1918, 1.0
        %v1923 = vadd.f32 %v1920, 1.0
        %v1924 = vrcp.pop %v1921
        %v1925 = vmul.f32 1.0, %v1924
        %v1926 = vrcp.pop %v1922
        %v1927 = vmul.f32 1.0, %v1926
        %v1928 = vrcp.pop %v1923
        %v1929 = vmul.f32 1.0, %v1928
        %v1930 = vmul.f32 %v1909, %v1925
        %v1931 = vmul.f32 %v1910, %v1927
        %v1932 = vmul.f32 %v1911, %v1929
        %v1933 = vld [vmem:[%s5] sm:$0x7]
        %v1935 = vlaneseq
        %v1936 = vshrl.u32 %v1935, 7
        %v1937 = vsub.s32 0, %v1936
        %v1938 = vrot.slane %v1933, %v1937
        %v1939 = vlaneseq
        %v1940 = vshrl.u32 %v1939, 7
        %v1941 = vsub.s32 1, %v1940
        %v1942 = vrot.slane %v1933, %v1941
        %v1943 = vlaneseq
        %v1944 = vshrl.u32 %v1943, 7
        %v1945 = vsub.s32 2, %v1944
        %v1946 = vrot.slane %v1933, %v1945
        %v1950 = vmul.f32 %v1930, %v1938
        %v1951 = vmul.f32 %v1931, %v1942
        %v1952 = vmul.f32 %v1932, %v1946
        %vm1953 = vcmask 154624
        %1954 = vst.msk [vmem:[#allocation3] sm:$0xff] %vm1953, 0.0
        %vm1955 = vcmask 1047960
        %1956 = vst.msk [vmem:[#allocation3 + $0x10] sm:$0xff] %vm1955, 0.0
        %1957 = vst [vmem:[#allocation3 + $0x18] sm:$0xff] 0.0
        %1961 = vrot.lane.b32.xlu0 %v1950, 19
        %v1962 = vpop.permute.xlu0 %1961
        %1963 = vrot.lane.b32.xlu0 %v1951, 19
        %v1964 = vpop.permute.xlu0 %1963
        %1965 = vrot.lane.b32.xlu0 %v1952, 19
        %v1966 = vpop.permute.xlu0 %1965
        %v1967 = vsel %vm1953, %v1962, %v1964
        %v1968 = vsel %vm1953, %v1964, %v1966
        %vm1972 = vcmask 1047704
        %1973 = vst.msk [vmem:[#allocation3] sm:$0xff] %vm1972, %v1962
        %1974 = vst [vmem:[#allocation3 + $0x8] sm:$0xff] %v1967
        %vm1975 = vcmask 416768
        %1976 = vst.msk [vmem:[#allocation3 + $0x10] sm:$0xff] %vm1975, %v1968
        %v1977 = vld [vmem:[%s3] sm:$0xff]
        %v1978 = vld [vmem:[#allocation3] sm:$0xff]
        %v1979 = vld [vmem:[#allocation3 + $0x8] sm:$0xff]
        %v1980 = vld [vmem:[#allocation3 + $0x10] sm:$0xff]
        %v1981 = vld [vmem:[#allocation3 + $0x18] sm:$0xff]
        %s1982 = scalar_lea.vmem %s3, 8
        %v1983 = vld [vmem:[%s1982] sm:$0xff]
        %1988 = vrot.lane.b32.xlu0 %v1978, 127
        %v1989 = vpop.permute.xlu0 %1988
        %1990 = vrot.lane.b32.xlu0 %v1979, 127
        %v1991 = vpop.permute.xlu0 %1990
        %1992 = vrot.lane.b32.xlu0 %v1980, 127
        %v1993 = vpop.permute.xlu0 %1992
        %1994 = vrot.lane.b32.xlu0 %v1981, 127
        %v1995 = vpop.permute.xlu0 %1994
        %v1996 = vsel %vm415, %v1989, %v1991
        %v1997 = vsel %vm415, %v1991, %v1993
        %v1998 = vsel %vm415, %v1993, %v1995
        %vm2003 = vcmask 64512
        %v2005 = vsel %vm2003, %v1983, 0
        %2007 = vmatprep.subr.mxu0 0.0
        %2008 = vmatpush1.msra.mxu0 0.0
        %2009 = vmatprep.subr.mxu0 0.0
        %2010 = vmatpush1.msra.mxu0 0.0
        %2011 = vmatprep.subr.mxu0 0.0
        %2012 = vmatpush1.msra.mxu0 0.0
        %2013 = vmatprep.subr.mxu0 0.0
        %2014 = vmatpush1.msra.mxu0 0.0
        %2015 = vmatprep.subr.mxu0 0.0
        %2016 = vmatpush1.msra.mxu0 0.0
        %2017 = vmatprep.subr.mxu0 0.0
        %2018 = vmatpush1.msra.mxu0 0.0
        %2019 = vmatprep.subr.mxu0 0.0
        %2020 = vmatpush1.msra.mxu0 0.0
        %2021 = vmatprep.subr.mxu0 0.0
        %2022 = vmatpush1.msra.mxu0 0.0
        %2023 = vmatprep.subr.mxu0 0.0
        %2024 = vmatpush1.msra.mxu0 0.0
        %2025 = vmatprep.subr.mxu0 0.0
        %2026 = vmatpush1.msra.mxu0 0.0
        %2027 = vmatprep.subr.mxu0 0.0
        %2028 = vmatpush1.msra.mxu0 0.0
        %2029 = vmatprep.subr.mxu0 0.0
        %2030 = vmatpush1.msra.mxu0 0.0
        %2031 = vmatprep.subr.mxu0 0.0
        %2032 = vmatpush1.msra.mxu0 0.0
        %2033 = vmatprep.subr.mxu0 0.0
        %2034 = vmatpush1.msra.mxu0 0.0
        %2035 = vmatprep.subr.mxu0 0.0
        %2036 = vmatpush1.msra.mxu0 0.0
        %2037 = vmatprep.subr.mxu0 %v1997
        %2038 = vmatpush1.msra.mxu0 %v1996
        %2039 = vmatprep.subr.mxu0 0.0
        %2040 = vmatpush2.msra.mxu0 0.0
        %2041 = vmatprep.subr.mxu0 0.0
        %2042 = vmatpush2.msra.mxu0 0.0
        %2043 = vmatprep.subr.mxu0 0.0
        %2044 = vmatpush2.msra.mxu0 0.0
        %2045 = vmatprep.subr.mxu0 0.0
        %2046 = vmatpush2.msra.mxu0 0.0
        %2047 = vmatprep.subr.mxu0 0.0
        %2048 = vmatpush2.msra.mxu0 0.0
        %2049 = vmatprep.subr.mxu0 0.0
        %2050 = vmatpush2.msra.mxu0 0.0
        %2051 = vmatprep.subr.mxu0 0.0
        %2052 = vmatpush2.msra.mxu0 0.0
        %2053 = vmatprep.subr.mxu0 0.0
        %2054 = vmatpush2.msra.mxu0 0.0
        %2055 = vmatprep.subr.mxu0 0.0
        %2056 = vmatpush2.msra.mxu0 0.0
        %2057 = vmatprep.subr.mxu0 0.0
        %2058 = vmatpush2.msra.mxu0 0.0
        %2059 = vmatprep.subr.mxu0 0.0
        %2060 = vmatpush2.msra.mxu0 0.0
        %2061 = vmatprep.subr.mxu0 0.0
        %2062 = vmatpush2.msra.mxu0 0.0
        %2063 = vmatprep.subr.mxu0 0.0
        %2064 = vmatpush2.msra.mxu0 0.0
        %2065 = vmatprep.subr.mxu0 0.0
        %2066 = vmatpush2.msra.mxu0 0.0
        %2067 = vmatprep.subr.mxu0 0.0
        %2068 = vmatpush2.msra.mxu0 0.0
        %2069 = vmatprep.subr.mxu0 0.0
        %2070 = vmatpush2.msra.mxu0 0.0
        %2071 = vmatprep.mubr.f32.mxu0 0.0
        %2072 = vmatmul.mubr.f32.gmra.mxu0 %v2005
        %v2073 = vpop.f32.mrf.mxu0
        %v2074 = vadd.f32 0.0, %v2073
        %v2075 = vpop.f32.mrf.mxu0
        %v2076 = vadd.f32 0.0, %v2075
        %2077 = vdwg.mxu0
        %2078 = vmatprep.subr.mxu0 0.0
        %2079 = vmatpush1.msra.mxu0 0.0
        %2080 = vmatprep.subr.mxu0 0.0
        %2081 = vmatpush1.msra.mxu0 0.0
        %2082 = vmatprep.subr.mxu0 0.0
        %2083 = vmatpush1.msra.mxu0 0.0
        %2084 = vmatprep.subr.mxu0 0.0
        %2085 = vmatpush1.msra.mxu0 0.0
        %2086 = vmatprep.subr.mxu0 0.0
        %2087 = vmatpush1.msra.mxu0 0.0
        %2088 = vmatprep.subr.mxu0 0.0
        %2089 = vmatpush1.msra.mxu0 0.0
        %2090 = vmatprep.subr.mxu0 0.0
        %2091 = vmatpush1.msra.mxu0 0.0
        %2092 = vmatprep.subr.mxu0 0.0
        %2093 = vmatpush1.msra.mxu0 0.0
        %2094 = vmatprep.subr.mxu0 0.0
        %2095 = vmatpush1.msra.mxu0 0.0
        %2096 = vmatprep.subr.mxu0 0.0
        %2097 = vmatpush1.msra.mxu0 0.0
        %2098 = vmatprep.subr.mxu0 0.0
        %2099 = vmatpush1.msra.mxu0 0.0
        %2100 = vmatprep.subr.mxu0 0.0
        %2101 = vmatpush1.msra.mxu0 0.0
        %2102 = vmatprep.subr.mxu0 0.0
        %2103 = vmatpush1.msra.mxu0 0.0
        %2104 = vmatprep.subr.mxu0 0.0
        %2105 = vmatpush1.msra.mxu0 0.0
        %2106 = vmatprep.subr.mxu0 0.0
        %2107 = vmatpush1.msra.mxu0 0.0
        %2108 = vmatprep.subr.mxu0 %v1995
        %2109 = vmatpush1.msra.mxu0 %v1998
        %2110 = vmatprep.subr.mxu0 0.0
        %2111 = vmatpush2.msra.mxu0 0.0
        %2112 = vmatprep.subr.mxu0 0.0
        %2113 = vmatpush2.msra.mxu0 0.0
        %2114 = vmatprep.subr.mxu0 0.0
        %2115 = vmatpush2.msra.mxu0 0.0
        %2116 = vmatprep.subr.mxu0 0.0
        %2117 = vmatpush2.msra.mxu0 0.0
        %2118 = vmatprep.subr.mxu0 0.0
        %2119 = vmatpush2.msra.mxu0 0.0
        %2120 = vmatprep.subr.mxu0 0.0
        %2121 = vmatpush2.msra.mxu0 0.0
        %2122 = vmatprep.subr.mxu0 0.0
        %2123 = vmatpush2.msra.mxu0 0.0
        %2124 = vmatprep.subr.mxu0 0.0
        %2125 = vmatpush2.msra.mxu0 0.0
        %2126 = vmatprep.subr.mxu0 0.0
        %2127 = vmatpush2.msra.mxu0 0.0
        %2128 = vmatprep.subr.mxu0 0.0
        %2129 = vmatpush2.msra.mxu0 0.0
        %2130 = vmatprep.subr.mxu0 0.0
        %2131 = vmatpush2.msra.mxu0 0.0
        %2132 = vmatprep.subr.mxu0 0.0
        %2133 = vmatpush2.msra.mxu0 0.0
        %2134 = vmatprep.subr.mxu0 0.0
        %2135 = vmatpush2.msra.mxu0 0.0
        %2136 = vmatprep.subr.mxu0 0.0
        %2137 = vmatpush2.msra.mxu0 0.0
        %2138 = vmatprep.subr.mxu0 0.0
        %2139 = vmatpush2.msra.mxu0 0.0
        %2140 = vmatprep.subr.mxu0 0.0
        %2141 = vmatpush2.msra.mxu0 0.0
        %2142 = vmatprep.mubr.f32.mxu0 0.0
        %2143 = vmatmul.mubr.f32.gmra.mxu0 %v2005
        %v2144 = vpop.f32.mrf.mxu0
        %v2145 = vadd.f32 0.0, %v2144
        %v2146 = vpop.f32.mrf.mxu0
        %v2147 = vadd.f32 0.0, %v2146
        %2148 = vdwg.mxu0
        %v2150 = vsel %vm2003, %v1977, 0
        %2152 = vmatprep.subr.mxu0 0.0
        %2153 = vmatpush1.msra.mxu0 0.0
        %2154 = vmatprep.subr.mxu0 0.0
        %2155 = vmatpush1.msra.mxu0 0.0
        %2156 = vmatprep.subr.mxu0 0.0
        %2157 = vmatpush1.msra.mxu0 0.0
        %2158 = vmatprep.subr.mxu0 0.0
        %2159 = vmatpush1.msra.mxu0 0.0
        %2160 = vmatprep.subr.mxu0 0.0
        %2161 = vmatpush1.msra.mxu0 0.0
        %2162 = vmatprep.subr.mxu0 0.0
        %2163 = vmatpush1.msra.mxu0 0.0
        %2164 = vmatprep.subr.mxu0 0.0
        %2165 = vmatpush1.msra.mxu0 0.0
        %2166 = vmatprep.subr.mxu0 0.0
        %2167 = vmatpush1.msra.mxu0 0.0
        %2168 = vmatprep.subr.mxu0 0.0
        %2169 = vmatpush1.msra.mxu0 0.0
        %2170 = vmatprep.subr.mxu0 0.0
        %2171 = vmatpush1.msra.mxu0 0.0
        %2172 = vmatprep.subr.mxu0 0.0
        %2173 = vmatpush1.msra.mxu0 0.0
        %2174 = vmatprep.subr.mxu0 0.0
        %2175 = vmatpush1.msra.mxu0 0.0
        %2176 = vmatprep.subr.mxu0 0.0
        %2177 = vmatpush1.msra.mxu0 0.0
        %2178 = vmatprep.subr.mxu0 0.0
        %2179 = vmatpush1.msra.mxu0 0.0
        %2180 = vmatprep.subr.mxu0 0.0
        %2181 = vmatpush1.msra.mxu0 0.0
        %2182 = vmatprep.subr.mxu0 %v1979
        %2183 = vmatpush1.msra.mxu0 %v1978
        %2184 = vmatprep.subr.mxu0 0.0
        %2185 = vmatpush2.msra.mxu0 0.0
        %2186 = vmatprep.subr.mxu0 0.0
        %2187 = vmatpush2.msra.mxu0 0.0
        %2188 = vmatprep.subr.mxu0 0.0
        %2189 = vmatpush2.msra.mxu0 0.0
        %2190 = vmatprep.subr.mxu0 0.0
        %2191 = vmatpush2.msra.mxu0 0.0
        %2192 = vmatprep.subr.mxu0 0.0
        %2193 = vmatpush2.msra.mxu0 0.0
        %2194 = vmatprep.subr.mxu0 0.0
        %2195 = vmatpush2.msra.mxu0 0.0
        %2196 = vmatprep.subr.mxu0 0.0
        %2197 = vmatpush2.msra.mxu0 0.0
        %2198 = vmatprep.subr.mxu0 0.0
        %2199 = vmatpush2.msra.mxu0 0.0
        %2200 = vmatprep.subr.mxu0 0.0
        %2201 = vmatpush2.msra.mxu0 0.0
        %2202 = vmatprep.subr.mxu0 0.0
        %2203 = vmatpush2.msra.mxu0 0.0
        %2204 = vmatprep.subr.mxu0 0.0
        %2205 = vmatpush2.msra.mxu0 0.0
        %2206 = vmatprep.subr.mxu0 0.0
        %2207 = vmatpush2.msra.mxu0 0.0
        %2208 = vmatprep.subr.mxu0 0.0
        %2209 = vmatpush2.msra.mxu0 0.0
        %2210 = vmatprep.subr.mxu0 0.0
        %2211 = vmatpush2.msra.mxu0 0.0
        %2212 = vmatprep.subr.mxu0 0.0
        %2213 = vmatpush2.msra.mxu0 0.0
        %2214 = vmatprep.subr.mxu0 0.0
        %2215 = vmatpush2.msra.mxu0 0.0
        %2216 = vmatprep.mubr.f32.mxu0 0.0
        %2217 = vmatmul.mubr.f32.gmra.mxu0 %v2150
        %v2218 = vpop.f32.mrf.mxu0
        %v2219 = vadd.f32 %v2074, %v2218
        %v2220 = vpop.f32.mrf.mxu0
        %v2221 = vadd.f32 %v2076, %v2220
        %2222 = vdwg.mxu0
        %2223 = vmatprep.subr.mxu0 0.0
        %2224 = vmatpush1.msra.mxu0 0.0
        %2225 = vmatprep.subr.mxu0 0.0
        %2226 = vmatpush1.msra.mxu0 0.0
        %2227 = vmatprep.subr.mxu0 0.0
        %2228 = vmatpush1.msra.mxu0 0.0
        %2229 = vmatprep.subr.mxu0 0.0
        %2230 = vmatpush1.msra.mxu0 0.0
        %2231 = vmatprep.subr.mxu0 0.0
        %2232 = vmatpush1.msra.mxu0 0.0
        %2233 = vmatprep.subr.mxu0 0.0
        %2234 = vmatpush1.msra.mxu0 0.0
        %2235 = vmatprep.subr.mxu0 0.0
        %2236 = vmatpush1.msra.mxu0 0.0
        %2237 = vmatprep.subr.mxu0 0.0
        %2238 = vmatpush1.msra.mxu0 0.0
        %2239 = vmatprep.subr.mxu0 0.0
        %2240 = vmatpush1.msra.mxu0 0.0
        %2241 = vmatprep.subr.mxu0 0.0
        %2242 = vmatpush1.msra.mxu0 0.0
        %2243 = vmatprep.subr.mxu0 0.0
        %2244 = vmatpush1.msra.mxu0 0.0
        %2245 = vmatprep.subr.mxu0 0.0
        %2246 = vmatpush1.msra.mxu0 0.0
        %2247 = vmatprep.subr.mxu0 0.0
        %2248 = vmatpush1.msra.mxu0 0.0
        %2249 = vmatprep.subr.mxu0 0.0
        %2250 = vmatpush1.msra.mxu0 0.0
        %2251 = vmatprep.subr.mxu0 0.0
        %2252 = vmatpush1.msra.mxu0 0.0
        %2253 = vmatprep.subr.mxu0 %v1981
        %2254 = vmatpush1.msra.mxu0 %v1980
        %2255 = vmatprep.subr.mxu0 0.0
        %2256 = vmatpush2.msra.mxu0 0.0
        %2257 = vmatprep.subr.mxu0 0.0
        %2258 = vmatpush2.msra.mxu0 0.0
        %2259 = vmatprep.subr.mxu0 0.0
        %2260 = vmatpush2.msra.mxu0 0.0
        %2261 = vmatprep.subr.mxu0 0.0
        %2262 = vmatpush2.msra.mxu0 0.0
        %2263 = vmatprep.subr.mxu0 0.0
        %2264 = vmatpush2.msra.mxu0 0.0
        %2265 = vmatprep.subr.mxu0 0.0
        %2266 = vmatpush2.msra.mxu0 0.0
        %2267 = vmatprep.subr.mxu0 0.0
        %2268 = vmatpush2.msra.mxu0 0.0
        %2269 = vmatprep.subr.mxu0 0.0
        %2270 = vmatpush2.msra.mxu0 0.0
        %2271 = vmatprep.subr.mxu0 0.0
        %2272 = vmatpush2.msra.mxu0 0.0
        %2273 = vmatprep.subr.mxu0 0.0
        %2274 = vmatpush2.msra.mxu0 0.0
        %2275 = vmatprep.subr.mxu0 0.0
        %2276 = vmatpush2.msra.mxu0 0.0
        %2277 = vmatprep.subr.mxu0 0.0
        %2278 = vmatpush2.msra.mxu0 0.0
        %2279 = vmatprep.subr.mxu0 0.0
        %2280 = vmatpush2.msra.mxu0 0.0
        %2281 = vmatprep.subr.mxu0 0.0
        %2282 = vmatpush2.msra.mxu0 0.0
        %2283 = vmatprep.subr.mxu0 0.0
        %2284 = vmatpush2.msra.mxu0 0.0
        %2285 = vmatprep.subr.mxu0 0.0
        %2286 = vmatpush2.msra.mxu0 0.0
        %2287 = vmatprep.mubr.f32.mxu0 0.0
        %2288 = vmatmul.mubr.f32.gmra.mxu0 %v2150
        %v2289 = vpop.f32.mrf.mxu0
        %v2290 = vadd.f32 %v2145, %v2289
        %v2291 = vpop.f32.mrf.mxu0
        %v2292 = vadd.f32 %v2147, %v2291
        %2293 = vdwg.mxu0
        %s2294 = scalar_lea.vmem %s3, 16
        %v2295 = vld [vmem:[%s2294] sm:$0xff]
        %2296 = vrot.lane.b32.xlu0 %v1978, 126
        %v2297 = vpop.permute.xlu0 %2296
        %2298 = vrot.lane.b32.xlu0 %v1979, 126
        %v2299 = vpop.permute.xlu0 %2298
        %2300 = vrot.lane.b32.xlu0 %v1980, 126
        %v2301 = vpop.permute.xlu0 %2300
        %2302 = vrot.lane.b32.xlu0 %v1981, 126
        %v2303 = vpop.permute.xlu0 %2302
        %v2304 = vsel %vm733, %v2297, %v2299
        %v2305 = vsel %vm733, %v2299, %v2301
        %v2306 = vsel %vm733, %v2301, %v2303
        %v2312 = vsel %vm2003, %v2295, 0
        %2314 = vmatprep.subr.mxu0 0.0
        %2315 = vmatpush1.msra.mxu0 0.0
        %2316 = vmatprep.subr.mxu0 0.0
        %2317 = vmatpush1.msra.mxu0 0.0
        %2318 = vmatprep.subr.mxu0 0.0
        %2319 = vmatpush1.msra.mxu0 0.0
        %2320 = vmatprep.subr.mxu0 0.0
        %2321 = vmatpush1.msra.mxu0 0.0
        %2322 = vmatprep.subr.mxu0 0.0
        %2323 = vmatpush1.msra.mxu0 0.0
        %2324 = vmatprep.subr.mxu0 0.0
        %2325 = vmatpush1.msra.mxu0 0.0
        %2326 = vmatprep.subr.mxu0 0.0
        %2327 = vmatpush1.msra.mxu0 0.0
        %2328 = vmatprep.subr.mxu0 0.0
        %2329 = vmatpush1.msra.mxu0 0.0
        %2330 = vmatprep.subr.mxu0 0.0
        %2331 = vmatpush1.msra.mxu0 0.0
        %2332 = vmatprep.subr.mxu0 0.0
        %2333 = vmatpush1.msra.mxu0 0.0
        %2334 = vmatprep.subr.mxu0 0.0
        %2335 = vmatpush1.msra.mxu0 0.0
        %2336 = vmatprep.subr.mxu0 0.0
        %2337 = vmatpush1.msra.mxu0 0.0
        %2338 = vmatprep.subr.mxu0 0.0
        %2339 = vmatpush1.msra.mxu0 0.0
        %2340 = vmatprep.subr.mxu0 0.0
        %2341 = vmatpush1.msra.mxu0 0.0
        %2342 = vmatprep.subr.mxu0 0.0
        %2343 = vmatpush1.msra.mxu0 0.0
        %2344 = vmatprep.subr.mxu0 %v2305
        %2345 = vmatpush1.msra.mxu0 %v2304
        %2346 = vmatprep.subr.mxu0 0.0
        %2347 = vmatpush2.msra.mxu0 0.0
        %2348 = vmatprep.subr.mxu0 0.0
        %2349 = vmatpush2.msra.mxu0 0.0
        %2350 = vmatprep.subr.mxu0 0.0
        %2351 = vmatpush2.msra.mxu0 0.0
        %2352 = vmatprep.subr.mxu0 0.0
        %2353 = vmatpush2.msra.mxu0 0.0
        %2354 = vmatprep.subr.mxu0 0.0
        %2355 = vmatpush2.msra.mxu0 0.0
        %2356 = vmatprep.subr.mxu0 0.0
        %2357 = vmatpush2.msra.mxu0 0.0
        %2358 = vmatprep.subr.mxu0 0.0
        %2359 = vmatpush2.msra.mxu0 0.0
        %2360 = vmatprep.subr.mxu0 0.0
        %2361 = vmatpush2.msra.mxu0 0.0
        %2362 = vmatprep.subr.mxu0 0.0
        %2363 = vmatpush2.msra.mxu0 0.0
        %2364 = vmatprep.subr.mxu0 0.0
        %2365 = vmatpush2.msra.mxu0 0.0
        %2366 = vmatprep.subr.mxu0 0.0
        %2367 = vmatpush2.msra.mxu0 0.0
        %2368 = vmatprep.subr.mxu0 0.0
        %2369 = vmatpush2.msra.mxu0 0.0
        %2370 = vmatprep.subr.mxu0 0.0
        %2371 = vmatpush2.msra.mxu0 0.0
        %2372 = vmatprep.subr.mxu0 0.0
        %2373 = vmatpush2.msra.mxu0 0.0
        %2374 = vmatprep.subr.mxu0 0.0
        %2375 = vmatpush2.msra.mxu0 0.0
        %2376 = vmatprep.subr.mxu0 0.0
        %2377 = vmatpush2.msra.mxu0 0.0
        %2378 = vmatprep.mubr.f32.mxu0 0.0
        %2379 = vmatmul.mubr.f32.gmra.mxu0 %v2312
        %v2380 = vpop.f32.mrf.mxu0
        %v2381 = vadd.f32 0.0, %v2380
        %v2382 = vpop.f32.mrf.mxu0
        %v2383 = vadd.f32 0.0, %v2382
        %2384 = vdwg.mxu0
        %2385 = vmatprep.subr.mxu0 0.0
        %2386 = vmatpush1.msra.mxu0 0.0
        %2387 = vmatprep.subr.mxu0 0.0
        %2388 = vmatpush1.msra.mxu0 0.0
        %2389 = vmatprep.subr.mxu0 0.0
        %2390 = vmatpush1.msra.mxu0 0.0
        %2391 = vmatprep.subr.mxu0 0.0
        %2392 = vmatpush1.msra.mxu0 0.0
        %2393 = vmatprep.subr.mxu0 0.0
        %2394 = vmatpush1.msra.mxu0 0.0
        %2395 = vmatprep.subr.mxu0 0.0
        %2396 = vmatpush1.msra.mxu0 0.0
        %2397 = vmatprep.subr.mxu0 0.0
        %2398 = vmatpush1.msra.mxu0 0.0
        %2399 = vmatprep.subr.mxu0 0.0
        %2400 = vmatpush1.msra.mxu0 0.0
        %2401 = vmatprep.subr.mxu0 0.0
        %2402 = vmatpush1.msra.mxu0 0.0
        %2403 = vmatprep.subr.mxu0 0.0
        %2404 = vmatpush1.msra.mxu0 0.0
        %2405 = vmatprep.subr.mxu0 0.0
        %2406 = vmatpush1.msra.mxu0 0.0
        %2407 = vmatprep.subr.mxu0 0.0
        %2408 = vmatpush1.msra.mxu0 0.0
        %2409 = vmatprep.subr.mxu0 0.0
        %2410 = vmatpush1.msra.mxu0 0.0
        %2411 = vmatprep.subr.mxu0 0.0
        %2412 = vmatpush1.msra.mxu0 0.0
        %2413 = vmatprep.subr.mxu0 0.0
        %2414 = vmatpush1.msra.mxu0 0.0
        %2415 = vmatprep.subr.mxu0 %v2303
        %2416 = vmatpush1.msra.mxu0 %v2306
        %2417 = vmatprep.subr.mxu0 0.0
        %2418 = vmatpush2.msra.mxu0 0.0
        %2419 = vmatprep.subr.mxu0 0.0
        %2420 = vmatpush2.msra.mxu0 0.0
        %2421 = vmatprep.subr.mxu0 0.0
        %2422 = vmatpush2.msra.mxu0 0.0
        %2423 = vmatprep.subr.mxu0 0.0
        %2424 = vmatpush2.msra.mxu0 0.0
        %2425 = vmatprep.subr.mxu0 0.0
        %2426 = vmatpush2.msra.mxu0 0.0
        %2427 = vmatprep.subr.mxu0 0.0
        %2428 = vmatpush2.msra.mxu0 0.0
        %2429 = vmatprep.subr.mxu0 0.0
        %2430 = vmatpush2.msra.mxu0 0.0
        %2431 = vmatprep.subr.mxu0 0.0
        %2432 = vmatpush2.msra.mxu0 0.0
        %2433 = vmatprep.subr.mxu0 0.0
        %2434 = vmatpush2.msra.mxu0 0.0
        %2435 = vmatprep.subr.mxu0 0.0
        %2436 = vmatpush2.msra.mxu0 0.0
        %2437 = vmatprep.subr.mxu0 0.0
        %2438 = vmatpush2.msra.mxu0 0.0
        %2439 = vmatprep.subr.mxu0 0.0
        %2440 = vmatpush2.msra.mxu0 0.0
        %2441 = vmatprep.subr.mxu0 0.0
        %2442 = vmatpush2.msra.mxu0 0.0
        %2443 = vmatprep.subr.mxu0 0.0
        %2444 = vmatpush2.msra.mxu0 0.0
        %2445 = vmatprep.subr.mxu0 0.0
        %2446 = vmatpush2.msra.mxu0 0.0
        %2447 = vmatprep.subr.mxu0 0.0
        %2448 = vmatpush2.msra.mxu0 0.0
        %2449 = vmatprep.mubr.f32.mxu0 0.0
        %2450 = vmatmul.mubr.f32.gmra.mxu0 %v2312
        %v2451 = vpop.f32.mrf.mxu0
        %v2452 = vadd.f32 0.0, %v2451
        %v2453 = vpop.f32.mrf.mxu0
        %v2454 = vadd.f32 0.0, %v2453
        %2455 = vdwg.mxu0
        %v2456 = vadd.f32 %v2219, %v2381
        %v2457 = vadd.f32 %v2221, %v2383
        %v2458 = vadd.f32 %v2290, %v2452
        %v2459 = vadd.f32 %v2292, %v2454
        %s2460 = scalar_lea.vmem %s3, 24
        %v2461 = vld [vmem:[%s2460] sm:$0xff]
        %2462 = vrot.lane.b32.xlu0 %v1978, 110
        %v2463 = vpop.permute.xlu0 %2462
        %2464 = vrot.lane.b32.xlu0 %v1979, 110
        %v2465 = vpop.permute.xlu0 %2464
        %2466 = vrot.lane.b32.xlu0 %v1980, 110
        %v2467 = vpop.permute.xlu0 %2466
        %2468 = vrot.lane.b32.xlu0 %v1981, 110
        %v2469 = vpop.permute.xlu0 %2468
        %v2470 = vsel %vm902, %v2463, %v2465
        %v2471 = vsel %vm902, %v2465, %v2467
        %v2472 = vsel %vm902, %v2467, %v2469
        %v2478 = vsel %vm2003, %v2461, 0
        %2480 = vmatprep.subr.mxu0 0.0
        %2481 = vmatpush1.msra.mxu0 0.0
        %2482 = vmatprep.subr.mxu0 0.0
        %2483 = vmatpush1.msra.mxu0 0.0
        %2484 = vmatprep.subr.mxu0 0.0
        %2485 = vmatpush1.msra.mxu0 0.0
        %2486 = vmatprep.subr.mxu0 0.0
        %2487 = vmatpush1.msra.mxu0 0.0
        %2488 = vmatprep.subr.mxu0 0.0
        %2489 = vmatpush1.msra.mxu0 0.0
        %2490 = vmatprep.subr.mxu0 0.0
        %2491 = vmatpush1.msra.mxu0 0.0
        %2492 = vmatprep.subr.mxu0 0.0
        %2493 = vmatpush1.msra.mxu0 0.0
        %2494 = vmatprep.subr.mxu0 0.0
        %2495 = vmatpush1.msra.mxu0 0.0
        %2496 = vmatprep.subr.mxu0 0.0
        %2497 = vmatpush1.msra.mxu0 0.0
        %2498 = vmatprep.subr.mxu0 0.0
        %2499 = vmatpush1.msra.mxu0 0.0
        %2500 = vmatprep.subr.mxu0 0.0
        %2501 = vmatpush1.msra.mxu0 0.0
        %2502 = vmatprep.subr.mxu0 0.0
        %2503 = vmatpush1.msra.mxu0 0.0
        %2504 = vmatprep.subr.mxu0 0.0
        %2505 = vmatpush1.msra.mxu0 0.0
        %2506 = vmatprep.subr.mxu0 0.0
        %2507 = vmatpush1.msra.mxu0 0.0
        %2508 = vmatprep.subr.mxu0 0.0
        %2509 = vmatpush1.msra.mxu0 0.0
        %2510 = vmatprep.subr.mxu0 %v2471
        %2511 = vmatpush1.msra.mxu0 %v2470
        %2512 = vmatprep.subr.mxu0 0.0
        %2513 = vmatpush2.msra.mxu0 0.0
        %2514 = vmatprep.subr.mxu0 0.0
        %2515 = vmatpush2.msra.mxu0 0.0
        %2516 = vmatprep.subr.mxu0 0.0
        %2517 = vmatpush2.msra.mxu0 0.0
        %2518 = vmatprep.subr.mxu0 0.0
        %2519 = vmatpush2.msra.mxu0 0.0
        %2520 = vmatprep.subr.mxu0 0.0
        %2521 = vmatpush2.msra.mxu0 0.0
        %2522 = vmatprep.subr.mxu0 0.0
        %2523 = vmatpush2.msra.mxu0 0.0
        %2524 = vmatprep.subr.mxu0 0.0
        %2525 = vmatpush2.msra.mxu0 0.0
        %2526 = vmatprep.subr.mxu0 0.0
        %2527 = vmatpush2.msra.mxu0 0.0
        %2528 = vmatprep.subr.mxu0 0.0
        %2529 = vmatpush2.msra.mxu0 0.0
        %2530 = vmatprep.subr.mxu0 0.0
        %2531 = vmatpush2.msra.mxu0 0.0
        %2532 = vmatprep.subr.mxu0 0.0
        %2533 = vmatpush2.msra.mxu0 0.0
        %2534 = vmatprep.subr.mxu0 0.0
        %2535 = vmatpush2.msra.mxu0 0.0
        %2536 = vmatprep.subr.mxu0 0.0
        %2537 = vmatpush2.msra.mxu0 0.0
        %2538 = vmatprep.subr.mxu0 0.0
        %2539 = vmatpush2.msra.mxu0 0.0
        %2540 = vmatprep.subr.mxu0 0.0
        %2541 = vmatpush2.msra.mxu0 0.0
        %2542 = vmatprep.subr.mxu0 0.0
        %2543 = vmatpush2.msra.mxu0 0.0
        %2544 = vmatprep.mubr.f32.mxu0 0.0
        %2545 = vmatmul.mubr.f32.gmra.mxu0 %v2478
        %v2546 = vpop.f32.mrf.mxu0
        %v2547 = vadd.f32 0.0, %v2546
        %v2548 = vpop.f32.mrf.mxu0
        %v2549 = vadd.f32 0.0, %v2548
        %2550 = vdwg.mxu0
        %2551 = vmatprep.subr.mxu0 0.0
        %2552 = vmatpush1.msra.mxu0 0.0
        %2553 = vmatprep.subr.mxu0 0.0
        %2554 = vmatpush1.msra.mxu0 0.0
        %2555 = vmatprep.subr.mxu0 0.0
        %2556 = vmatpush1.msra.mxu0 0.0
        %2557 = vmatprep.subr.mxu0 0.0
        %2558 = vmatpush1.msra.mxu0 0.0
        %2559 = vmatprep.subr.mxu0 0.0
        %2560 = vmatpush1.msra.mxu0 0.0
        %2561 = vmatprep.subr.mxu0 0.0
        %2562 = vmatpush1.msra.mxu0 0.0
        %2563 = vmatprep.subr.mxu0 0.0
        %2564 = vmatpush1.msra.mxu0 0.0
        %2565 = vmatprep.subr.mxu0 0.0
        %2566 = vmatpush1.msra.mxu0 0.0
        %2567 = vmatprep.subr.mxu0 0.0
        %2568 = vmatpush1.msra.mxu0 0.0
        %2569 = vmatprep.subr.mxu0 0.0
        %2570 = vmatpush1.msra.mxu0 0.0
        %2571 = vmatprep.subr.mxu0 0.0
        %2572 = vmatpush1.msra.mxu0 0.0
        %2573 = vmatprep.subr.mxu0 0.0
        %2574 = vmatpush1.msra.mxu0 0.0
        %2575 = vmatprep.subr.mxu0 0.0
        %2576 = vmatpush1.msra.mxu0 0.0
        %2577 = vmatprep.subr.mxu0 0.0
        %2578 = vmatpush1.msra.mxu0 0.0
        %2579 = vmatprep.subr.mxu0 0.0
        %2580 = vmatpush1.msra.mxu0 0.0
        %2581 = vmatprep.subr.mxu0 %v2469
        %2582 = vmatpush1.msra.mxu0 %v2472
        %2583 = vmatprep.subr.mxu0 0.0
        %2584 = vmatpush2.msra.mxu0 0.0
        %2585 = vmatprep.subr.mxu0 0.0
        %2586 = vmatpush2.msra.mxu0 0.0
        %2587 = vmatprep.subr.mxu0 0.0
        %2588 = vmatpush2.msra.mxu0 0.0
        %2589 = vmatprep.subr.mxu0 0.0
        %2590 = vmatpush2.msra.mxu0 0.0
        %2591 = vmatprep.subr.mxu0 0.0
        %2592 = vmatpush2.msra.mxu0 0.0
        %2593 = vmatprep.subr.mxu0 0.0
        %2594 = vmatpush2.msra.mxu0 0.0
        %2595 = vmatprep.subr.mxu0 0.0
        %2596 = vmatpush2.msra.mxu0 0.0
        %2597 = vmatprep.subr.mxu0 0.0
        %2598 = vmatpush2.msra.mxu0 0.0
        %2599 = vmatprep.subr.mxu0 0.0
        %2600 = vmatpush2.msra.mxu0 0.0
        %2601 = vmatprep.subr.mxu0 0.0
        %2602 = vmatpush2.msra.mxu0 0.0
        %2603 = vmatprep.subr.mxu0 0.0
        %2604 = vmatpush2.msra.mxu0 0.0
        %2605 = vmatprep.subr.mxu0 0.0
        %2606 = vmatpush2.msra.mxu0 0.0
        %2607 = vmatprep.subr.mxu0 0.0
        %2608 = vmatpush2.msra.mxu0 0.0
        %2609 = vmatprep.subr.mxu0 0.0
        %2610 = vmatpush2.msra.mxu0 0.0
        %2611 = vmatprep.subr.mxu0 0.0
        %2612 = vmatpush2.msra.mxu0 0.0
        %2613 = vmatprep.subr.mxu0 0.0
        %2614 = vmatpush2.msra.mxu0 0.0
        %2615 = vmatprep.mubr.f32.mxu0 0.0
        %2616 = vmatmul.mubr.f32.gmra.mxu0 %v2478
        %v2617 = vpop.f32.mrf.mxu0
        %v2618 = vadd.f32 0.0, %v2617
        %v2619 = vpop.f32.mrf.mxu0
        %v2620 = vadd.f32 0.0, %v2619
        %2621 = vdwg.mxu0
        %v2622 = vadd.f32 %v2456, %v2547
        %v2623 = vadd.f32 %v2457, %v2549
        %v2624 = vadd.f32 %v2458, %v2618
        %v2625 = vadd.f32 %v2459, %v2620
        %s2626 = scalar_lea.vmem %s3, 32
        %v2627 = vld [vmem:[%s2626] sm:$0xff]
        %2628 = vrot.lane.b32.xlu0 %v1978, 109
        %v2629 = vpop.permute.xlu0 %2628
        %2630 = vrot.lane.b32.xlu0 %v1979, 109
        %v2631 = vpop.permute.xlu0 %2630
        %2632 = vrot.lane.b32.xlu0 %v1980, 109
        %v2633 = vpop.permute.xlu0 %2632
        %2634 = vrot.lane.b32.xlu0 %v1981, 109
        %v2635 = vpop.permute.xlu0 %2634
        %v2636 = vsel %vm1071, %v2629, %v2631
        %v2637 = vsel %vm1071, %v2631, %v2633
        %v2638 = vsel %vm1071, %v2633, %v2635
        %v2644 = vsel %vm2003, %v2627, 0
        %2646 = vmatprep.subr.mxu0 0.0
        %2647 = vmatpush1.msra.mxu0 0.0
        %2648 = vmatprep.subr.mxu0 0.0
        %2649 = vmatpush1.msra.mxu0 0.0
        %2650 = vmatprep.subr.mxu0 0.0
        %2651 = vmatpush1.msra.mxu0 0.0
        %2652 = vmatprep.subr.mxu0 0.0
        %2653 = vmatpush1.msra.mxu0 0.0
        %2654 = vmatprep.subr.mxu0 0.0
        %2655 = vmatpush1.msra.mxu0 0.0
        %2656 = vmatprep.subr.mxu0 0.0
        %2657 = vmatpush1.msra.mxu0 0.0
        %2658 = vmatprep.subr.mxu0 0.0
        %2659 = vmatpush1.msra.mxu0 0.0
        %2660 = vmatprep.subr.mxu0 0.0
        %2661 = vmatpush1.msra.mxu0 0.0
        %2662 = vmatprep.subr.mxu0 0.0
        %2663 = vmatpush1.msra.mxu0 0.0
        %2664 = vmatprep.subr.mxu0 0.0
        %2665 = vmatpush1.msra.mxu0 0.0
        %2666 = vmatprep.subr.mxu0 0.0
        %2667 = vmatpush1.msra.mxu0 0.0
        %2668 = vmatprep.subr.mxu0 0.0
        %2669 = vmatpush1.msra.mxu0 0.0
        %2670 = vmatprep.subr.mxu0 0.0
        %2671 = vmatpush1.msra.mxu0 0.0
        %2672 = vmatprep.subr.mxu0 0.0
        %2673 = vmatpush1.msra.mxu0 0.0
        %2674 = vmatprep.subr.mxu0 0.0
        %2675 = vmatpush1.msra.mxu0 0.0
        %2676 = vmatprep.subr.mxu0 %v2637
        %2677 = vmatpush1.msra.mxu0 %v2636
        %2678 = vmatprep.subr.mxu0 0.0
        %2679 = vmatpush2.msra.mxu0 0.0
        %2680 = vmatprep.subr.mxu0 0.0
        %2681 = vmatpush2.msra.mxu0 0.0
        %2682 = vmatprep.subr.mxu0 0.0
        %2683 = vmatpush2.msra.mxu0 0.0
        %2684 = vmatprep.subr.mxu0 0.0
        %2685 = vmatpush2.msra.mxu0 0.0
        %2686 = vmatprep.subr.mxu0 0.0
        %2687 = vmatpush2.msra.mxu0 0.0
        %2688 = vmatprep.subr.mxu0 0.0
        %2689 = vmatpush2.msra.mxu0 0.0
        %2690 = vmatprep.subr.mxu0 0.0
        %2691 = vmatpush2.msra.mxu0 0.0
        %2692 = vmatprep.subr.mxu0 0.0
        %2693 = vmatpush2.msra.mxu0 0.0
        %2694 = vmatprep.subr.mxu0 0.0
        %2695 = vmatpush2.msra.mxu0 0.0
        %2696 = vmatprep.subr.mxu0 0.0
        %2697 = vmatpush2.msra.mxu0 0.0
        %2698 = vmatprep.subr.mxu0 0.0
        %2699 = vmatpush2.msra.mxu0 0.0
        %2700 = vmatprep.subr.mxu0 0.0
        %2701 = vmatpush2.msra.mxu0 0.0
        %2702 = vmatprep.subr.mxu0 0.0
        %2703 = vmatpush2.msra.mxu0 0.0
        %2704 = vmatprep.subr.mxu0 0.0
        %2705 = vmatpush2.msra.mxu0 0.0
        %2706 = vmatprep.subr.mxu0 0.0
        %2707 = vmatpush2.msra.mxu0 0.0
        %2708 = vmatprep.subr.mxu0 0.0
        %2709 = vmatpush2.msra.mxu0 0.0
        %2710 = vmatprep.mubr.f32.mxu0 0.0
        %2711 = vmatmul.mubr.f32.gmra.mxu0 %v2644
        %v2712 = vpop.f32.mrf.mxu0
        %v2713 = vadd.f32 0.0, %v2712
        %v2714 = vpop.f32.mrf.mxu0
        %v2715 = vadd.f32 0.0, %v2714
        %2716 = vdwg.mxu0
        %2717 = vmatprep.subr.mxu0 0.0
        %2718 = vmatpush1.msra.mxu0 0.0
        %2719 = vmatprep.subr.mxu0 0.0
        %2720 = vmatpush1.msra.mxu0 0.0
        %2721 = vmatprep.subr.mxu0 0.0
        %2722 = vmatpush1.msra.mxu0 0.0
        %2723 = vmatprep.subr.mxu0 0.0
        %2724 = vmatpush1.msra.mxu0 0.0
        %2725 = vmatprep.subr.mxu0 0.0
        %2726 = vmatpush1.msra.mxu0 0.0
        %2727 = vmatprep.subr.mxu0 0.0
        %2728 = vmatpush1.msra.mxu0 0.0
        %2729 = vmatprep.subr.mxu0 0.0
        %2730 = vmatpush1.msra.mxu0 0.0
        %2731 = vmatprep.subr.mxu0 0.0
        %2732 = vmatpush1.msra.mxu0 0.0
        %2733 = vmatprep.subr.mxu0 0.0
        %2734 = vmatpush1.msra.mxu0 0.0
        %2735 = vmatprep.subr.mxu0 0.0
        %2736 = vmatpush1.msra.mxu0 0.0
        %2737 = vmatprep.subr.mxu0 0.0
        %2738 = vmatpush1.msra.mxu0 0.0
        %2739 = vmatprep.subr.mxu0 0.0
        %2740 = vmatpush1.msra.mxu0 0.0
        %2741 = vmatprep.subr.mxu0 0.0
        %2742 = vmatpush1.msra.mxu0 0.0
        %2743 = vmatprep.subr.mxu0 0.0
        %2744 = vmatpush1.msra.mxu0 0.0
        %2745 = vmatprep.subr.mxu0 0.0
        %2746 = vmatpush1.msra.mxu0 0.0
        %2747 = vmatprep.subr.mxu0 %v2635
        %2748 = vmatpush1.msra.mxu0 %v2638
        %2749 = vmatprep.subr.mxu0 0.0
        %2750 = vmatpush2.msra.mxu0 0.0
        %2751 = vmatprep.subr.mxu0 0.0
        %2752 = vmatpush2.msra.mxu0 0.0
        %2753 = vmatprep.subr.mxu0 0.0
        %2754 = vmatpush2.msra.mxu0 0.0
        %2755 = vmatprep.subr.mxu0 0.0
        %2756 = vmatpush2.msra.mxu0 0.0
        %2757 = vmatprep.subr.mxu0 0.0
        %2758 = vmatpush2.msra.mxu0 0.0
        %2759 = vmatprep.subr.mxu0 0.0
        %2760 = vmatpush2.msra.mxu0 0.0
        %2761 = vmatprep.subr.mxu0 0.0
        %2762 = vmatpush2.msra.mxu0 0.0
        %2763 = vmatprep.subr.mxu0 0.0
        %2764 = vmatpush2.msra.mxu0 0.0
        %2765 = vmatprep.subr.mxu0 0.0
        %2766 = vmatpush2.msra.mxu0 0.0
        %2767 = vmatprep.subr.mxu0 0.0
        %2768 = vmatpush2.msra.mxu0 0.0
        %2769 = vmatprep.subr.mxu0 0.0
        %2770 = vmatpush2.msra.mxu0 0.0
        %2771 = vmatprep.subr.mxu0 0.0
        %2772 = vmatpush2.msra.mxu0 0.0
        %2773 = vmatprep.subr.mxu0 0.0
        %2774 = vmatpush2.msra.mxu0 0.0
        %2775 = vmatprep.subr.mxu0 0.0
        %2776 = vmatpush2.msra.mxu0 0.0
        %2777 = vmatprep.subr.mxu0 0.0
        %2778 = vmatpush2.msra.mxu0 0.0
        %2779 = vmatprep.subr.mxu0 0.0
        %2780 = vmatpush2.msra.mxu0 0.0
        %2781 = vmatprep.mubr.f32.mxu0 0.0
        %2782 = vmatmul.mubr.f32.gmra.mxu0 %v2644
        %v2783 = vpop.f32.mrf.mxu0
        %v2784 = vadd.f32 0.0, %v2783
        %v2785 = vpop.f32.mrf.mxu0
        %v2786 = vadd.f32 0.0, %v2785
        %2787 = vdwg.mxu0
        %v2788 = vadd.f32 %v2622, %v2713
        %v2789 = vadd.f32 %v2623, %v2715
        %v2790 = vadd.f32 %v2624, %v2784
        %v2791 = vadd.f32 %v2625, %v2786
        %s2792 = scalar_lea.vmem %s3, 40
        %v2793 = vld [vmem:[%s2792] sm:$0xff]
        %2794 = vrot.lane.b32.xlu0 %v1978, 108
        %v2795 = vpop.permute.xlu0 %2794
        %2796 = vrot.lane.b32.xlu0 %v1979, 108
        %v2797 = vpop.permute.xlu0 %2796
        %2798 = vrot.lane.b32.xlu0 %v1980, 108
        %v2799 = vpop.permute.xlu0 %2798
        %2800 = vrot.lane.b32.xlu0 %v1981, 108
        %v2801 = vpop.permute.xlu0 %2800
        %v2802 = vsel %vm1240, %v2795, %v2797
        %v2803 = vsel %vm1240, %v2797, %v2799
        %v2804 = vsel %vm1240, %v2799, %v2801
        %v2810 = vsel %vm2003, %v2793, 0
        %2812 = vmatprep.subr.mxu0 0.0
        %2813 = vmatpush1.msra.mxu0 0.0
        %2814 = vmatprep.subr.mxu0 0.0
        %2815 = vmatpush1.msra.mxu0 0.0
        %2816 = vmatprep.subr.mxu0 0.0
        %2817 = vmatpush1.msra.mxu0 0.0
        %2818 = vmatprep.subr.mxu0 0.0
        %2819 = vmatpush1.msra.mxu0 0.0
        %2820 = vmatprep.subr.mxu0 0.0
        %2821 = vmatpush1.msra.mxu0 0.0
        %2822 = vmatprep.subr.mxu0 0.0
        %2823 = vmatpush1.msra.mxu0 0.0
        %2824 = vmatprep.subr.mxu0 0.0
        %2825 = vmatpush1.msra.mxu0 0.0
        %2826 = vmatprep.subr.mxu0 0.0
        %2827 = vmatpush1.msra.mxu0 0.0
        %2828 = vmatprep.subr.mxu0 0.0
        %2829 = vmatpush1.msra.mxu0 0.0
        %2830 = vmatprep.subr.mxu0 0.0
        %2831 = vmatpush1.msra.mxu0 0.0
        %2832 = vmatprep.subr.mxu0 0.0
        %2833 = vmatpush1.msra.mxu0 0.0
        %2834 = vmatprep.subr.mxu0 0.0
        %2835 = vmatpush1.msra.mxu0 0.0
        %2836 = vmatprep.subr.mxu0 0.0
        %2837 = vmatpush1.msra.mxu0 0.0
        %2838 = vmatprep.subr.mxu0 0.0
        %2839 = vmatpush1.msra.mxu0 0.0
        %2840 = vmatprep.subr.mxu0 0.0
        %2841 = vmatpush1.msra.mxu0 0.0
        %2842 = vmatprep.subr.mxu0 %v2803
        %2843 = vmatpush1.msra.mxu0 %v2802
        %2844 = vmatprep.subr.mxu0 0.0
        %2845 = vmatpush2.msra.mxu0 0.0
        %2846 = vmatprep.subr.mxu0 0.0
        %2847 = vmatpush2.msra.mxu0 0.0
        %2848 = vmatprep.subr.mxu0 0.0
        %2849 = vmatpush2.msra.mxu0 0.0
        %2850 = vmatprep.subr.mxu0 0.0
        %2851 = vmatpush2.msra.mxu0 0.0
        %2852 = vmatprep.subr.mxu0 0.0
        %2853 = vmatpush2.msra.mxu0 0.0
        %2854 = vmatprep.subr.mxu0 0.0
        %2855 = vmatpush2.msra.mxu0 0.0
        %2856 = vmatprep.subr.mxu0 0.0
        %2857 = vmatpush2.msra.mxu0 0.0
        %2858 = vmatprep.subr.mxu0 0.0
        %2859 = vmatpush2.msra.mxu0 0.0
        %2860 = vmatprep.subr.mxu0 0.0
        %2861 = vmatpush2.msra.mxu0 0.0
        %2862 = vmatprep.subr.mxu0 0.0
        %2863 = vmatpush2.msra.mxu0 0.0
        %2864 = vmatprep.subr.mxu0 0.0
        %2865 = vmatpush2.msra.mxu0 0.0
        %2866 = vmatprep.subr.mxu0 0.0
        %2867 = vmatpush2.msra.mxu0 0.0
        %2868 = vmatprep.subr.mxu0 0.0
        %2869 = vmatpush2.msra.mxu0 0.0
        %2870 = vmatprep.subr.mxu0 0.0
        %2871 = vmatpush2.msra.mxu0 0.0
        %2872 = vmatprep.subr.mxu0 0.0
        %2873 = vmatpush2.msra.mxu0 0.0
        %2874 = vmatprep.subr.mxu0 0.0
        %2875 = vmatpush2.msra.mxu0 0.0
        %2876 = vmatprep.mubr.f32.mxu0 0.0
        %2877 = vmatmul.mubr.f32.gmra.mxu0 %v2810
        %v2878 = vpop.f32.mrf.mxu0
        %v2879 = vadd.f32 0.0, %v2878
        %v2880 = vpop.f32.mrf.mxu0
        %v2881 = vadd.f32 0.0, %v2880
        %2882 = vdwg.mxu0
        %2883 = vmatprep.subr.mxu0 0.0
        %2884 = vmatpush1.msra.mxu0 0.0
        %2885 = vmatprep.subr.mxu0 0.0
        %2886 = vmatpush1.msra.mxu0 0.0
        %2887 = vmatprep.subr.mxu0 0.0
        %2888 = vmatpush1.msra.mxu0 0.0
        %2889 = vmatprep.subr.mxu0 0.0
        %2890 = vmatpush1.msra.mxu0 0.0
        %2891 = vmatprep.subr.mxu0 0.0
        %2892 = vmatpush1.msra.mxu0 0.0
        %2893 = vmatprep.subr.mxu0 0.0
        %2894 = vmatpush1.msra.mxu0 0.0
        %2895 = vmatprep.subr.mxu0 0.0
        %2896 = vmatpush1.msra.mxu0 0.0
        %2897 = vmatprep.subr.mxu0 0.0
        %2898 = vmatpush1.msra.mxu0 0.0
        %2899 = vmatprep.subr.mxu0 0.0
        %2900 = vmatpush1.msra.mxu0 0.0
        %2901 = vmatprep.subr.mxu0 0.0
        %2902 = vmatpush1.msra.mxu0 0.0
        %2903 = vmatprep.subr.mxu0 0.0
        %2904 = vmatpush1.msra.mxu0 0.0
        %2905 = vmatprep.subr.mxu0 0.0
        %2906 = vmatpush1.msra.mxu0 0.0
        %2907 = vmatprep.subr.mxu0 0.0
        %2908 = vmatpush1.msra.mxu0 0.0
        %2909 = vmatprep.subr.mxu0 0.0
        %2910 = vmatpush1.msra.mxu0 0.0
        %2911 = vmatprep.subr.mxu0 0.0
        %2912 = vmatpush1.msra.mxu0 0.0
        %2913 = vmatprep.subr.mxu0 %v2801
        %2914 = vmatpush1.msra.mxu0 %v2804
        %2915 = vmatprep.subr.mxu0 0.0
        %2916 = vmatpush2.msra.mxu0 0.0
        %2917 = vmatprep.subr.mxu0 0.0
        %2918 = vmatpush2.msra.mxu0 0.0
        %2919 = vmatprep.subr.mxu0 0.0
        %2920 = vmatpush2.msra.mxu0 0.0
        %2921 = vmatprep.subr.mxu0 0.0
        %2922 = vmatpush2.msra.mxu0 0.0
        %2923 = vmatprep.subr.mxu0 0.0
        %2924 = vmatpush2.msra.mxu0 0.0
        %2925 = vmatprep.subr.mxu0 0.0
        %2926 = vmatpush2.msra.mxu0 0.0
        %2927 = vmatprep.subr.mxu0 0.0
        %2928 = vmatpush2.msra.mxu0 0.0
        %2929 = vmatprep.subr.mxu0 0.0
        %2930 = vmatpush2.msra.mxu0 0.0
        %2931 = vmatprep.subr.mxu0 0.0
        %2932 = vmatpush2.msra.mxu0 0.0
        %2933 = vmatprep.subr.mxu0 0.0
        %2934 = vmatpush2.msra.mxu0 0.0
        %2935 = vmatprep.subr.mxu0 0.0
        %2936 = vmatpush2.msra.mxu0 0.0
        %2937 = vmatprep.subr.mxu0 0.0
        %2938 = vmatpush2.msra.mxu0 0.0
        %2939 = vmatprep.subr.mxu0 0.0
        %2940 = vmatpush2.msra.mxu0 0.0
        %2941 = vmatprep.subr.mxu0 0.0
        %2942 = vmatpush2.msra.mxu0 0.0
        %2943 = vmatprep.subr.mxu0 0.0
        %2944 = vmatpush2.msra.mxu0 0.0
        %2945 = vmatprep.subr.mxu0 0.0
        %2946 = vmatpush2.msra.mxu0 0.0
        %2947 = vmatprep.mubr.f32.mxu0 0.0
        %2948 = vmatmul.mubr.f32.gmra.mxu0 %v2810
        %v2949 = vpop.f32.mrf.mxu0
        %v2950 = vadd.f32 0.0, %v2949
        %v2951 = vpop.f32.mrf.mxu0
        %v2952 = vadd.f32 0.0, %v2951
        %2953 = vdwg.mxu0
        %v2954 = vadd.f32 %v2788, %v2879
        %v2955 = vadd.f32 %v2789, %v2881
        %v2956 = vadd.f32 %v2790, %v2950
        %v2957 = vadd.f32 %v2791, %v2952
        %s2958 = scalar_lea.vmem %s3, 48
        %v2959 = vld [vmem:[%s2958] sm:$0xff]
        %2960 = vrot.lane.b32.xlu0 %v1978, 92
        %v2961 = vpop.permute.xlu0 %2960
        %2962 = vrot.lane.b32.xlu0 %v1979, 92
        %v2963 = vpop.permute.xlu0 %2962
        %2964 = vrot.lane.b32.xlu0 %v1980, 92
        %v2965 = vpop.permute.xlu0 %2964
        %2966 = vrot.lane.b32.xlu0 %v1981, 92
        %v2967 = vpop.permute.xlu0 %2966
        %v2968 = vsel %vm1409, %v2961, %v2963
        %v2969 = vsel %vm1409, %v2963, %v2965
        %v2970 = vsel %vm1409, %v2965, %v2967
        %v2976 = vsel %vm2003, %v2959, 0
        %2978 = vmatprep.subr.mxu0 0.0
        %2979 = vmatpush1.msra.mxu0 0.0
        %2980 = vmatprep.subr.mxu0 0.0
        %2981 = vmatpush1.msra.mxu0 0.0
        %2982 = vmatprep.subr.mxu0 0.0
        %2983 = vmatpush1.msra.mxu0 0.0
        %2984 = vmatprep.subr.mxu0 0.0
        %2985 = vmatpush1.msra.mxu0 0.0
        %2986 = vmatprep.subr.mxu0 0.0
        %2987 = vmatpush1.msra.mxu0 0.0
        %2988 = vmatprep.subr.mxu0 0.0
        %2989 = vmatpush1.msra.mxu0 0.0
        %2990 = vmatprep.subr.mxu0 0.0
        %2991 = vmatpush1.msra.mxu0 0.0
        %2992 = vmatprep.subr.mxu0 0.0
        %2993 = vmatpush1.msra.mxu0 0.0
        %2994 = vmatprep.subr.mxu0 0.0
        %2995 = vmatpush1.msra.mxu0 0.0
        %2996 = vmatprep.subr.mxu0 0.0
        %2997 = vmatpush1.msra.mxu0 0.0
        %2998 = vmatprep.subr.mxu0 0.0
        %2999 = vmatpush1.msra.mxu0 0.0
        %3000 = vmatprep.subr.mxu0 0.0
        %3001 = vmatpush1.msra.mxu0 0.0
        %3002 = vmatprep.subr.mxu0 0.0
        %3003 = vmatpush1.msra.mxu0 0.0
        %3004 = vmatprep.subr.mxu0 0.0
        %3005 = vmatpush1.msra.mxu0 0.0
        %3006 = vmatprep.subr.mxu0 0.0
        %3007 = vmatpush1.msra.mxu0 0.0
        %3008 = vmatprep.subr.mxu0 %v2969
        %3009 = vmatpush1.msra.mxu0 %v2968
        %3010 = vmatprep.subr.mxu0 0.0
        %3011 = vmatpush2.msra.mxu0 0.0
        %3012 = vmatprep.subr.mxu0 0.0
        %3013 = vmatpush2.msra.mxu0 0.0
        %3014 = vmatprep.subr.mxu0 0.0
        %3015 = vmatpush2.msra.mxu0 0.0
        %3016 = vmatprep.subr.mxu0 0.0
        %3017 = vmatpush2.msra.mxu0 0.0
        %3018 = vmatprep.subr.mxu0 0.0
        %3019 = vmatpush2.msra.mxu0 0.0
        %3020 = vmatprep.subr.mxu0 0.0
        %3021 = vmatpush2.msra.mxu0 0.0
        %3022 = vmatprep.subr.mxu0 0.0
        %3023 = vmatpush2.msra.mxu0 0.0
        %3024 = vmatprep.subr.mxu0 0.0
        %3025 = vmatpush2.msra.mxu0 0.0
        %3026 = vmatprep.subr.mxu0 0.0
        %3027 = vmatpush2.msra.mxu0 0.0
        %3028 = vmatprep.subr.mxu0 0.0
        %3029 = vmatpush2.msra.mxu0 0.0
        %3030 = vmatprep.subr.mxu0 0.0
        %3031 = vmatpush2.msra.mxu0 0.0
        %3032 = vmatprep.subr.mxu0 0.0
        %3033 = vmatpush2.msra.mxu0 0.0
        %3034 = vmatprep.subr.mxu0 0.0
        %3035 = vmatpush2.msra.mxu0 0.0
        %3036 = vmatprep.subr.mxu0 0.0
        %3037 = vmatpush2.msra.mxu0 0.0
        %3038 = vmatprep.subr.mxu0 0.0
        %3039 = vmatpush2.msra.mxu0 0.0
        %3040 = vmatprep.subr.mxu0 0.0
        %3041 = vmatpush2.msra.mxu0 0.0
        %3042 = vmatprep.mubr.f32.mxu0 0.0
        %3043 = vmatmul.mubr.f32.gmra.mxu0 %v2976
        %v3044 = vpop.f32.mrf.mxu0
        %v3045 = vadd.f32 0.0, %v3044
        %v3046 = vpop.f32.mrf.mxu0
        %v3047 = vadd.f32 0.0, %v3046
        %3048 = vdwg.mxu0
        %3049 = vmatprep.subr.mxu0 0.0
        %3050 = vmatpush1.msra.mxu0 0.0
        %3051 = vmatprep.subr.mxu0 0.0
        %3052 = vmatpush1.msra.mxu0 0.0
        %3053 = vmatprep.subr.mxu0 0.0
        %3054 = vmatpush1.msra.mxu0 0.0
        %3055 = vmatprep.subr.mxu0 0.0
        %3056 = vmatpush1.msra.mxu0 0.0
        %3057 = vmatprep.subr.mxu0 0.0
        %3058 = vmatpush1.msra.mxu0 0.0
        %3059 = vmatprep.subr.mxu0 0.0
        %3060 = vmatpush1.msra.mxu0 0.0
        %3061 = vmatprep.subr.mxu0 0.0
        %3062 = vmatpush1.msra.mxu0 0.0
        %3063 = vmatprep.subr.mxu0 0.0
        %3064 = vmatpush1.msra.mxu0 0.0
        %3065 = vmatprep.subr.mxu0 0.0
        %3066 = vmatpush1.msra.mxu0 0.0
        %3067 = vmatprep.subr.mxu0 0.0
        %3068 = vmatpush1.msra.mxu0 0.0
        %3069 = vmatprep.subr.mxu0 0.0
        %3070 = vmatpush1.msra.mxu0 0.0
        %3071 = vmatprep.subr.mxu0 0.0
        %3072 = vmatpush1.msra.mxu0 0.0
        %3073 = vmatprep.subr.mxu0 0.0
        %3074 = vmatpush1.msra.mxu0 0.0
        %3075 = vmatprep.subr.mxu0 0.0
        %3076 = vmatpush1.msra.mxu0 0.0
        %3077 = vmatprep.subr.mxu0 0.0
        %3078 = vmatpush1.msra.mxu0 0.0
        %3079 = vmatprep.subr.mxu0 %v2967
        %3080 = vmatpush1.msra.mxu0 %v2970
        %3081 = vmatprep.subr.mxu0 0.0
        %3082 = vmatpush2.msra.mxu0 0.0
        %3083 = vmatprep.subr.mxu0 0.0
        %3084 = vmatpush2.msra.mxu0 0.0
        %3085 = vmatprep.subr.mxu0 0.0
        %3086 = vmatpush2.msra.mxu0 0.0
        %3087 = vmatprep.subr.mxu0 0.0
        %3088 = vmatpush2.msra.mxu0 0.0
        %3089 = vmatprep.subr.mxu0 0.0
        %3090 = vmatpush2.msra.mxu0 0.0
        %3091 = vmatprep.subr.mxu0 0.0
        %3092 = vmatpush2.msra.mxu0 0.0
        %3093 = vmatprep.subr.mxu0 0.0
        %3094 = vmatpush2.msra.mxu0 0.0
        %3095 = vmatprep.subr.mxu0 0.0
        %3096 = vmatpush2.msra.mxu0 0.0
        %3097 = vmatprep.subr.mxu0 0.0
        %3098 = vmatpush2.msra.mxu0 0.0
        %3099 = vmatprep.subr.mxu0 0.0
        %3100 = vmatpush2.msra.mxu0 0.0
        %3101 = vmatprep.subr.mxu0 0.0
        %3102 = vmatpush2.msra.mxu0 0.0
        %3103 = vmatprep.subr.mxu0 0.0
        %3104 = vmatpush2.msra.mxu0 0.0
        %3105 = vmatprep.subr.mxu0 0.0
        %3106 = vmatpush2.msra.mxu0 0.0
        %3107 = vmatprep.subr.mxu0 0.0
        %3108 = vmatpush2.msra.mxu0 0.0
        %3109 = vmatprep.subr.mxu0 0.0
        %3110 = vmatpush2.msra.mxu0 0.0
        %3111 = vmatprep.subr.mxu0 0.0
        %3112 = vmatpush2.msra.mxu0 0.0
        %3113 = vmatprep.mubr.f32.mxu0 0.0
        %3114 = vmatmul.mubr.f32.gmra.mxu0 %v2976
        %v3115 = vpop.f32.mrf.mxu0
        %v3116 = vadd.f32 0.0, %v3115
        %v3117 = vpop.f32.mrf.mxu0
        %v3118 = vadd.f32 0.0, %v3117
        %3119 = vdwg.mxu0
        %v3120 = vadd.f32 %v2954, %v3045
        %v3121 = vadd.f32 %v2955, %v3047
        %v3122 = vadd.f32 %v2956, %v3116
        %v3123 = vadd.f32 %v2957, %v3118
        %s3124 = scalar_lea.vmem %s3, 56
        %v3125 = vld [vmem:[%s3124] sm:$0xff]
        %3126 = vrot.lane.b32.xlu0 %v1978, 91
        %v3127 = vpop.permute.xlu0 %3126
        %3128 = vrot.lane.b32.xlu0 %v1979, 91
        %v3129 = vpop.permute.xlu0 %3128
        %3130 = vrot.lane.b32.xlu0 %v1980, 91
        %v3131 = vpop.permute.xlu0 %3130
        %3132 = vrot.lane.b32.xlu0 %v1981, 91
        %v3133 = vpop.permute.xlu0 %3132
        %v3134 = vsel %vm1578, %v3127, %v3129
        %v3135 = vsel %vm1578, %v3129, %v3131
        %v3136 = vsel %vm1578, %v3131, %v3133
        %v3142 = vsel %vm2003, %v3125, 0
        %3144 = vmatprep.subr.mxu0 0.0
        %3145 = vmatpush1.msra.mxu0 0.0
        %3146 = vmatprep.subr.mxu0 0.0
        %3147 = vmatpush1.msra.mxu0 0.0
        %3148 = vmatprep.subr.mxu0 0.0
        %3149 = vmatpush1.msra.mxu0 0.0
        %3150 = vmatprep.subr.mxu0 0.0
        %3151 = vmatpush1.msra.mxu0 0.0
        %3152 = vmatprep.subr.mxu0 0.0
        %3153 = vmatpush1.msra.mxu0 0.0
        %3154 = vmatprep.subr.mxu0 0.0
        %3155 = vmatpush1.msra.mxu0 0.0
        %3156 = vmatprep.subr.mxu0 0.0
        %3157 = vmatpush1.msra.mxu0 0.0
        %3158 = vmatprep.subr.mxu0 0.0
        %3159 = vmatpush1.msra.mxu0 0.0
        %3160 = vmatprep.subr.mxu0 0.0
        %3161 = vmatpush1.msra.mxu0 0.0
        %3162 = vmatprep.subr.mxu0 0.0
        %3163 = vmatpush1.msra.mxu0 0.0
        %3164 = vmatprep.subr.mxu0 0.0
        %3165 = vmatpush1.msra.mxu0 0.0
        %3166 = vmatprep.subr.mxu0 0.0
        %3167 = vmatpush1.msra.mxu0 0.0
        %3168 = vmatprep.subr.mxu0 0.0
        %3169 = vmatpush1.msra.mxu0 0.0
        %3170 = vmatprep.subr.mxu0 0.0
        %3171 = vmatpush1.msra.mxu0 0.0
        %3172 = vmatprep.subr.mxu0 0.0
        %3173 = vmatpush1.msra.mxu0 0.0
        %3174 = vmatprep.subr.mxu0 %v3135
        %3175 = vmatpush1.msra.mxu0 %v3134
        %3176 = vmatprep.subr.mxu0 0.0
        %3177 = vmatpush2.msra.mxu0 0.0
        %3178 = vmatprep.subr.mxu0 0.0
        %3179 = vmatpush2.msra.mxu0 0.0
        %3180 = vmatprep.subr.mxu0 0.0
        %3181 = vmatpush2.msra.mxu0 0.0
        %3182 = vmatprep.subr.mxu0 0.0
        %3183 = vmatpush2.msra.mxu0 0.0
        %3184 = vmatprep.subr.mxu0 0.0
        %3185 = vmatpush2.msra.mxu0 0.0
        %3186 = vmatprep.subr.mxu0 0.0
        %3187 = vmatpush2.msra.mxu0 0.0
        %3188 = vmatprep.subr.mxu0 0.0
        %3189 = vmatpush2.msra.mxu0 0.0
        %3190 = vmatprep.subr.mxu0 0.0
        %3191 = vmatpush2.msra.mxu0 0.0
        %3192 = vmatprep.subr.mxu0 0.0
        %3193 = vmatpush2.msra.mxu0 0.0
        %3194 = vmatprep.subr.mxu0 0.0
        %3195 = vmatpush2.msra.mxu0 0.0
        %3196 = vmatprep.subr.mxu0 0.0
        %3197 = vmatpush2.msra.mxu0 0.0
        %3198 = vmatprep.subr.mxu0 0.0
        %3199 = vmatpush2.msra.mxu0 0.0
        %3200 = vmatprep.subr.mxu0 0.0
        %3201 = vmatpush2.msra.mxu0 0.0
        %3202 = vmatprep.subr.mxu0 0.0
        %3203 = vmatpush2.msra.mxu0 0.0
        %3204 = vmatprep.subr.mxu0 0.0
        %3205 = vmatpush2.msra.mxu0 0.0
        %3206 = vmatprep.subr.mxu0 0.0
        %3207 = vmatpush2.msra.mxu0 0.0
        %3208 = vmatprep.mubr.f32.mxu0 0.0
        %3209 = vmatmul.mubr.f32.gmra.mxu0 %v3142
        %v3210 = vpop.f32.mrf.mxu0
        %v3211 = vadd.f32 0.0, %v3210
        %v3212 = vpop.f32.mrf.mxu0
        %v3213 = vadd.f32 0.0, %v3212
        %3214 = vdwg.mxu0
        %3215 = vmatprep.subr.mxu0 0.0
        %3216 = vmatpush1.msra.mxu0 0.0
        %3217 = vmatprep.subr.mxu0 0.0
        %3218 = vmatpush1.msra.mxu0 0.0
        %3219 = vmatprep.subr.mxu0 0.0
        %3220 = vmatpush1.msra.mxu0 0.0
        %3221 = vmatprep.subr.mxu0 0.0
        %3222 = vmatpush1.msra.mxu0 0.0
        %3223 = vmatprep.subr.mxu0 0.0
        %3224 = vmatpush1.msra.mxu0 0.0
        %3225 = vmatprep.subr.mxu0 0.0
        %3226 = vmatpush1.msra.mxu0 0.0
        %3227 = vmatprep.subr.mxu0 0.0
        %3228 = vmatpush1.msra.mxu0 0.0
        %3229 = vmatprep.subr.mxu0 0.0
        %3230 = vmatpush1.msra.mxu0 0.0
        %3231 = vmatprep.subr.mxu0 0.0
        %3232 = vmatpush1.msra.mxu0 0.0
        %3233 = vmatprep.subr.mxu0 0.0
        %3234 = vmatpush1.msra.mxu0 0.0
        %3235 = vmatprep.subr.mxu0 0.0
        %3236 = vmatpush1.msra.mxu0 0.0
        %3237 = vmatprep.subr.mxu0 0.0
        %3238 = vmatpush1.msra.mxu0 0.0
        %3239 = vmatprep.subr.mxu0 0.0
        %3240 = vmatpush1.msra.mxu0 0.0
        %3241 = vmatprep.subr.mxu0 0.0
        %3242 = vmatpush1.msra.mxu0 0.0
        %3243 = vmatprep.subr.mxu0 0.0
        %3244 = vmatpush1.msra.mxu0 0.0
        %3245 = vmatprep.subr.mxu0 %v3133
        %3246 = vmatpush1.msra.mxu0 %v3136
        %3247 = vmatprep.subr.mxu0 0.0
        %3248 = vmatpush2.msra.mxu0 0.0
        %3249 = vmatprep.subr.mxu0 0.0
        %3250 = vmatpush2.msra.mxu0 0.0
        %3251 = vmatprep.subr.mxu0 0.0
        %3252 = vmatpush2.msra.mxu0 0.0
        %3253 = vmatprep.subr.mxu0 0.0
        %3254 = vmatpush2.msra.mxu0 0.0
        %3255 = vmatprep.subr.mxu0 0.0
        %3256 = vmatpush2.msra.mxu0 0.0
        %3257 = vmatprep.subr.mxu0 0.0
        %3258 = vmatpush2.msra.mxu0 0.0
        %3259 = vmatprep.subr.mxu0 0.0
        %3260 = vmatpush2.msra.mxu0 0.0
        %3261 = vmatprep.subr.mxu0 0.0
        %3262 = vmatpush2.msra.mxu0 0.0
        %3263 = vmatprep.subr.mxu0 0.0
        %3264 = vmatpush2.msra.mxu0 0.0
        %3265 = vmatprep.subr.mxu0 0.0
        %3266 = vmatpush2.msra.mxu0 0.0
        %3267 = vmatprep.subr.mxu0 0.0
        %3268 = vmatpush2.msra.mxu0 0.0
        %3269 = vmatprep.subr.mxu0 0.0
        %3270 = vmatpush2.msra.mxu0 0.0
        %3271 = vmatprep.subr.mxu0 0.0
        %3272 = vmatpush2.msra.mxu0 0.0
        %3273 = vmatprep.subr.mxu0 0.0
        %3274 = vmatpush2.msra.mxu0 0.0
        %3275 = vmatprep.subr.mxu0 0.0
        %3276 = vmatpush2.msra.mxu0 0.0
        %3277 = vmatprep.subr.mxu0 0.0
        %3278 = vmatpush2.msra.mxu0 0.0
        %3279 = vmatprep.mubr.f32.mxu0 0.0
        %3280 = vmatmul.mubr.f32.gmra.mxu0 %v3142
        %v3281 = vpop.f32.mrf.mxu0
        %v3282 = vadd.f32 0.0, %v3281
        %v3283 = vpop.f32.mrf.mxu0
        %v3284 = vadd.f32 0.0, %v3283
        %3285 = vdwg.mxu0
        %v3286 = vadd.f32 %v3120, %v3211
        %v3287 = vadd.f32 %v3121, %v3213
        %v3288 = vadd.f32 %v3122, %v3282
        %v3289 = vadd.f32 %v3123, %v3284
        %s3290 = scalar_lea.vmem %s3, 64
        %v3291 = vld [vmem:[%s3290] sm:$0xff]
        %3292 = vrot.lane.b32.xlu0 %v1978, 90
        %v3293 = vpop.permute.xlu0 %3292
        %3294 = vrot.lane.b32.xlu0 %v1979, 90
        %v3295 = vpop.permute.xlu0 %3294
        %3296 = vrot.lane.b32.xlu0 %v1980, 90
        %v3297 = vpop.permute.xlu0 %3296
        %3298 = vrot.lane.b32.xlu0 %v1981, 90
        %v3299 = vpop.permute.xlu0 %3298
        %v3300 = vsel %vm1747, %v3293, %v3295
        %v3301 = vsel %vm1747, %v3295, %v3297
        %v3302 = vsel %vm1747, %v3297, %v3299
        %v3308 = vsel %vm2003, %v3291, 0
        %3310 = vmatprep.subr.mxu0 0.0
        %3311 = vmatpush1.msra.mxu0 0.0
        %3312 = vmatprep.subr.mxu0 0.0
        %3313 = vmatpush1.msra.mxu0 0.0
        %3314 = vmatprep.subr.mxu0 0.0
        %3315 = vmatpush1.msra.mxu0 0.0
        %3316 = vmatprep.subr.mxu0 0.0
        %3317 = vmatpush1.msra.mxu0 0.0
        %3318 = vmatprep.subr.mxu0 0.0
        %3319 = vmatpush1.msra.mxu0 0.0
        %3320 = vmatprep.subr.mxu0 0.0
        %3321 = vmatpush1.msra.mxu0 0.0
        %3322 = vmatprep.subr.mxu0 0.0
        %3323 = vmatpush1.msra.mxu0 0.0
        %3324 = vmatprep.subr.mxu0 0.0
        %3325 = vmatpush1.msra.mxu0 0.0
        %3326 = vmatprep.subr.mxu0 0.0
        %3327 = vmatpush1.msra.mxu0 0.0
        %3328 = vmatprep.subr.mxu0 0.0
        %3329 = vmatpush1.msra.mxu0 0.0
        %3330 = vmatprep.subr.mxu0 0.0
        %3331 = vmatpush1.msra.mxu0 0.0
        %3332 = vmatprep.subr.mxu0 0.0
        %3333 = vmatpush1.msra.mxu0 0.0
        %3334 = vmatprep.subr.mxu0 0.0
        %3335 = vmatpush1.msra.mxu0 0.0
        %3336 = vmatprep.subr.mxu0 0.0
        %3337 = vmatpush1.msra.mxu0 0.0
        %3338 = vmatprep.subr.mxu0 0.0
        %3339 = vmatpush1.msra.mxu0 0.0
        %3340 = vmatprep.subr.mxu0 %v3301
        %3341 = vmatpush1.msra.mxu0 %v3300
        %3342 = vmatprep.subr.mxu0 0.0
        %3343 = vmatpush2.msra.mxu0 0.0
        %3344 = vmatprep.subr.mxu0 0.0
        %3345 = vmatpush2.msra.mxu0 0.0
        %3346 = vmatprep.subr.mxu0 0.0
        %3347 = vmatpush2.msra.mxu0 0.0
        %3348 = vmatprep.subr.mxu0 0.0
        %3349 = vmatpush2.msra.mxu0 0.0
        %3350 = vmatprep.subr.mxu0 0.0
        %3351 = vmatpush2.msra.mxu0 0.0
        %3352 = vmatprep.subr.mxu0 0.0
        %3353 = vmatpush2.msra.mxu0 0.0
        %3354 = vmatprep.subr.mxu0 0.0
        %3355 = vmatpush2.msra.mxu0 0.0
        %3356 = vmatprep.subr.mxu0 0.0
        %3357 = vmatpush2.msra.mxu0 0.0
        %3358 = vmatprep.subr.mxu0 0.0
        %3359 = vmatpush2.msra.mxu0 0.0
        %3360 = vmatprep.subr.mxu0 0.0
        %3361 = vmatpush2.msra.mxu0 0.0
        %3362 = vmatprep.subr.mxu0 0.0
        %3363 = vmatpush2.msra.mxu0 0.0
        %3364 = vmatprep.subr.mxu0 0.0
        %3365 = vmatpush2.msra.mxu0 0.0
        %3366 = vmatprep.subr.mxu0 0.0
        %3367 = vmatpush2.msra.mxu0 0.0
        %3368 = vmatprep.subr.mxu0 0.0
        %3369 = vmatpush2.msra.mxu0 0.0
        %3370 = vmatprep.subr.mxu0 0.0
        %3371 = vmatpush2.msra.mxu0 0.0
        %3372 = vmatprep.subr.mxu0 0.0
        %3373 = vmatpush2.msra.mxu0 0.0
        %3374 = vmatprep.mubr.f32.mxu0 0.0
        %3375 = vmatmul.mubr.f32.gmra.mxu0 %v3308
        %v3376 = vpop.f32.mrf.mxu0
        %v3377 = vadd.f32 0.0, %v3376
        %v3378 = vpop.f32.mrf.mxu0
        %v3379 = vadd.f32 0.0, %v3378
        %3380 = vdwg.mxu0
        %3381 = vmatprep.subr.mxu0 0.0
        %3382 = vmatpush1.msra.mxu0 0.0
        %3383 = vmatprep.subr.mxu0 0.0
        %3384 = vmatpush1.msra.mxu0 0.0
        %3385 = vmatprep.subr.mxu0 0.0
        %3386 = vmatpush1.msra.mxu0 0.0
        %3387 = vmatprep.subr.mxu0 0.0
        %3388 = vmatpush1.msra.mxu0 0.0
        %3389 = vmatprep.subr.mxu0 0.0
        %3390 = vmatpush1.msra.mxu0 0.0
        %3391 = vmatprep.subr.mxu0 0.0
        %3392 = vmatpush1.msra.mxu0 0.0
        %3393 = vmatprep.subr.mxu0 0.0
        %3394 = vmatpush1.msra.mxu0 0.0
        %3395 = vmatprep.subr.mxu0 0.0
        %3396 = vmatpush1.msra.mxu0 0.0
        %3397 = vmatprep.subr.mxu0 0.0
        %3398 = vmatpush1.msra.mxu0 0.0
        %3399 = vmatprep.subr.mxu0 0.0
        %3400 = vmatpush1.msra.mxu0 0.0
        %3401 = vmatprep.subr.mxu0 0.0
        %3402 = vmatpush1.msra.mxu0 0.0
        %3403 = vmatprep.subr.mxu0 0.0
        %3404 = vmatpush1.msra.mxu0 0.0
        %3405 = vmatprep.subr.mxu0 0.0
        %3406 = vmatpush1.msra.mxu0 0.0
        %3407 = vmatprep.subr.mxu0 0.0
        %3408 = vmatpush1.msra.mxu0 0.0
        %3409 = vmatprep.subr.mxu0 0.0
        %3410 = vmatpush1.msra.mxu0 0.0
        %3411 = vmatprep.subr.mxu0 %v3299
        %3412 = vmatpush1.msra.mxu0 %v3302
        %3413 = vmatprep.subr.mxu0 0.0
        %3414 = vmatpush2.msra.mxu0 0.0
        %3415 = vmatprep.subr.mxu0 0.0
        %3416 = vmatpush2.msra.mxu0 0.0
        %3417 = vmatprep.subr.mxu0 0.0
        %3418 = vmatpush2.msra.mxu0 0.0
        %3419 = vmatprep.subr.mxu0 0.0
        %3420 = vmatpush2.msra.mxu0 0.0
        %3421 = vmatprep.subr.mxu0 0.0
        %3422 = vmatpush2.msra.mxu0 0.0
        %3423 = vmatprep.subr.mxu0 0.0
        %3424 = vmatpush2.msra.mxu0 0.0
        %3425 = vmatprep.subr.mxu0 0.0
        %3426 = vmatpush2.msra.mxu0 0.0
        %3427 = vmatprep.subr.mxu0 0.0
        %3428 = vmatpush2.msra.mxu0 0.0
        %3429 = vmatprep.subr.mxu0 0.0
        %3430 = vmatpush2.msra.mxu0 0.0
        %3431 = vmatprep.subr.mxu0 0.0
        %3432 = vmatpush2.msra.mxu0 0.0
        %3433 = vmatprep.subr.mxu0 0.0
        %3434 = vmatpush2.msra.mxu0 0.0
        %3435 = vmatprep.subr.mxu0 0.0
        %3436 = vmatpush2.msra.mxu0 0.0
        %3437 = vmatprep.subr.mxu0 0.0
        %3438 = vmatpush2.msra.mxu0 0.0
        %3439 = vmatprep.subr.mxu0 0.0
        %3440 = vmatpush2.msra.mxu0 0.0
        %3441 = vmatprep.subr.mxu0 0.0
        %3442 = vmatpush2.msra.mxu0 0.0
        %3443 = vmatprep.subr.mxu0 0.0
        %3444 = vmatpush2.msra.mxu0 0.0
        %3445 = vmatprep.mubr.f32.mxu0 0.0
        %3446 = vmatmul.mubr.f32.gmra.mxu0 %v3308
        %v3447 = vpop.f32.mrf.mxu0
        %v3448 = vadd.f32 0.0, %v3447
        %v3449 = vpop.f32.mrf.mxu0
        %v3450 = vadd.f32 0.0, %v3449
        %3451 = vdwg.mxu0
        %v3452 = vadd.f32 %v3286, %v3377
        %v3453 = vadd.f32 %v3287, %v3379
        %v3454 = vadd.f32 %v3288, %v3448
        %v3455 = vadd.f32 %v3289, %v3450
        %v3456 = vld [vmem:[%s4] sm:$0xff]
        %3458 = vset.pattern.permute.xlu0 0
        %3459 = vperm.xlu0 %3458, %v3456
        %v3460 = vpop.permute.xlu0 %3459
        %v3462 = vadd.f32 %v3452, %v3460
        %v3463 = vadd.f32 %v3453, %v3460
        %v3464 = vadd.f32 %v3454, %v3460
        %v3465 = vadd.f32 %v3455, %v3460
        %v3466 = vld [vmem:[#allocation2] sm:$0xff]
        %v3467 = vld [vmem:[#allocation2 + $0x8] sm:$0xff]
        %v3468 = vld [vmem:[%s6] sm:$0xff]
        %v3471 = vcombine.high %v3466, %v3466
        %v3472 = vcombine.high %v3467, %v3467
        %3473 = vrot.lane.b32.xlu0 %v3466, 109
        %v3474 = vpop.permute.xlu0 %3473
        %3475 = vrot.lane.b32.xlu0 %v3471, 109
        %v3476 = vpop.permute.xlu0 %3475
        %3477 = vrot.lane.b32.xlu0 %v3467, 109
        %v3478 = vpop.permute.xlu0 %3477
        %3479 = vrot.lane.b32.xlu0 %v3472, 109
        %v3480 = vpop.permute.xlu0 %3479
        %v3481 = vsel %vm1071, %v3474, %v3476
        %v3482 = vsel %vm1071, %v3476, %v3478
        %v3483 = vsel %vm1071, %v3478, %v3480
        %v3485 = vsel %vm418, %v3468, 0
        %v3487 = vsel %vm422, %v3481, 0
        %v3489 = vsel %vm422, %v3482, 0
        %v3491 = vsel %vm422, %v3483, 0
        %v3493 = vsel %vm422, %v3480, 0
        %3495 = vmatprep.subr.mxu0 0.0
        %3496 = vmatpush1.msra.mxu0 0.0
        %3497 = vmatprep.subr.mxu0 0.0
        %3498 = vmatpush1.msra.mxu0 0.0
        %3499 = vmatprep.subr.mxu0 0.0
        %3500 = vmatpush1.msra.mxu0 0.0
        %3501 = vmatprep.subr.mxu0 0.0
        %3502 = vmatpush1.msra.mxu0 0.0
        %3503 = vmatprep.subr.mxu0 0.0
        %3504 = vmatpush1.msra.mxu0 0.0
        %3505 = vmatprep.subr.mxu0 0.0
        %3506 = vmatpush1.msra.mxu0 0.0
        %3507 = vmatprep.subr.mxu0 0.0
        %3508 = vmatpush1.msra.mxu0 0.0
        %3509 = vmatprep.subr.mxu0 0.0
        %3510 = vmatpush1.msra.mxu0 0.0
        %3511 = vmatprep.subr.mxu0 0.0
        %3512 = vmatpush1.msra.mxu0 0.0
        %3513 = vmatprep.subr.mxu0 0.0
        %3514 = vmatpush1.msra.mxu0 0.0
        %3515 = vmatprep.subr.mxu0 0.0
        %3516 = vmatpush1.msra.mxu0 0.0
        %3517 = vmatprep.subr.mxu0 0.0
        %3518 = vmatpush1.msra.mxu0 0.0
        %3519 = vmatprep.subr.mxu0 0.0
        %3520 = vmatpush1.msra.mxu0 0.0
        %3521 = vmatprep.subr.mxu0 0.0
        %3522 = vmatpush1.msra.mxu0 0.0
        %3523 = vmatprep.subr.mxu0 0.0
        %3524 = vmatpush1.msra.mxu0 0.0
        %3525 = vmatprep.subr.mxu0 %v3489
        %3526 = vmatpush1.msra.mxu0 %v3487
        %3527 = vmatprep.subr.mxu0 0.0
        %3528 = vmatpush2.msra.mxu0 0.0
        %3529 = vmatprep.subr.mxu0 0.0
        %3530 = vmatpush2.msra.mxu0 0.0
        %3531 = vmatprep.subr.mxu0 0.0
        %3532 = vmatpush2.msra.mxu0 0.0
        %3533 = vmatprep.subr.mxu0 0.0
        %3534 = vmatpush2.msra.mxu0 0.0
        %3535 = vmatprep.subr.mxu0 0.0
        %3536 = vmatpush2.msra.mxu0 0.0
        %3537 = vmatprep.subr.mxu0 0.0
        %3538 = vmatpush2.msra.mxu0 0.0
        %3539 = vmatprep.subr.mxu0 0.0
        %3540 = vmatpush2.msra.mxu0 0.0
        %3541 = vmatprep.subr.mxu0 0.0
        %3542 = vmatpush2.msra.mxu0 0.0
        %3543 = vmatprep.subr.mxu0 0.0
        %3544 = vmatpush2.msra.mxu0 0.0
        %3545 = vmatprep.subr.mxu0 0.0
        %3546 = vmatpush2.msra.mxu0 0.0
        %3547 = vmatprep.subr.mxu0 0.0
        %3548 = vmatpush2.msra.mxu0 0.0
        %3549 = vmatprep.subr.mxu0 0.0
        %3550 = vmatpush2.msra.mxu0 0.0
        %3551 = vmatprep.subr.mxu0 0.0
        %3552 = vmatpush2.msra.mxu0 0.0
        %3553 = vmatprep.subr.mxu0 0.0
        %3554 = vmatpush2.msra.mxu0 0.0
        %3555 = vmatprep.subr.mxu0 0.0
        %3556 = vmatpush2.msra.mxu0 0.0
        %3557 = vmatprep.subr.mxu0 0.0
        %3558 = vmatpush2.msra.mxu0 0.0
        %3559 = vmatprep.mubr.f32.mxu0 0.0
        %3560 = vmatmul.mubr.f32.gmra.mxu0 %v3485
        %v3561 = vpop.f32.mrf.mxu0
        %v3562 = vadd.f32 0.0, %v3561
        %v3563 = vpop.f32.mrf.mxu0
        %v3564 = vadd.f32 0.0, %v3563
        %3565 = vdwg.mxu0
        %3566 = vmatprep.subr.mxu0 0.0
        %3567 = vmatpush1.msra.mxu0 0.0
        %3568 = vmatprep.subr.mxu0 0.0
        %3569 = vmatpush1.msra.mxu0 0.0
        %3570 = vmatprep.subr.mxu0 0.0
        %3571 = vmatpush1.msra.mxu0 0.0
        %3572 = vmatprep.subr.mxu0 0.0
        %3573 = vmatpush1.msra.mxu0 0.0
        %3574 = vmatprep.subr.mxu0 0.0
        %3575 = vmatpush1.msra.mxu0 0.0
        %3576 = vmatprep.subr.mxu0 0.0
        %3577 = vmatpush1.msra.mxu0 0.0
        %3578 = vmatprep.subr.mxu0 0.0
        %3579 = vmatpush1.msra.mxu0 0.0
        %3580 = vmatprep.subr.mxu0 0.0
        %3581 = vmatpush1.msra.mxu0 0.0
        %3582 = vmatprep.subr.mxu0 0.0
        %3583 = vmatpush1.msra.mxu0 0.0
        %3584 = vmatprep.subr.mxu0 0.0
        %3585 = vmatpush1.msra.mxu0 0.0
        %3586 = vmatprep.subr.mxu0 0.0
        %3587 = vmatpush1.msra.mxu0 0.0
        %3588 = vmatprep.subr.mxu0 0.0
        %3589 = vmatpush1.msra.mxu0 0.0
        %3590 = vmatprep.subr.mxu0 0.0
        %3591 = vmatpush1.msra.mxu0 0.0
        %3592 = vmatprep.subr.mxu0 0.0
        %3593 = vmatpush1.msra.mxu0 0.0
        %3594 = vmatprep.subr.mxu0 0.0
        %3595 = vmatpush1.msra.mxu0 0.0
        %3596 = vmatprep.subr.mxu0 %v3493
        %3597 = vmatpush1.msra.mxu0 %v3491
        %3598 = vmatprep.subr.mxu0 0.0
        %3599 = vmatpush2.msra.mxu0 0.0
        %3600 = vmatprep.subr.mxu0 0.0
        %3601 = vmatpush2.msra.mxu0 0.0
        %3602 = vmatprep.subr.mxu0 0.0
        %3603 = vmatpush2.msra.mxu0 0.0
        %3604 = vmatprep.subr.mxu0 0.0
        %3605 = vmatpush2.msra.mxu0 0.0
        %3606 = vmatprep.subr.mxu0 0.0
        %3607 = vmatpush2.msra.mxu0 0.0
        %3608 = vmatprep.subr.mxu0 0.0
        %3609 = vmatpush2.msra.mxu0 0.0
        %3610 = vmatprep.subr.mxu0 0.0
        %3611 = vmatpush2.msra.mxu0 0.0
        %3612 = vmatprep.subr.mxu0 0.0
        %3613 = vmatpush2.msra.mxu0 0.0
        %3614 = vmatprep.subr.mxu0 0.0
        %3615 = vmatpush2.msra.mxu0 0.0
        %3616 = vmatprep.subr.mxu0 0.0
        %3617 = vmatpush2.msra.mxu0 0.0
        %3618 = vmatprep.subr.mxu0 0.0
        %3619 = vmatpush2.msra.mxu0 0.0
        %3620 = vmatprep.subr.mxu0 0.0
        %3621 = vmatpush2.msra.mxu0 0.0
        %3622 = vmatprep.subr.mxu0 0.0
        %3623 = vmatpush2.msra.mxu0 0.0
        %3624 = vmatprep.subr.mxu0 0.0
        %3625 = vmatpush2.msra.mxu0 0.0
        %3626 = vmatprep.subr.mxu0 0.0
        %3627 = vmatpush2.msra.mxu0 0.0
        %3628 = vmatprep.subr.mxu0 0.0
        %3629 = vmatpush2.msra.mxu0 0.0
        %3630 = vmatprep.mubr.f32.mxu0 0.0
        %3631 = vmatmul.mubr.f32.gmra.mxu0 %v3485
        %v3632 = vpop.f32.mrf.mxu0
        %v3633 = vadd.f32 0.0, %v3632
        %v3634 = vpop.f32.mrf.mxu0
        %v3635 = vadd.f32 0.0, %v3634
        %3636 = vdwg.mxu0
        %v3637 = vadd.f32 %v3462, %v3562
        %v3638 = vadd.f32 %v3463, %v3564
        %v3639 = vadd.f32 %v3464, %v3633
        %v3640 = vadd.f32 %v3465, %v3635
        %3645 = vrot.lane.b32.xlu0 %v3637, 127
        %v3646 = vpop.permute.xlu0 %3645
        %3647 = vrot.lane.b32.xlu0 %v3638, 127
        %v3648 = vpop.permute.xlu0 %3647
        %3649 = vrot.lane.b32.xlu0 %v3639, 127
        %v3650 = vpop.permute.xlu0 %3649
        %3651 = vrot.lane.b32.xlu0 %v3640, 127
        %v3652 = vpop.permute.xlu0 %3651
        %v3653 = vsel %vm415, %v3646, %v3648
        %v3654 = vsel %vm415, %v3648, %v3650
        %v3655 = vsel %vm415, %v3650, %v3652
        %v3659 = vadd.f32 %v3637, %v3653
        %v3660 = vadd.f32 %v3638, %v3654
        %v3661 = vadd.f32 %v3639, %v3655
        %3662 = vrot.lane.b32.xlu0 %v3637, 110
        %v3663 = vpop.permute.xlu0 %3662
        %3664 = vrot.lane.b32.xlu0 %v3638, 110
        %v3665 = vpop.permute.xlu0 %3664
        %3666 = vrot.lane.b32.xlu0 %v3639, 110
        %v3667 = vpop.permute.xlu0 %3666
        %3668 = vrot.lane.b32.xlu0 %v3640, 110
        %v3669 = vpop.permute.xlu0 %3668
        %v3670 = vsel %vm902, %v3663, %v3665
        %v3671 = vsel %vm902, %v3665, %v3667
        %v3672 = vsel %vm902, %v3667, %v3669
        %v3676 = vadd.f32 %v3659, %v3670
        %v3677 = vadd.f32 %v3660, %v3671
        %v3678 = vadd.f32 %v3661, %v3672
        %3679 = vrot.lane.b32.xlu0 %v3637, 109
        %v3680 = vpop.permute.xlu0 %3679
        %3681 = vrot.lane.b32.xlu0 %v3638, 109
        %v3682 = vpop.permute.xlu0 %3681
        %3683 = vrot.lane.b32.xlu0 %v3639, 109
        %v3684 = vpop.permute.xlu0 %3683
        %3685 = vrot.lane.b32.xlu0 %v3640, 109
        %v3686 = vpop.permute.xlu0 %3685
        %v3687 = vsel %vm1071, %v3680, %v3682
        %v3688 = vsel %vm1071, %v3682, %v3684
        %v3689 = vsel %vm1071, %v3684, %v3686
        %v3693 = vadd.f32 %v3676, %v3687
        %v3694 = vadd.f32 %v3677, %v3688
        %v3695 = vadd.f32 %v3678, %v3689
        %v3696 = vmul.f32 %v3693, 0.25
        %v3697 = vmul.f32 %v3694, 0.25
        %v3698 = vmul.f32 %v3695, 0.25
        %v3699 = vxor.u32 %v3696, 2147483648
        %v3700 = vxor.u32 %v3697, 2147483648
        %v3701 = vxor.u32 %v3698, 2147483648
        %v3702 = vmul.f32 %v3699, 1.442695
        %v3703 = vpow.pop %v3702
        %v3704 = vmul.f32 %v3700, 1.442695
        %v3705 = vpow.pop %v3704
        %v3706 = vmul.f32 %v3701, 1.442695
        %v3707 = vpow.pop %v3706
        %v3708 = vadd.f32 %v3703, 1.0
        %v3709 = vadd.f32 %v3705, 1.0
        %v3710 = vadd.f32 %v3707, 1.0
        %v3711 = vrcp.pop %v3708
        %v3712 = vmul.f32 1.0, %v3711
        %v3713 = vrcp.pop %v3709
        %v3714 = vmul.f32 1.0, %v3713
        %v3715 = vrcp.pop %v3710
        %v3716 = vmul.f32 1.0, %v3715
        %v3717 = vmul.f32 %v3696, %v3712
        %v3718 = vmul.f32 %v3697, %v3714
        %v3719 = vmul.f32 %v3698, %v3716
        %v3720 = vmul.f32 %v3717, 0.90909094
        %v3721 = vmul.f32 %v3718, 0.90909094
        %v3722 = vmul.f32 %v3719, 0.90909094
        %3723 = vst [vmem:[%s271] sm:$0xff] %v3720
        %3724 = vst [vmem:[%s271 + $0x8] sm:$0xff] %v3721
        %3725 = vst [vmem:[%s271 + $0x10] sm:$0xff] %v3722
        %s3726 = sand.u32 %s181, 1
        %s3727 = scalar_lea.sflag [#allocation5], %s3726
        %s3728 = sand.u32 %s181, 1
        %s3729 = smul.addr %s3728, 24
        %s3730 = scalar_lea.vmem [#allocation4], %s3729
        // Predicated region
        $region49: #{tpu_custom_call.1} parent=47 // pred_check
          %p3731 = pneg %p191
        $region50: #{tpu_custom_call.1} parent=47 // pred_check_branch
          %3733 = sbr.rel (%p3731) target = $region52
        $region51: #{tpu_custom_call.1} parent=47 // pred_region
          %s3735 = ssub.s32 384, 384
          %3736 = vsyncadd %s3727, %s3735
          %s3737 = smul.addr %s21, 3
          %s3738 = smul.addr %s3737, 128
          %s3739 = scalar_lea.hbm %s7, %s3738
          %s3741 = sshll.u32 %s3730, 4
          %s3742 = int_to_ptr.vmem [resolvable:$true] %s3741
          %3744 = dma.vmem_to_hbm [thread:$0]  %s3742, 384, %s3739, %s3727
        $region52: #{tpu_custom_call.1} parent=47 // pred_fallthru
          _
      $region48: #{tpu_custom_call.1} parent=5 // pred_fallthru
        _
      %p3745 = scmp.le.s32.totalorder 2, %s16
      // Predicated region
      $region53: #{tpu_custom_call.1} parent=5 // pred_check
        %p3746 = pneg %p3745
      $region54: #{tpu_custom_call.1} parent=5 // pred_check_branch
        %3748 = sbr.rel (%p3746) target = $region56
      $region55: #{tpu_custom_call.1} parent=5 // pred_region
        %s3749 = ssub.s32 %s16, 2
        // Predicated region
        $region57: #{tpu_custom_call.1} parent=55 // pred_check
          %p3750 = pneg %p197
        $region58: #{tpu_custom_call.1} parent=55 // pred_check_branch
          %3752 = sbr.rel (%p3750) target = $region60
        $region59: #{tpu_custom_call.1} parent=55 // pred_region
          %s3753 = sand.u32 %s182, 1
          %s3754 = scalar_lea.sflag [#allocation5], %s3753
          %s3755 = sand.u32 %s182, 1
          %s3756 = smul.addr %s3755, 24
          %s3757 = scalar_lea.vmem [#allocation4], %s3756
          %3758 = dma.done %s3754, 384
        $region60: #{tpu_custom_call.1} parent=55 // pred_fallthru
          _
      $region56: #{tpu_custom_call.1} parent=5 // pred_fallthru
        _
    $region6: #{tpu_custom_call.1} parent=1 // loop_footer
      %s20 = sadd.s32 1, %s16
    $region7: #{tpu_custom_call.1} parent=1 // loop_footer_branch
      %15 = sbr.rel target = $region3
    $region8: #{tpu_custom_call.1} parent=1 // loop_exit
      _
    %3759 = vsyncpa [#allocation5], 1
    %s3760 = scalar_lea.sflag [#allocation5], 1
    %3761 = vsyncpa %s3760, 1

</llo_original>
